<compile_context>
chip_gen: v6e
topology: v6e:2x2x1
jax: 0.10.0
libtpu: 0.0.40
codegen_flags: <defaults>
</compile_context>

<pallas_src>
import numpy as np
import jax
import jax.numpy as jnp
from jax import lax
from jax.experimental import pallas as pl
from jax.experimental.pallas import tpu as pltpu

# ---------------- model config (small, synthetic) ----------------
VOCAB = 128
HIDDEN = 128
HEADS = 2
HEAD_DIM = HIDDEN // HEADS
INTERMEDIATE = 256
N_LAYERS = 2
MAX_POS = 32
LN_EPS = 1e-12


# ---------------- in-kernel helpers (f32 math) ----------------
def _layer_norm(x, gamma, beta):
    mean = jnp.mean(x, axis=-1, keepdims=True)
    var = jnp.mean((x - mean) ** 2, axis=-1, keepdims=True)
    return (x - mean) * lax.rsqrt(var + LN_EPS) * gamma + beta


def _gelu_tanh(x):
    # TODO(synk): HF BERT uses exact erf GELU; tanh approximation used here
    # (tanh lowers to the EUP on TPU).
    c = jnp.float32(0.7978845608028654)  # sqrt(2/pi)
    return 0.5 * x * (1.0 + jnp.tanh(c * (x + 0.044715 * x * x * x)))


# ---------------- fused forward kernel: grid axis = layer ----------------
def bert_fused_kernel(ids_ref,                      # SMEM (S,) int32  (scalar prefetch)
                      mask_bias_ref,                # (1, S)  f32
                      word_hbm_ref,                 # (VOCAB, H) f32, HBM (pl.ANY)
                      pos_ref, type_ref,            # (S, H), (1, H) f32
                      emb_g_ref, emb_b_ref,         # (1, H) f32
                      wqkv_ref, bqkv_ref,           # (1, H, 3H) bf16, (1, 1, 3H) f32
                      wo_ref, bo_ref,               # (1, H, H)  bf16, (1, 1, H)  f32
                      ln1_g_ref, ln1_b_ref,         # (1, 1, H) f32
                      w1_ref, b1_ref,               # (1, H, I) bf16, (1, 1, I) f32
                      w2_ref, b2_ref,               # (1, I, H) bf16, (1, 1, H) f32
                      ln2_g_ref, ln2_b_ref,         # (1, 1, H) f32
                      out_ref,                      # (S, H) f32
                      x_ref,                        # scratch VMEM (S, H) f32
                      word_buf,                     # scratch VMEM (S, H) f32
                      gather_sem):                  # DMA sems (S,)
    l = pl.program_id(0)
    s_pad = out_ref.shape[0]

    # ---- layer 0: embedding gather (word rows stay in HBM) + LN ----
    @pl.when(l == 0)
    def _embed():
        for r in range(s_pad):
            pltpu.make_async_copy(word_hbm_ref.at[pl.ds(ids_ref[r], 1)],
                                  word_buf.at[pl.ds(r, 1)],
                                  gather_sem.at[r]).start()
        for r in range(s_pad):
            pltpu.make_async_copy(word_hbm_ref.at[pl.ds(ids_ref[r], 1)],
                                  word_buf.at[pl.ds(r, 1)],
                                  gather_sem.at[r]).wait()
        emb = word_buf[...] + pos_ref[...] + type_ref[...]
        x_ref[...] = _layer_norm(emb, emb_g_ref[...], emb_b_ref[...])

    # ---- encoder layer l (activation carried in VMEM scratch) ----
    x = x_ref[...]                                   # (S, H) f32
    xb = x.astype(jnp.bfloat16)
    mask_bias = mask_bias_ref[...]                   # (1, S) f32, broadcasts over rows

    # fused QKV projection: one lane-dense (S,H)@(H,3H) MXU call
    qkv = jnp.dot(xb, wqkv_ref[0],
                  preferred_element_type=jnp.float32) + bqkv_ref[0]   # (S, 3H) f32

    # per-head attention (softmax scale already folded into Wq/bq)
    ctx_parts = []
    for h in range(HEADS):
        q_h = qkv[:, h * HEAD_DIM:(h + 1) * HEAD_DIM].astype(jnp.bfloat16)
        k_h = qkv[:, HIDDEN + h * HEAD_DIM:HIDDEN + (h + 1) * HEAD_DIM].astype(jnp.bfloat16)
        v_h = qkv[:, 2 * HIDDEN + h * HEAD_DIM:2 * HIDDEN + (h + 1) * HEAD_DIM].astype(jnp.bfloat16)

        scores = jnp.dot(q_h, k_h.T, preferred_element_type=jnp.float32) + mask_bias
        m = jnp.max(scores, axis=-1, keepdims=True)
        p = jnp.exp(scores - m)
        denom = jnp.sum(p, axis=-1, keepdims=True)
        p = p * pl.reciprocal(denom, approx=True)                     # EUP divide
        ctx_parts.append(jnp.dot(p.astype(jnp.bfloat16), v_h,
                                 preferred_element_type=jnp.float32))  # (S, Dh)
    ctx = jnp.concatenate(ctx_parts, axis=-1)                          # (S, H) f32

    # single lane-dense output projection
    attn = jnp.dot(ctx.astype(jnp.bfloat16), wo_ref[0],
                   preferred_element_type=jnp.float32) + bo_ref[0]
    h1 = _layer_norm(attn + x, ln1_g_ref[0], ln1_b_ref[0])

    ff = jnp.dot(h1.astype(jnp.bfloat16), w1_ref[0],
                 preferred_element_type=jnp.float32) + b1_ref[0]
    ff = _gelu_tanh(ff)
    ff = jnp.dot(ff.astype(jnp.bfloat16), w2_ref[0],
                 preferred_element_type=jnp.float32) + b2_ref[0]
    x_new = _layer_norm(ff + h1, ln2_g_ref[0], ln2_b_ref[0])

    x_ref[...] = x_new

    @pl.when(l == pl.num_programs(0) - 1)
    def _finalize():
        out_ref[...] = x_new


# ---------------- pallas_call wrapper ----------------
_STREAMED = ["w_qkv", "b_qkv", "wo", "bo", "ln1_g", "ln1_b",
             "w_ff1", "b_ff1", "w_ff2", "b_ff2", "ln2_g", "ln2_b"]


def _nbytes(a):
    return int(np.prod(a.shape)) * jnp.dtype(a.dtype).itemsize


def bert_forward_pallas(input_ids_np, attention_mask_np, params):
    seq = int(input_ids_np.shape[0])
    s_pad = int(-(-seq // 8) * 8)                    # sublane-friendly sequence pad
    assert s_pad <= MAX_POS, "sequence length exceeds position-embedding table"

    ids = np.zeros((s_pad,), np.int32)
    ids[:seq] = input_ids_np
    mask = np.zeros((s_pad,), np.float32)
    mask[:seq] = attention_mask_np
    mask_bias = ((1.0 - mask) * -10000.0).reshape(1, s_pad).astype(np.float32)

    pos = params["pos_emb"][:s_pad]                  # (S_pad, H)

    # --- VMEM budget: resident tensors + 2x double-buffered per-layer weights ---
    per_layer_bytes = sum(_nbytes(params[k]) // N_LAYERS for k in _STREAMED)
    resident_bytes = (_nbytes(pos) + _nbytes(mask_bias)
                      + _nbytes(params["type_emb"]) + _nbytes(params["emb_gamma"])
                      + _nbytes(params["emb_beta"])
                      + 3 * s_pad * HIDDEN * 4)       # out + 2 f32 scratches
    vmem_limit = int(min(64 * 1024 * 1024,
                         max(16 * 1024 * 1024,
                             2 * per_layer_bytes + resident_bytes + (4 << 20))))

    # --- cost estimate (advisory) ---
    mm_flops = N_LAYERS * (2 * s_pad * HIDDEN * 3 * HIDDEN          # QKV
                           + HEADS * 2 * s_pad * s_pad * HEAD_DIM * 2  # scores + ctx
                           + 2 * s_pad * HIDDEN * HIDDEN            # output proj
                           + 2 * 2 * s_pad * HIDDEN * INTERMEDIATE)  # FFN
    trans = N_LAYERS * (HEADS * s_pad * s_pad + s_pad * INTERMEDIATE)
    bytes_acc = sum(_nbytes(params[k]) for k in _STREAMED) + 4 * s_pad * HIDDEN * 2

    lres = lambda l, ids: (0, 0)                     # resident (layer-invariant) 2-D
    llyr3 = lambda l, ids: (l, 0, 0)                 # streamed per-layer 3-D

    grid_spec = pltpu.PrefetchScalarGridSpec(
        num_scalar_prefetch=1,
        grid=(N_LAYERS,),
        in_specs=[
            pl.BlockSpec((1, s_pad), lres),                            # mask_bias
            pl.BlockSpec(memory_space=pl.ANY),                         # word_emb (HBM)
            pl.BlockSpec((s_pad, HIDDEN), lres),                       # pos_emb
            pl.BlockSpec((1, HIDDEN), lres),                           # type_emb
            pl.BlockSpec((1, HIDDEN), lres),                           # emb_gamma
            pl.BlockSpec((1, HIDDEN), lres),                           # emb_beta
            pl.BlockSpec((1, HIDDEN, 3 * HIDDEN), llyr3),              # w_qkv
            pl.BlockSpec((1, 1, 3 * HIDDEN), llyr3),                   # b_qkv
            pl.BlockSpec((1, HIDDEN, HIDDEN), llyr3),                  # wo
            pl.BlockSpec((1, 1, HIDDEN), llyr3),                       # bo
            pl.BlockSpec((1, 1, HIDDEN), llyr3),                       # ln1_g
            pl.BlockSpec((1, 1, HIDDEN), llyr3),                       # ln1_b
            pl.BlockSpec((1, HIDDEN, INTERMEDIATE), llyr3),            # w_ff1
            pl.BlockSpec((1, 1, INTERMEDIATE), llyr3),                 # b_ff1
            pl.BlockSpec((1, INTERMEDIATE, HIDDEN), llyr3),            # w_ff2
            pl.BlockSpec((1, 1, HIDDEN), llyr3),                       # b_ff2
            pl.BlockSpec((1, 1, HIDDEN), llyr3),                       # ln2_g
            pl.BlockSpec((1, 1, HIDDEN), llyr3),                       # ln2_b
        ],
        out_specs=pl.BlockSpec((s_pad, HIDDEN), lres),
        scratch_shapes=[
            pltpu.VMEM((s_pad, HIDDEN), jnp.float32),    # activation carry
            pltpu.VMEM((s_pad, HIDDEN), jnp.float32),    # gathered word-embedding rows
            pltpu.SemaphoreType.DMA((s_pad,)),           # per-row gather semaphores
        ],
    )

    out = pl.pallas_call(
        bert_fused_kernel,
        out_shape=jax.ShapeDtypeStruct((s_pad, HIDDEN), jnp.float32),
        grid_spec=grid_spec,
        compiler_params=pltpu.CompilerParams(
            dimension_semantics=("arbitrary",),          # layer axis carries state
            vmem_limit_bytes=vmem_limit),
        cost_estimate=pl.CostEstimate(flops=int(mm_flops),
                                      transcendentals=int(trans),
                                      bytes_accessed=int(bytes_acc)),
    )(jnp.asarray(ids), jnp.asarray(mask_bias),
      params["word_emb"], pos, params["type_emb"],
      params["emb_gamma"], params["emb_beta"],
      params["w_qkv"], params["b_qkv"], params["wo"], params["bo"],
      params["ln1_g"], params["ln1_b"],
      params["w_ff1"], params["b_ff1"], params["w_ff2"], params["b_ff2"],
      params["ln2_g"], params["ln2_b"])

    return out[:seq].reshape(1, seq, HIDDEN)             # (batch, seq, hidden)


# ---------------- parameter init (deterministic, synthetic) ----------------
def init_params(key):
    keys = iter(jax.random.split(key, 32))

    def rnd(shape, dtype=jnp.bfloat16):
        return (0.02 * jax.random.normal(next(keys), shape, jnp.float32)).astype(dtype)

    scale = jnp.float32(1.0 / np.sqrt(HEAD_DIM))
    wq = rnd((N_LAYERS, HIDDEN, HIDDEN), jnp.float32) * scale   # fold softmax scale
    wk = rnd((N_LAYERS, HIDDEN, HIDDEN), jnp.float32)
    wv = rnd((N_LAYERS, HIDDEN, HIDDEN), jnp.float32)
    bq = jnp.zeros((N_LAYERS, 1, HIDDEN), jnp.float32) * scale
    bk = jnp.zeros((N_LAYERS, 1, HIDDEN), jnp.float32)
    bv = jnp.zeros((N_LAYERS, 1, HIDDEN), jnp.float32)

    params = {
        # embedding tables; word_emb stays in HBM (gathered by row), so f32 rows.
        "word_emb": rnd((VOCAB, HIDDEN), jnp.float32),
        "pos_emb": rnd((MAX_POS, HIDDEN), jnp.float32),
        "type_emb": rnd((1, HIDDEN), jnp.float32),          # token_type_ids all zero
        "emb_gamma": jnp.ones((1, HIDDEN), jnp.float32),
        "emb_beta": jnp.zeros((1, HIDDEN), jnp.float32),
        # per-layer stacked weights (leading layer axis, streamed by the grid)
        "w_qkv": jnp.concatenate([wq, wk, wv], axis=-1).astype(jnp.bfloat16),  # (L,H,3H)
        "b_qkv": jnp.concatenate([bq, bk, bv], axis=-1),                       # (L,1,3H)
        "wo": rnd((N_LAYERS, HIDDEN, HIDDEN)),
        "bo": jnp.zeros((N_LAYERS, 1, HIDDEN), jnp.float32),
        "ln1_g": jnp.ones((N_LAYERS, 1, HIDDEN), jnp.float32),
        "ln1_b": jnp.zeros((N_LAYERS, 1, HIDDEN), jnp.float32),
        "w_ff1": rnd((N_LAYERS, HIDDEN, INTERMEDIATE)),
        "b_ff1": jnp.zeros((N_LAYERS, 1, INTERMEDIATE), jnp.float32),
        "w_ff2": rnd((N_LAYERS, INTERMEDIATE, HIDDEN)),
        "b_ff2": jnp.zeros((N_LAYERS, 1, HIDDEN), jnp.float32),
        "ln2_g": jnp.ones((N_LAYERS, 1, HIDDEN), jnp.float32),
        "ln2_b": jnp.zeros((N_LAYERS, 1, HIDDEN), jnp.float32),
    }
    return params


# ---------------- forward (mirrors BertEmbedding.forward semantics) ----------------
def prepare_inputs(token_ids, max_length):
    """Reproduces the padding / truncation / mask logic of the PyTorch forward."""
    x = list(token_ids)
    if len(x) < max_length:
        padded = np.array(x + [0] * (max_length - len(x)), dtype=np.int32)
    else:
        # NOTE: faithfully copies the reference module's truncation branch
        # (all ids replaced by 1), even though it is almost certainly a bug there.
        padded = np.array([1] * max_length, dtype=np.int32)
        x = x[:max_length]
    attention_mask = np.where(padded != 0, 1, 0).astype(np.float32)
    return padded, attention_mask


def bert_embedding_forward(token_ids, max_length, params):
    assert max_length <= MAX_POS, "max_length exceeds position-embedding table"
    input_ids, attention_mask = prepare_inputs(token_ids, max_length)
    return bert_forward_pallas(input_ids, attention_mask, params)


# ---------------- main ----------------
if __name__ == "__main__":
    key = jax.random.PRNGKey(0)
    params = init_params(key)

    # "token_ids" plays the role of tokenizer.encode(x) output (ids < VOCAB).
    token_ids = [2, 15, 37, 58, 7, 99]      # length 6 < max_length -> padded with 0
    max_length = 8

    out = bert_embedding_forward(token_ids, max_length, params)
    out = jax.block_until_ready(out)
    assert out.shape == (1, max_length, HIDDEN)
    assert bool(jnp.all(jnp.isfinite(out)))
    print("KERNEL_OK")
</pallas_src>

<mosaic_0001>
module attributes {stable_mosaic.version = 11 : i64} {
  func.func @bert_fused_kernel(%arg0: i32, %arg1: memref<8xi32, #tpu.memory_space<smem>>, %arg2: memref<1x8xf32, #tpu.memory_space<vmem>>, %arg3: memref<128x128xf32, #tpu.memory_space<any>>, %arg4: memref<8x128xf32, #tpu.memory_space<vmem>>, %arg5: memref<1x128xf32, #tpu.memory_space<vmem>>, %arg6: memref<1x128xf32, #tpu.memory_space<vmem>>, %arg7: memref<1x128xf32, #tpu.memory_space<vmem>>, %arg8: memref<1x128x384xbf16, #tpu.memory_space<vmem>>, %arg9: memref<1x1x384xf32, #tpu.memory_space<vmem>>, %arg10: memref<1x128x128xbf16, #tpu.memory_space<vmem>>, %arg11: memref<1x1x128xf32, #tpu.memory_space<vmem>>, %arg12: memref<1x1x128xf32, #tpu.memory_space<vmem>>, %arg13: memref<1x1x128xf32, #tpu.memory_space<vmem>>, %arg14: memref<1x128x256xbf16, #tpu.memory_space<vmem>>, %arg15: memref<1x1x256xf32, #tpu.memory_space<vmem>>, %arg16: memref<1x256x128xbf16, #tpu.memory_space<vmem>>, %arg17: memref<1x1x128xf32, #tpu.memory_space<vmem>>, %arg18: memref<1x1x128xf32, #tpu.memory_space<vmem>>, %arg19: memref<1x1x128xf32, #tpu.memory_space<vmem>>, %arg20: memref<8x128xf32, #tpu.memory_space<vmem>>, %arg21: memref<8x128xf32, #tpu.memory_space<vmem>>, %arg22: memref<8x128xf32, #tpu.memory_space<vmem>>, %arg23: memref<8x!tpu.dma_semaphore, #tpu.memory_space<semaphore_mem>>) attributes {dimension_semantics = [#tpu.dimension_semantics<arbitrary>], iteration_bounds = array<i64: 2>, scalar_prefetch = 1 : i64, scratch_operands = 3 : i64, tpu.core_type = #tpu.core_type<tc>, window_params = [{pipeline_mode = #tpu.pipeline_mode<synchronous>, transform_indices = @transform_0, window_bounds = array<i64: 1, 8>}, {}, {pipeline_mode = #tpu.pipeline_mode<synchronous>, transform_indices = @transform_2, window_bounds = array<i64: 8, 128>}, {pipeline_mode = #tpu.pipeline_mode<synchronous>, transform_indices = @transform_3, window_bounds = array<i64: 1, 128>}, {pipeline_mode = #tpu.pipeline_mode<synchronous>, transform_indices = @transform_4, window_bounds = array<i64: 1, 128>}, {pipeline_mode = #tpu.pipeline_mode<synchronous>, transform_indices = @transform_5, window_bounds = array<i64: 1, 128>}, {transform_indices = @transform_6, window_bounds = array<i64: 1, 128, 384>}, {transform_indices = @transform_7, window_bounds = array<i64: 1, 1, 384>}, {transform_indices = @transform_8, window_bounds = array<i64: 1, 128, 128>}, {transform_indices = @transform_9, window_bounds = array<i64: 1, 1, 128>}, {transform_indices = @transform_10, window_bounds = array<i64: 1, 1, 128>}, {transform_indices = @transform_11, window_bounds = array<i64: 1, 1, 128>}, {transform_indices = @transform_12, window_bounds = array<i64: 1, 128, 256>}, {transform_indices = @transform_13, window_bounds = array<i64: 1, 1, 256>}, {transform_indices = @transform_14, window_bounds = array<i64: 1, 256, 128>}, {transform_indices = @transform_15, window_bounds = array<i64: 1, 1, 128>}, {transform_indices = @transform_16, window_bounds = array<i64: 1, 1, 128>}, {transform_indices = @transform_17, window_bounds = array<i64: 1, 1, 128>}, {pipeline_mode = #tpu.pipeline_mode<synchronous>, transform_indices = @transform_18, window_bounds = array<i64: 8, 128>}]} {
    %c0_i32 = arith.constant 0 : i32
    %0 = arith.cmpi eq, %arg0, %c0_i32 : i32
    %1 = arith.extui %0 : i1 to i32
    %c0_i32_0 = arith.constant 0 : i32
    %2 = arith.cmpi ne, %1, %c0_i32_0 : i32
    scf.if %2 {
      %c0_68 = arith.constant 0 : index
      %153 = memref.load %arg1[%c0_68] : memref<8xi32, #tpu.memory_space<smem>>
      %c0_i32_69 = arith.constant 0 : i32
      %c0_i32_70 = arith.constant 0 : i32
      %154 = tpu.memref_slice %arg3[%153, %c0_i32_70] : memref<128x128xf32, #tpu.memory_space<any>> -> memref<1x128xf32, #tpu.memory_space<any>>
      %c0_i32_71 = arith.constant 0 : i32
      %c0_i32_72 = arith.constant 0 : i32
      %155 = tpu.memref_slice %arg22[%c0_i32_71, %c0_i32_72] : memref<8x128xf32, #tpu.memory_space<vmem>> -> memref<1x128xf32, #tpu.memory_space<vmem>>
      %156 = tpu.memref_slice %arg23[%c0_i32_69] : memref<8x!tpu.dma_semaphore, #tpu.memory_space<semaphore_mem>> -> memref<1x!tpu.dma_semaphore, #tpu.memory_space<semaphore_mem>>
      %157 = tpu.memref_squeeze %156 : memref<1x!tpu.dma_semaphore, #tpu.memory_space<semaphore_mem>> -> memref<!tpu.dma_semaphore, #tpu.memory_space<semaphore_mem>>
      tpu.enqueue_dma source(%154 : memref<1x128xf32, #tpu.memory_space<any>>) target(%155 : memref<1x128xf32, #tpu.memory_space<vmem>>) target_semaphore(%157 : memref<!tpu.dma_semaphore, #tpu.memory_space<semaphore_mem>>)
      %c1 = arith.constant 1 : index
      %158 = memref.load %arg1[%c1] : memref<8xi32, #tpu.memory_space<smem>>
      %c1_i32_73 = arith.constant 1 : i32
      %c0_i32_74 = arith.constant 0 : i32
      %159 = tpu.memref_slice %arg3[%158, %c0_i32_74] : memref<128x128xf32, #tpu.memory_space<any>> -> memref<1x128xf32, #tpu.memory_space<any>>
      %c1_i32_75 = arith.constant 1 : i32
      %c0_i32_76 = arith.constant 0 : i32
      %160 = tpu.memref_slice %arg22[%c1_i32_75, %c0_i32_76] : memref<8x128xf32, #tpu.memory_space<vmem>> -> memref<1x128xf32, #tpu.memory_space<vmem>>
      %161 = tpu.memref_slice %arg23[%c1_i32_73] : memref<8x!tpu.dma_semaphore, #tpu.memory_space<semaphore_mem>> -> memref<1x!tpu.dma_semaphore, #tpu.memory_space<semaphore_mem>>
      %162 = tpu.memref_squeeze %161 : memref<1x!tpu.dma_semaphore, #tpu.memory_space<semaphore_mem>> -> memref<!tpu.dma_semaphore, #tpu.memory_space<semaphore_mem>>
      tpu.enqueue_dma source(%159 : memref<1x128xf32, #tpu.memory_space<any>>) target(%160 : memref<1x128xf32, #tpu.memory_space<vmem>>) target_semaphore(%162 : memref<!tpu.dma_semaphore, #tpu.memory_space<semaphore_mem>>)
      %c2 = arith.constant 2 : index
      %163 = memref.load %arg1[%c2] : memref<8xi32, #tpu.memory_space<smem>>
      %c2_i32 = arith.constant 2 : i32
      %c0_i32_77 = arith.constant 0 : i32
      %164 = tpu.memref_slice %arg3[%163, %c0_i32_77] : memref<128x128xf32, #tpu.memory_space<any>> -> memref<1x128xf32, #tpu.memory_space<any>>
      %c2_i32_78 = arith.constant 2 : i32
      %c0_i32_79 = arith.constant 0 : i32
      %165 = tpu.memref_slice %arg22[%c2_i32_78, %c0_i32_79] : memref<8x128xf32, #tpu.memory_space<vmem>> -> memref<1x128xf32, #tpu.memory_space<vmem>>
      %166 = tpu.memref_slice %arg23[%c2_i32] : memref<8x!tpu.dma_semaphore, #tpu.memory_space<semaphore_mem>> -> memref<1x!tpu.dma_semaphore, #tpu.memory_space<semaphore_mem>>
      %167 = tpu.memref_squeeze %166 : memref<1x!tpu.dma_semaphore, #tpu.memory_space<semaphore_mem>> -> memref<!tpu.dma_semaphore, #tpu.memory_space<semaphore_mem>>
      tpu.enqueue_dma source(%164 : memref<1x128xf32, #tpu.memory_space<any>>) target(%165 : memref<1x128xf32, #tpu.memory_space<vmem>>) target_semaphore(%167 : memref<!tpu.dma_semaphore, #tpu.memory_space<semaphore_mem>>)
      %c3 = arith.constant 3 : index
      %168 = memref.load %arg1[%c3] : memref<8xi32, #tpu.memory_space<smem>>
      %c3_i32 = arith.constant 3 : i32
      %c0_i32_80 = arith.constant 0 : i32
      %169 = tpu.memref_slice %arg3[%168, %c0_i32_80] : memref<128x128xf32, #tpu.memory_space<any>> -> memref<1x128xf32, #tpu.memory_space<any>>
      %c3_i32_81 = arith.constant 3 : i32
      %c0_i32_82 = arith.constant 0 : i32
      %170 = tpu.memref_slice %arg22[%c3_i32_81, %c0_i32_82] : memref<8x128xf32, #tpu.memory_space<vmem>> -> memref<1x128xf32, #tpu.memory_space<vmem>>
      %171 = tpu.memref_slice %arg23[%c3_i32] : memref<8x!tpu.dma_semaphore, #tpu.memory_space<semaphore_mem>> -> memref<1x!tpu.dma_semaphore, #tpu.memory_space<semaphore_mem>>
      %172 = tpu.memref_squeeze %171 : memref<1x!tpu.dma_semaphore, #tpu.memory_space<semaphore_mem>> -> memref<!tpu.dma_semaphore, #tpu.memory_space<semaphore_mem>>
      tpu.enqueue_dma source(%169 : memref<1x128xf32, #tpu.memory_space<any>>) target(%170 : memref<1x128xf32, #tpu.memory_space<vmem>>) target_semaphore(%172 : memref<!tpu.dma_semaphore, #tpu.memory_space<semaphore_mem>>)
      %c4 = arith.constant 4 : index
      %173 = memref.load %arg1[%c4] : memref<8xi32, #tpu.memory_space<smem>>
      %c4_i32 = arith.constant 4 : i32
      %c0_i32_83 = arith.constant 0 : i32
      %174 = tpu.memref_slice %arg3[%173, %c0_i32_83] : memref<128x128xf32, #tpu.memory_space<any>> -> memref<1x128xf32, #tpu.memory_space<any>>
      %c4_i32_84 = arith.constant 4 : i32
      %c0_i32_85 = arith.constant 0 : i32
      %175 = tpu.memref_slice %arg22[%c4_i32_84, %c0_i32_85] : memref<8x128xf32, #tpu.memory_space<vmem>> -> memref<1x128xf32, #tpu.memory_space<vmem>>
      %176 = tpu.memref_slice %arg23[%c4_i32] : memref<8x!tpu.dma_semaphore, #tpu.memory_space<semaphore_mem>> -> memref<1x!tpu.dma_semaphore, #tpu.memory_space<semaphore_mem>>
      %177 = tpu.memref_squeeze %176 : memref<1x!tpu.dma_semaphore, #tpu.memory_space<semaphore_mem>> -> memref<!tpu.dma_semaphore, #tpu.memory_space<semaphore_mem>>
      tpu.enqueue_dma source(%174 : memref<1x128xf32, #tpu.memory_space<any>>) target(%175 : memref<1x128xf32, #tpu.memory_space<vmem>>) target_semaphore(%177 : memref<!tpu.dma_semaphore, #tpu.memory_space<semaphore_mem>>)
      %c5 = arith.constant 5 : index
      %178 = memref.load %arg1[%c5] : memref<8xi32, #tpu.memory_space<smem>>
      %c5_i32 = arith.constant 5 : i32
      %c0_i32_86 = arith.constant 0 : i32
      %179 = tpu.memref_slice %arg3[%178, %c0_i32_86] : memref<128x128xf32, #tpu.memory_space<any>> -> memref<1x128xf32, #tpu.memory_space<any>>
      %c5_i32_87 = arith.constant 5 : i32
      %c0_i32_88 = arith.constant 0 : i32
      %180 = tpu.memref_slice %arg22[%c5_i32_87, %c0_i32_88] : memref<8x128xf32, #tpu.memory_space<vmem>> -> memref<1x128xf32, #tpu.memory_space<vmem>>
      %181 = tpu.memref_slice %arg23[%c5_i32] : memref<8x!tpu.dma_semaphore, #tpu.memory_space<semaphore_mem>> -> memref<1x!tpu.dma_semaphore, #tpu.memory_space<semaphore_mem>>
      %182 = tpu.memref_squeeze %181 : memref<1x!tpu.dma_semaphore, #tpu.memory_space<semaphore_mem>> -> memref<!tpu.dma_semaphore, #tpu.memory_space<semaphore_mem>>
      tpu.enqueue_dma source(%179 : memref<1x128xf32, #tpu.memory_space<any>>) target(%180 : memref<1x128xf32, #tpu.memory_space<vmem>>) target_semaphore(%182 : memref<!tpu.dma_semaphore, #tpu.memory_space<semaphore_mem>>)
      %c6 = arith.constant 6 : index
      %183 = memref.load %arg1[%c6] : memref<8xi32, #tpu.memory_space<smem>>
      %c6_i32 = arith.constant 6 : i32
      %c0_i32_89 = arith.constant 0 : i32
      %184 = tpu.memref_slice %arg3[%183, %c0_i32_89] : memref<128x128xf32, #tpu.memory_space<any>> -> memref<1x128xf32, #tpu.memory_space<any>>
      %c6_i32_90 = arith.constant 6 : i32
      %c0_i32_91 = arith.constant 0 : i32
      %185 = tpu.memref_slice %arg22[%c6_i32_90, %c0_i32_91] : memref<8x128xf32, #tpu.memory_space<vmem>> -> memref<1x128xf32, #tpu.memory_space<vmem>>
      %186 = tpu.memref_slice %arg23[%c6_i32] : memref<8x!tpu.dma_semaphore, #tpu.memory_space<semaphore_mem>> -> memref<1x!tpu.dma_semaphore, #tpu.memory_space<semaphore_mem>>
      %187 = tpu.memref_squeeze %186 : memref<1x!tpu.dma_semaphore, #tpu.memory_space<semaphore_mem>> -> memref<!tpu.dma_semaphore, #tpu.memory_space<semaphore_mem>>
      tpu.enqueue_dma source(%184 : memref<1x128xf32, #tpu.memory_space<any>>) target(%185 : memref<1x128xf32, #tpu.memory_space<vmem>>) target_semaphore(%187 : memref<!tpu.dma_semaphore, #tpu.memory_space<semaphore_mem>>)
      %c7 = arith.constant 7 : index
      %188 = memref.load %arg1[%c7] : memref<8xi32, #tpu.memory_space<smem>>
      %c7_i32 = arith.constant 7 : i32
      %c0_i32_92 = arith.constant 0 : i32
      %189 = tpu.memref_slice %arg3[%188, %c0_i32_92] : memref<128x128xf32, #tpu.memory_space<any>> -> memref<1x128xf32, #tpu.memory_space<any>>
      %c7_i32_93 = arith.constant 7 : i32
      %c0_i32_94 = arith.constant 0 : i32
      %190 = tpu.memref_slice %arg22[%c7_i32_93, %c0_i32_94] : memref<8x128xf32, #tpu.memory_space<vmem>> -> memref<1x128xf32, #tpu.memory_space<vmem>>
      %191 = tpu.memref_slice %arg23[%c7_i32] : memref<8x!tpu.dma_semaphore, #tpu.memory_space<semaphore_mem>> -> memref<1x!tpu.dma_semaphore, #tpu.memory_space<semaphore_mem>>
      %192 = tpu.memref_squeeze %191 : memref<1x!tpu.dma_semaphore, #tpu.memory_space<semaphore_mem>> -> memref<!tpu.dma_semaphore, #tpu.memory_space<semaphore_mem>>
      tpu.enqueue_dma source(%189 : memref<1x128xf32, #tpu.memory_space<any>>) target(%190 : memref<1x128xf32, #tpu.memory_space<vmem>>) target_semaphore(%192 : memref<!tpu.dma_semaphore, #tpu.memory_space<semaphore_mem>>)
      %c0_95 = arith.constant 0 : index
      %193 = memref.load %arg1[%c0_95] : memref<8xi32, #tpu.memory_space<smem>>
      %c0_i32_96 = arith.constant 0 : i32
      %c0_i32_97 = arith.constant 0 : i32
      %194 = tpu.memref_slice %arg3[%193, %c0_i32_97] : memref<128x128xf32, #tpu.memory_space<any>> -> memref<1x128xf32, #tpu.memory_space<any>>
      %c0_i32_98 = arith.constant 0 : i32
      %c0_i32_99 = arith.constant 0 : i32
      %195 = tpu.memref_slice %arg22[%c0_i32_98, %c0_i32_99] : memref<8x128xf32, #tpu.memory_space<vmem>> -> memref<1x128xf32, #tpu.memory_space<vmem>>
      %196 = tpu.memref_slice %arg23[%c0_i32_96] : memref<8x!tpu.dma_semaphore, #tpu.memory_space<semaphore_mem>> -> memref<1x!tpu.dma_semaphore, #tpu.memory_space<semaphore_mem>>
      %197 = tpu.memref_squeeze %196 : memref<1x!tpu.dma_semaphore, #tpu.memory_space<semaphore_mem>> -> memref<!tpu.dma_semaphore, #tpu.memory_space<semaphore_mem>>
      tpu.wait_dma2 semaphore(%197 : memref<!tpu.dma_semaphore, #tpu.memory_space<semaphore_mem>>) src(%194 : memref<1x128xf32, #tpu.memory_space<any>>) dst(%195 : memref<1x128xf32, #tpu.memory_space<vmem>>)
      %c1_100 = arith.constant 1 : index
      %198 = memref.load %arg1[%c1_100] : memref<8xi32, #tpu.memory_space<smem>>
      %c1_i32_101 = arith.constant 1 : i32
      %c0_i32_102 = arith.constant 0 : i32
      %199 = tpu.memref_slice %arg3[%198, %c0_i32_102] : memref<128x128xf32, #tpu.memory_space<any>> -> memref<1x128xf32, #tpu.memory_space<any>>
      %c1_i32_103 = arith.constant 1 : i32
      %c0_i32_104 = arith.constant 0 : i32
      %200 = tpu.memref_slice %arg22[%c1_i32_103, %c0_i32_104] : memref<8x128xf32, #tpu.memory_space<vmem>> -> memref<1x128xf32, #tpu.memory_space<vmem>>
      %201 = tpu.memref_slice %arg23[%c1_i32_101] : memref<8x!tpu.dma_semaphore, #tpu.memory_space<semaphore_mem>> -> memref<1x!tpu.dma_semaphore, #tpu.memory_space<semaphore_mem>>
      %202 = tpu.memref_squeeze %201 : memref<1x!tpu.dma_semaphore, #tpu.memory_space<semaphore_mem>> -> memref<!tpu.dma_semaphore, #tpu.memory_space<semaphore_mem>>
      tpu.wait_dma2 semaphore(%202 : memref<!tpu.dma_semaphore, #tpu.memory_space<semaphore_mem>>) src(%199 : memref<1x128xf32, #tpu.memory_space<any>>) dst(%200 : memref<1x128xf32, #tpu.memory_space<vmem>>)
      %c2_105 = arith.constant 2 : index
      %203 = memref.load %arg1[%c2_105] : memref<8xi32, #tpu.memory_space<smem>>
      %c2_i32_106 = arith.constant 2 : i32
      %c0_i32_107 = arith.constant 0 : i32
      %204 = tpu.memref_slice %arg3[%203, %c0_i32_107] : memref<128x128xf32, #tpu.memory_space<any>> -> memref<1x128xf32, #tpu.memory_space<any>>
      %c2_i32_108 = arith.constant 2 : i32
      %c0_i32_109 = arith.constant 0 : i32
      %205 = tpu.memref_slice %arg22[%c2_i32_108, %c0_i32_109] : memref<8x128xf32, #tpu.memory_space<vmem>> -> memref<1x128xf32, #tpu.memory_space<vmem>>
      %206 = tpu.memref_slice %arg23[%c2_i32_106] : memref<8x!tpu.dma_semaphore, #tpu.memory_space<semaphore_mem>> -> memref<1x!tpu.dma_semaphore, #tpu.memory_space<semaphore_mem>>
      %207 = tpu.memref_squeeze %206 : memref<1x!tpu.dma_semaphore, #tpu.memory_space<semaphore_mem>> -> memref<!tpu.dma_semaphore, #tpu.memory_space<semaphore_mem>>
      tpu.wait_dma2 semaphore(%207 : memref<!tpu.dma_semaphore, #tpu.memory_space<semaphore_mem>>) src(%204 : memref<1x128xf32, #tpu.memory_space<any>>) dst(%205 : memref<1x128xf32, #tpu.memory_space<vmem>>)
      %c3_110 = arith.constant 3 : index
      %208 = memref.load %arg1[%c3_110] : memref<8xi32, #tpu.memory_space<smem>>
      %c3_i32_111 = arith.constant 3 : i32
      %c0_i32_112 = arith.constant 0 : i32
      %209 = tpu.memref_slice %arg3[%208, %c0_i32_112] : memref<128x128xf32, #tpu.memory_space<any>> -> memref<1x128xf32, #tpu.memory_space<any>>
      %c3_i32_113 = arith.constant 3 : i32
      %c0_i32_114 = arith.constant 0 : i32
      %210 = tpu.memref_slice %arg22[%c3_i32_113, %c0_i32_114] : memref<8x128xf32, #tpu.memory_space<vmem>> -> memref<1x128xf32, #tpu.memory_space<vmem>>
      %211 = tpu.memref_slice %arg23[%c3_i32_111] : memref<8x!tpu.dma_semaphore, #tpu.memory_space<semaphore_mem>> -> memref<1x!tpu.dma_semaphore, #tpu.memory_space<semaphore_mem>>
      %212 = tpu.memref_squeeze %211 : memref<1x!tpu.dma_semaphore, #tpu.memory_space<semaphore_mem>> -> memref<!tpu.dma_semaphore, #tpu.memory_space<semaphore_mem>>
      tpu.wait_dma2 semaphore(%212 : memref<!tpu.dma_semaphore, #tpu.memory_space<semaphore_mem>>) src(%209 : memref<1x128xf32, #tpu.memory_space<any>>) dst(%210 : memref<1x128xf32, #tpu.memory_space<vmem>>)
      %c4_115 = arith.constant 4 : index
      %213 = memref.load %arg1[%c4_115] : memref<8xi32, #tpu.memory_space<smem>>
      %c4_i32_116 = arith.constant 4 : i32
      %c0_i32_117 = arith.constant 0 : i32
      %214 = tpu.memref_slice %arg3[%213, %c0_i32_117] : memref<128x128xf32, #tpu.memory_space<any>> -> memref<1x128xf32, #tpu.memory_space<any>>
      %c4_i32_118 = arith.constant 4 : i32
      %c0_i32_119 = arith.constant 0 : i32
      %215 = tpu.memref_slice %arg22[%c4_i32_118, %c0_i32_119] : memref<8x128xf32, #tpu.memory_space<vmem>> -> memref<1x128xf32, #tpu.memory_space<vmem>>
      %216 = tpu.memref_slice %arg23[%c4_i32_116] : memref<8x!tpu.dma_semaphore, #tpu.memory_space<semaphore_mem>> -> memref<1x!tpu.dma_semaphore, #tpu.memory_space<semaphore_mem>>
      %217 = tpu.memref_squeeze %216 : memref<1x!tpu.dma_semaphore, #tpu.memory_space<semaphore_mem>> -> memref<!tpu.dma_semaphore, #tpu.memory_space<semaphore_mem>>
      tpu.wait_dma2 semaphore(%217 : memref<!tpu.dma_semaphore, #tpu.memory_space<semaphore_mem>>) src(%214 : memref<1x128xf32, #tpu.memory_space<any>>) dst(%215 : memref<1x128xf32, #tpu.memory_space<vmem>>)
      %c5_120 = arith.constant 5 : index
      %218 = memref.load %arg1[%c5_120] : memref<8xi32, #tpu.memory_space<smem>>
      %c5_i32_121 = arith.constant 5 : i32
      %c0_i32_122 = arith.constant 0 : i32
      %219 = tpu.memref_slice %arg3[%218, %c0_i32_122] : memref<128x128xf32, #tpu.memory_space<any>> -> memref<1x128xf32, #tpu.memory_space<any>>
      %c5_i32_123 = arith.constant 5 : i32
      %c0_i32_124 = arith.constant 0 : i32
      %220 = tpu.memref_slice %arg22[%c5_i32_123, %c0_i32_124] : memref<8x128xf32, #tpu.memory_space<vmem>> -> memref<1x128xf32, #tpu.memory_space<vmem>>
      %221 = tpu.memref_slice %arg23[%c5_i32_121] : memref<8x!tpu.dma_semaphore, #tpu.memory_space<semaphore_mem>> -> memref<1x!tpu.dma_semaphore, #tpu.memory_space<semaphore_mem>>
      %222 = tpu.memref_squeeze %221 : memref<1x!tpu.dma_semaphore, #tpu.memory_space<semaphore_mem>> -> memref<!tpu.dma_semaphore, #tpu.memory_space<semaphore_mem>>
      tpu.wait_dma2 semaphore(%222 : memref<!tpu.dma_semaphore, #tpu.memory_space<semaphore_mem>>) src(%219 : memref<1x128xf32, #tpu.memory_space<any>>) dst(%220 : memref<1x128xf32, #tpu.memory_space<vmem>>)
      %c6_125 = arith.constant 6 : index
      %223 = memref.load %arg1[%c6_125] : memref<8xi32, #tpu.memory_space<smem>>
      %c6_i32_126 = arith.constant 6 : i32
      %c0_i32_127 = arith.constant 0 : i32
      %224 = tpu.memref_slice %arg3[%223, %c0_i32_127] : memref<128x128xf32, #tpu.memory_space<any>> -> memref<1x128xf32, #tpu.memory_space<any>>
      %c6_i32_128 = arith.constant 6 : i32
      %c0_i32_129 = arith.constant 0 : i32
      %225 = tpu.memref_slice %arg22[%c6_i32_128, %c0_i32_129] : memref<8x128xf32, #tpu.memory_space<vmem>> -> memref<1x128xf32, #tpu.memory_space<vmem>>
      %226 = tpu.memref_slice %arg23[%c6_i32_126] : memref<8x!tpu.dma_semaphore, #tpu.memory_space<semaphore_mem>> -> memref<1x!tpu.dma_semaphore, #tpu.memory_space<semaphore_mem>>
      %227 = tpu.memref_squeeze %226 : memref<1x!tpu.dma_semaphore, #tpu.memory_space<semaphore_mem>> -> memref<!tpu.dma_semaphore, #tpu.memory_space<semaphore_mem>>
      tpu.wait_dma2 semaphore(%227 : memref<!tpu.dma_semaphore, #tpu.memory_space<semaphore_mem>>) src(%224 : memref<1x128xf32, #tpu.memory_space<any>>) dst(%225 : memref<1x128xf32, #tpu.memory_space<vmem>>)
      %c7_130 = arith.constant 7 : index
      %228 = memref.load %arg1[%c7_130] : memref<8xi32, #tpu.memory_space<smem>>
      %c7_i32_131 = arith.constant 7 : i32
      %c0_i32_132 = arith.constant 0 : i32
      %229 = tpu.memref_slice %arg3[%228, %c0_i32_132] : memref<128x128xf32, #tpu.memory_space<any>> -> memref<1x128xf32, #tpu.memory_space<any>>
      %c7_i32_133 = arith.constant 7 : i32
      %c0_i32_134 = arith.constant 0 : i32
      %230 = tpu.memref_slice %arg22[%c7_i32_133, %c0_i32_134] : memref<8x128xf32, #tpu.memory_space<vmem>> -> memref<1x128xf32, #tpu.memory_space<vmem>>
      %231 = tpu.memref_slice %arg23[%c7_i32_131] : memref<8x!tpu.dma_semaphore, #tpu.memory_space<semaphore_mem>> -> memref<1x!tpu.dma_semaphore, #tpu.memory_space<semaphore_mem>>
      %232 = tpu.memref_squeeze %231 : memref<1x!tpu.dma_semaphore, #tpu.memory_space<semaphore_mem>> -> memref<!tpu.dma_semaphore, #tpu.memory_space<semaphore_mem>>
      tpu.wait_dma2 semaphore(%232 : memref<!tpu.dma_semaphore, #tpu.memory_space<semaphore_mem>>) src(%229 : memref<1x128xf32, #tpu.memory_space<any>>) dst(%230 : memref<1x128xf32, #tpu.memory_space<vmem>>)
      %c0_135 = arith.constant 0 : index
      %c0_136 = arith.constant 0 : index
      %233 = vector.load %arg22[%c0_135, %c0_136] : memref<8x128xf32, #tpu.memory_space<vmem>>, vector<8x128xf32>
      %c0_137 = arith.constant 0 : index
      %c0_138 = arith.constant 0 : index
      %234 = vector.load %arg4[%c0_137, %c0_138] : memref<8x128xf32, #tpu.memory_space<vmem>>, vector<8x128xf32>
      %235 = arith.addf %233, %234 : vector<8x128xf32>
      %c0_139 = arith.constant 0 : index
      %c0_140 = arith.constant 0 : index
      %236 = vector.load %arg5[%c0_139, %c0_140] : memref<1x128xf32, #tpu.memory_space<vmem>>, vector<1x128xf32>
      %237 = vector.broadcast %236 : vector<1x128xf32> to vector<8x128xf32>
      %238 = arith.addf %235, %237 : vector<8x128xf32>
      %c0_141 = arith.constant 0 : index
      %c0_142 = arith.constant 0 : index
      %239 = vector.load %arg6[%c0_141, %c0_142] : memref<1x128xf32, #tpu.memory_space<vmem>>, vector<1x128xf32>
      %c0_143 = arith.constant 0 : index
      %c0_144 = arith.constant 0 : index
      %240 = vector.load %arg7[%c0_143, %c0_144] : memref<1x128xf32, #tpu.memory_space<vmem>>, vector<1x128xf32>
      %cst_145 = arith.constant dense<0.000000e+00> : vector<8xf32>
      %241 = vector.multi_reduction <add>, %238, %cst_145 [1] : vector<8x128xf32> to vector<8xf32>
      %242 = vector.shape_cast %241 : vector<8xf32> to vector<8x1xf32>
      %cst_146 = arith.constant 1.280000e+02 : f32
      %243 = vector.broadcast %cst_146 : f32 to vector<8x1xf32>
      %244 = arith.divf %242, %243 : vector<8x1xf32>
      %245 = vector.broadcast %244 : vector<8x1xf32> to vector<8x128xf32>
      %246 = arith.subf %238, %245 : vector<8x128xf32>
      %247 = arith.mulf %246, %246 : vector<8x128xf32>
      %cst_147 = arith.constant dense<0.000000e+00> : vector<8xf32>
      %248 = vector.multi_reduction <add>, %247, %cst_147 [1] : vector<8x128xf32> to vector<8xf32>
      %249 = vector.shape_cast %248 : vector<8xf32> to vector<8x1xf32>
      %cst_148 = arith.constant 1.280000e+02 : f32
      %250 = vector.broadcast %cst_148 : f32 to vector<8x1xf32>
      %251 = arith.divf %249, %250 : vector<8x1xf32>
      %252 = vector.broadcast %244 : vector<8x1xf32> to vector<8x128xf32>
      %253 = arith.subf %238, %252 : vector<8x128xf32>
      %cst_149 = arith.constant 9.99999996E-13 : f32
      %254 = vector.broadcast %cst_149 : f32 to vector<8x1xf32>
      %255 = arith.addf %251, %254 : vector<8x1xf32>
      %256 = math.rsqrt %255 : vector<8x1xf32>
      %257 = vector.broadcast %256 : vector<8x1xf32> to vector<8x128xf32>
      %258 = arith.mulf %253, %257 : vector<8x128xf32>
      %259 = vector.broadcast %239 : vector<1x128xf32> to vector<8x128xf32>
      %260 = arith.mulf %258, %259 : vector<8x128xf32>
      %261 = vector.broadcast %240 : vector<1x128xf32> to vector<8x128xf32>
      %262 = arith.addf %260, %261 : vector<8x128xf32>
      %c0_150 = arith.constant 0 : index
      %c0_151 = arith.constant 0 : index
      %263 = vector.load %arg21[%c0_150, %c0_151] : memref<8x128xf32, #tpu.memory_space<vmem>>, vector<8x128xf32>
      tpu.vector_store %arg21[%c0_150, %c0_151], %262 {strides = array<i32>} : memref<8x128xf32, #tpu.memory_space<vmem>>, vector<8x128xf32>,
    } else {
    }
    %c0 = arith.constant 0 : index
    %c0_1 = arith.constant 0 : index
    %3 = vector.load %arg21[%c0, %c0_1] : memref<8x128xf32, #tpu.memory_space<vmem>>, vector<8x128xf32>
    %4 = arith.truncf %3 : vector<8x128xf32> to vector<8x128xbf16>
    %c0_2 = arith.constant 0 : index
    %c0_3 = arith.constant 0 : index
    %5 = vector.load %arg2[%c0_2, %c0_3] : memref<1x8xf32, #tpu.memory_space<vmem>>, vector<1x8xf32>
    %c0_4 = arith.constant 0 : index
    %c0_5 = arith.constant 0 : index
    %c0_6 = arith.constant 0 : index
    %6 = vector.load %arg8[%c0_4, %c0_5, %c0_6] : memref<1x128x384xbf16, #tpu.memory_space<vmem>>, vector<1x128x384xbf16>
    %7 = vector.shape_cast %6 : vector<1x128x384xbf16> to vector<128x384xbf16>
    %cst = arith.constant dense<0.000000e+00> : vector<8x384xf32>
    %8 = tpu.matmul %4, %7, %cst {dimension_numbers = #tpu.dot_dimension_numbers<[1], [0], [0], [1], [0, 0, 1, 1], [], []>} : vector<8x128xbf16>, vector<128x384xbf16>, vector<8x384xf32> -> vector<8x384xf32>
    %c0_7 = arith.constant 0 : index
    %c0_8 = arith.constant 0 : index
    %c0_9 = arith.constant 0 : index
    %9 = vector.load %arg9[%c0_7, %c0_8, %c0_9] : memref<1x1x384xf32, #tpu.memory_space<vmem>>, vector<1x1x384xf32>
    %10 = vector.shape_cast %9 : vector<1x1x384xf32> to vector<1x384xf32>
    %11 = vector.broadcast %10 : vector<1x384xf32> to vector<8x384xf32>
    %12 = arith.addf %8, %11 : vector<8x384xf32>
    %13 = vector.extract_strided_slice %12 {offsets = [0, 0], sizes = [8, 64], strides = [1, 1]} : vector<8x384xf32> to vector<8x64xf32>
    %14 = arith.truncf %13 : vector<8x64xf32> to vector<8x64xbf16>
    %15 = vector.extract_strided_slice %12 {offsets = [0, 128], sizes = [8, 64], strides = [1, 1]} : vector<8x384xf32> to vector<8x64xf32>
    %16 = arith.truncf %15 : vector<8x64xf32> to vector<8x64xbf16>
    %17 = vector.extract_strided_slice %12 {offsets = [0, 256], sizes = [8, 64], strides = [1, 1]} : vector<8x384xf32> to vector<8x64xf32>
    %18 = arith.truncf %17 : vector<8x64xf32> to vector<8x64xbf16>
    %19 = tpu.transpose %16, [1, 0] : vector<8x64xbf16> -> vector<64x8xbf16>
    %cst_10 = arith.constant dense<0.000000e+00> : vector<8x8xf32>
    %20 = tpu.matmul %14, %19, %cst_10 {dimension_numbers = #tpu.dot_dimension_numbers<[1], [0], [0], [1], [0, 0, 1, 1], [], []>} : vector<8x64xbf16>, vector<64x8xbf16>, vector<8x8xf32> -> vector<8x8xf32>
    %21 = vector.broadcast %5 : vector<1x8xf32> to vector<8x8xf32>
    %22 = arith.addf %20, %21 : vector<8x8xf32>
    %cst_11 = arith.constant dense<0xFF800000> : vector<8xf32>
    %23 = vector.multi_reduction <maximumf>, %22, %cst_11 [1] : vector<8x8xf32> to vector<8xf32>
    %24 = vector.shape_cast %23 : vector<8xf32> to vector<8x1xf32>
    %25 = vector.broadcast %24 : vector<8x1xf32> to vector<8x8xf32>
    %26 = arith.subf %22, %25 : vector<8x8xf32>
    %27 = math.exp %26 : vector<8x8xf32>
    %cst_12 = arith.constant dense<0.000000e+00> : vector<8xf32>
    %28 = vector.multi_reduction <add>, %27, %cst_12 [1] : vector<8x8xf32> to vector<8xf32>
    %29 = vector.shape_cast %28 : vector<8xf32> to vector<8x1xf32>
    %30 = tpu.reciprocal %29 {approx = true} : vector<8x1xf32> -> vector<8x1xf32>
    %31 = vector.broadcast %30 : vector<8x1xf32> to vector<8x8xf32>
    %32 = arith.mulf %27, %31 : vector<8x8xf32>
    %33 = arith.truncf %32 : vector<8x8xf32> to vector<8x8xbf16>
    %cst_13 = arith.constant dense<0.000000e+00> : vector<8x64xf32>
    %34 = tpu.matmul %33, %18, %cst_13 {dimension_numbers = #tpu.dot_dimension_numbers<[1], [0], [0], [1], [0, 0, 1, 1], [], []>} : vector<8x8xbf16>, vector<8x64xbf16>, vector<8x64xf32> -> vector<8x64xf32>
    %35 = vector.extract_strided_slice %12 {offsets = [0, 64], sizes = [8, 64], strides = [1, 1]} : vector<8x384xf32> to vector<8x64xf32>
    %36 = arith.truncf %35 : vector<8x64xf32> to vector<8x64xbf16>
    %37 = vector.extract_strided_slice %12 {offsets = [0, 192], sizes = [8, 64], strides = [1, 1]} : vector<8x384xf32> to vector<8x64xf32>
    %38 = arith.truncf %37 : vector<8x64xf32> to vector<8x64xbf16>
    %39 = vector.extract_strided_slice %12 {offsets = [0, 320], sizes = [8, 64], strides = [1, 1]} : vector<8x384xf32> to vector<8x64xf32>
    %40 = arith.truncf %39 : vector<8x64xf32> to vector<8x64xbf16>
    %41 = tpu.transpose %38, [1, 0] : vector<8x64xbf16> -> vector<64x8xbf16>
    %cst_14 = arith.constant dense<0.000000e+00> : vector<8x8xf32>
    %42 = tpu.matmul %36, %41, %cst_14 {dimension_numbers = #tpu.dot_dimension_numbers<[1], [0], [0], [1], [0, 0, 1, 1], [], []>} : vector<8x64xbf16>, vector<64x8xbf16>, vector<8x8xf32> -> vector<8x8xf32>
    %43 = vector.broadcast %5 : vector<1x8xf32> to vector<8x8xf32>
    %44 = arith.addf %42, %43 : vector<8x8xf32>
    %cst_15 = arith.constant dense<0xFF800000> : vector<8xf32>
    %45 = vector.multi_reduction <maximumf>, %44, %cst_15 [1] : vector<8x8xf32> to vector<8xf32>
    %46 = vector.shape_cast %45 : vector<8xf32> to vector<8x1xf32>
    %47 = vector.broadcast %46 : vector<8x1xf32> to vector<8x8xf32>
    %48 = arith.subf %44, %47 : vector<8x8xf32>
    %49 = math.exp %48 : vector<8x8xf32>
    %cst_16 = arith.constant dense<0.000000e+00> : vector<8xf32>
    %50 = vector.multi_reduction <add>, %49, %cst_16 [1] : vector<8x8xf32> to vector<8xf32>
    %51 = vector.shape_cast %50 : vector<8xf32> to vector<8x1xf32>
    %52 = tpu.reciprocal %51 {approx = true} : vector<8x1xf32> -> vector<8x1xf32>
    %53 = vector.broadcast %52 : vector<8x1xf32> to vector<8x8xf32>
    %54 = arith.mulf %49, %53 : vector<8x8xf32>
    %55 = arith.truncf %54 : vector<8x8xf32> to vector<8x8xbf16>
    %cst_17 = arith.constant dense<0.000000e+00> : vector<8x64xf32>
    %56 = tpu.matmul %55, %40, %cst_17 {dimension_numbers = #tpu.dot_dimension_numbers<[1], [0], [0], [1], [0, 0, 1, 1], [], []>} : vector<8x8xbf16>, vector<8x64xbf16>, vector<8x64xf32> -> vector<8x64xf32>
    %57 = tpu.concatenate %34, %56 in 1 : vector<8x64xf32>, vector<8x64xf32> -> vector<8x128xf32>
    %58 = arith.truncf %57 : vector<8x128xf32> to vector<8x128xbf16>
    %c0_18 = arith.constant 0 : index
    %c0_19 = arith.constant 0 : index
    %c0_20 = arith.constant 0 : index
    %59 = vector.load %arg10[%c0_18, %c0_19, %c0_20] : memref<1x128x128xbf16, #tpu.memory_space<vmem>>, vector<1x128x128xbf16>
    %60 = vector.shape_cast %59 : vector<1x128x128xbf16> to vector<128x128xbf16>
    %cst_21 = arith.constant dense<0.000000e+00> : vector<8x128xf32>
    %61 = tpu.matmul %58, %60, %cst_21 {dimension_numbers = #tpu.dot_dimension_numbers<[1], [0], [0], [1], [0, 0, 1, 1], [], []>} : vector<8x128xbf16>, vector<128x128xbf16>, vector<8x128xf32> -> vector<8x128xf32>
    %c0_22 = arith.constant 0 : index
    %c0_23 = arith.constant 0 : index
    %c0_24 = arith.constant 0 : index
    %62 = vector.load %arg11[%c0_22, %c0_23, %c0_24] : memref<1x1x128xf32, #tpu.memory_space<vmem>>, vector<1x1x128xf32>
    %63 = vector.shape_cast %62 : vector<1x1x128xf32> to vector<1x128xf32>
    %64 = vector.broadcast %63 : vector<1x128xf32> to vector<8x128xf32>
    %65 = arith.addf %61, %64 : vector<8x128xf32>
    %66 = arith.addf %65, %3 : vector<8x128xf32>
    %c0_25 = arith.constant 0 : index
    %c0_26 = arith.constant 0 : index
    %c0_27 = arith.constant 0 : index
    %67 = vector.load %arg12[%c0_25, %c0_26, %c0_27] : memref<1x1x128xf32, #tpu.memory_space<vmem>>, vector<1x1x128xf32>
    %68 = vector.shape_cast %67 : vector<1x1x128xf32> to vector<1x128xf32>
    %c0_28 = arith.constant 0 : index
    %c0_29 = arith.constant 0 : index
    %c0_30 = arith.constant 0 : index
    %69 = vector.load %arg13[%c0_28, %c0_29, %c0_30] : memref<1x1x128xf32, #tpu.memory_space<vmem>>, vector<1x1x128xf32>
    %70 = vector.shape_cast %69 : vector<1x1x128xf32> to vector<1x128xf32>
    %cst_31 = arith.constant dense<0.000000e+00> : vector<8xf32>
    %71 = vector.multi_reduction <add>, %66, %cst_31 [1] : vector<8x128xf32> to vector<8xf32>
    %72 = vector.shape_cast %71 : vector<8xf32> to vector<8x1xf32>
    %cst_32 = arith.constant 1.280000e+02 : f32
    %73 = vector.broadcast %cst_32 : f32 to vector<8x1xf32>
    %74 = arith.divf %72, %73 : vector<8x1xf32>
    %75 = vector.broadcast %74 : vector<8x1xf32> to vector<8x128xf32>
    %76 = arith.subf %66, %75 : vector<8x128xf32>
    %77 = arith.mulf %76, %76 : vector<8x128xf32>
    %cst_33 = arith.constant dense<0.000000e+00> : vector<8xf32>
    %78 = vector.multi_reduction <add>, %77, %cst_33 [1] : vector<8x128xf32> to vector<8xf32>
    %79 = vector.shape_cast %78 : vector<8xf32> to vector<8x1xf32>
    %cst_34 = arith.constant 1.280000e+02 : f32
    %80 = vector.broadcast %cst_34 : f32 to vector<8x1xf32>
    %81 = arith.divf %79, %80 : vector<8x1xf32>
    %82 = vector.broadcast %74 : vector<8x1xf32> to vector<8x128xf32>
    %83 = arith.subf %66, %82 : vector<8x128xf32>
    %cst_35 = arith.constant 9.99999996E-13 : f32
    %84 = vector.broadcast %cst_35 : f32 to vector<8x1xf32>
    %85 = arith.addf %81, %84 : vector<8x1xf32>
    %86 = math.rsqrt %85 : vector<8x1xf32>
    %87 = vector.broadcast %86 : vector<8x1xf32> to vector<8x128xf32>
    %88 = arith.mulf %83, %87 : vector<8x128xf32>
    %89 = vector.broadcast %68 : vector<1x128xf32> to vector<8x128xf32>
    %90 = arith.mulf %88, %89 : vector<8x128xf32>
    %91 = vector.broadcast %70 : vector<1x128xf32> to vector<8x128xf32>
    %92 = arith.addf %90, %91 : vector<8x128xf32>
    %93 = arith.truncf %92 : vector<8x128xf32> to vector<8x128xbf16>
    %c0_36 = arith.constant 0 : index
    %c0_37 = arith.constant 0 : index
    %c0_38 = arith.constant 0 : index
    %94 = vector.load %arg14[%c0_36, %c0_37, %c0_38] : memref<1x128x256xbf16, #tpu.memory_space<vmem>>, vector<1x128x256xbf16>
    %95 = vector.shape_cast %94 : vector<1x128x256xbf16> to vector<128x256xbf16>
    %cst_39 = arith.constant dense<0.000000e+00> : vector<8x256xf32>
    %96 = tpu.matmul %93, %95, %cst_39 {dimension_numbers = #tpu.dot_dimension_numbers<[1], [0], [0], [1], [0, 0, 1, 1], [], []>} : vector<8x128xbf16>, vector<128x256xbf16>, vector<8x256xf32> -> vector<8x256xf32>
    %c0_40 = arith.constant 0 : index
    %c0_41 = arith.constant 0 : index
    %c0_42 = arith.constant 0 : index
    %97 = vector.load %arg15[%c0_40, %c0_41, %c0_42] : memref<1x1x256xf32, #tpu.memory_space<vmem>>, vector<1x1x256xf32>
    %98 = vector.shape_cast %97 : vector<1x1x256xf32> to vector<1x256xf32>
    %99 = vector.broadcast %98 : vector<1x256xf32> to vector<8x256xf32>
    %100 = arith.addf %96, %99 : vector<8x256xf32>
    %cst_43 = arith.constant 5.000000e-01 : f32
    %101 = vector.broadcast %cst_43 : f32 to vector<8x256xf32>
    %102 = arith.mulf %101, %100 : vector<8x256xf32>
    %cst_44 = arith.constant 4.471500e-02 : f32
    %103 = vector.broadcast %cst_44 : f32 to vector<8x256xf32>
    %104 = arith.mulf %103, %100 : vector<8x256xf32>
    %105 = arith.mulf %104, %100 : vector<8x256xf32>
    %106 = arith.mulf %105, %100 : vector<8x256xf32>
    %107 = arith.addf %100, %106 : vector<8x256xf32>
    %cst_45 = arith.constant 0.797884583 : f32
    %108 = vector.broadcast %cst_45 : f32 to vector<8x256xf32>
    %109 = arith.mulf %108, %107 : vector<8x256xf32>
    %110 = math.tanh %109 : vector<8x256xf32>
    %cst_46 = arith.constant 1.000000e+00 : f32
    %111 = vector.broadcast %cst_46 : f32 to vector<8x256xf32>
    %112 = arith.addf %111, %110 : vector<8x256xf32>
    %113 = arith.mulf %102, %112 : vector<8x256xf32>
    %114 = arith.truncf %113 : vector<8x256xf32> to vector<8x256xbf16>
    %c0_47 = arith.constant 0 : index
    %c0_48 = arith.constant 0 : index
    %c0_49 = arith.constant 0 : index
    %115 = vector.load %arg16[%c0_47, %c0_48, %c0_49] : memref<1x256x128xbf16, #tpu.memory_space<vmem>>, vector<1x256x128xbf16>
    %116 = vector.shape_cast %115 : vector<1x256x128xbf16> to vector<256x128xbf16>
    %cst_50 = arith.constant dense<0.000000e+00> : vector<8x128xf32>
    %117 = tpu.matmul %114, %116, %cst_50 {dimension_numbers = #tpu.dot_dimension_numbers<[1], [0], [0], [1], [0, 0, 1, 1], [], []>} : vector<8x256xbf16>, vector<256x128xbf16>, vector<8x128xf32> -> vector<8x128xf32>
    %c0_51 = arith.constant 0 : index
    %c0_52 = arith.constant 0 : index
    %c0_53 = arith.constant 0 : index
    %118 = vector.load %arg17[%c0_51, %c0_52, %c0_53] : memref<1x1x128xf32, #tpu.memory_space<vmem>>, vector<1x1x128xf32>
    %119 = vector.shape_cast %118 : vector<1x1x128xf32> to vector<1x128xf32>
    %120 = vector.broadcast %119 : vector<1x128xf32> to vector<8x128xf32>
    %121 = arith.addf %117, %120 : vector<8x128xf32>
    %122 = arith.addf %121, %92 : vector<8x128xf32>
    %c0_54 = arith.constant 0 : index
    %c0_55 = arith.constant 0 : index
    %c0_56 = arith.constant 0 : index
    %123 = vector.load %arg18[%c0_54, %c0_55, %c0_56] : memref<1x1x128xf32, #tpu.memory_space<vmem>>, vector<1x1x128xf32>
    %124 = vector.shape_cast %123 : vector<1x1x128xf32> to vector<1x128xf32>
    %c0_57 = arith.constant 0 : index
    %c0_58 = arith.constant 0 : index
    %c0_59 = arith.constant 0 : index
    %125 = vector.load %arg19[%c0_57, %c0_58, %c0_59] : memref<1x1x128xf32, #tpu.memory_space<vmem>>, vector<1x1x128xf32>
    %126 = vector.shape_cast %125 : vector<1x1x128xf32> to vector<1x128xf32>
    %cst_60 = arith.constant dense<0.000000e+00> : vector<8xf32>
    %127 = vector.multi_reduction <add>, %122, %cst_60 [1] : vector<8x128xf32> to vector<8xf32>
    %128 = vector.shape_cast %127 : vector<8xf32> to vector<8x1xf32>
    %cst_61 = arith.constant 1.280000e+02 : f32
    %129 = vector.broadcast %cst_61 : f32 to vector<8x1xf32>
    %130 = arith.divf %128, %129 : vector<8x1xf32>
    %131 = vector.broadcast %130 : vector<8x1xf32> to vector<8x128xf32>
    %132 = arith.subf %122, %131 : vector<8x128xf32>
    %133 = arith.mulf %132, %132 : vector<8x128xf32>
    %cst_62 = arith.constant dense<0.000000e+00> : vector<8xf32>
    %134 = vector.multi_reduction <add>, %133, %cst_62 [1] : vector<8x128xf32> to vector<8xf32>
    %135 = vector.shape_cast %134 : vector<8xf32> to vector<8x1xf32>
    %cst_63 = arith.constant 1.280000e+02 : f32
    %136 = vector.broadcast %cst_63 : f32 to vector<8x1xf32>
    %137 = arith.divf %135, %136 : vector<8x1xf32>
    %138 = vector.broadcast %130 : vector<8x1xf32> to vector<8x128xf32>
    %139 = arith.subf %122, %138 : vector<8x128xf32>
    %cst_64 = arith.constant 9.99999996E-13 : f32
    %140 = vector.broadcast %cst_64 : f32 to vector<8x1xf32>
    %141 = arith.addf %137, %140 : vector<8x1xf32>
    %142 = math.rsqrt %141 : vector<8x1xf32>
    %143 = vector.broadcast %142 : vector<8x1xf32> to vector<8x128xf32>
    %144 = arith.mulf %139, %143 : vector<8x128xf32>
    %145 = vector.broadcast %124 : vector<1x128xf32> to vector<8x128xf32>
    %146 = arith.mulf %144, %145 : vector<8x128xf32>
    %147 = vector.broadcast %126 : vector<1x128xf32> to vector<8x128xf32>
    %148 = arith.addf %146, %147 : vector<8x128xf32>
    %c0_65 = arith.constant 0 : index
    %c0_66 = arith.constant 0 : index
    %149 = vector.load %arg21[%c0_65, %c0_66] : memref<8x128xf32, #tpu.memory_space<vmem>>, vector<8x128xf32>
    tpu.vector_store %arg21[%c0_65, %c0_66], %148 {strides = array<i32>} : memref<8x128xf32, #tpu.memory_space<vmem>>, vector<8x128xf32>,
    %c1_i32 = arith.constant 1 : i32
    %150 = arith.cmpi eq, %arg0, %c1_i32 : i32
    %151 = arith.extui %150 : i1 to i32
    %c0_i32_67 = arith.constant 0 : i32
    %152 = arith.cmpi ne, %151, %c0_i32_67 : i32
    scf.if %152 {
      %c0_68 = arith.constant 0 : index
      %c0_69 = arith.constant 0 : index
      %153 = vector.load %arg20[%c0_68, %c0_69] : memref<8x128xf32, #tpu.memory_space<vmem>>, vector<8x128xf32>
      tpu.vector_store %arg20[%c0_68, %c0_69], %148 {strides = array<i32>} : memref<8x128xf32, #tpu.memory_space<vmem>>, vector<8x128xf32>,
    } else {
    }
    return
  }
  func.func @transform_0(%arg0: i32, %arg1: memref<8xi32, #tpu.memory_space<smem>>) -> (i32, i32) {
    %c0_i32 = arith.constant 0 : i32
    %c0_i32_0 = arith.constant 0 : i32
    %c0_i32_1 = arith.constant 0 : i32
    return %c0_i32, %c0_i32_0 : i32, i32
  }
  func.func @transform_2(%arg0: i32, %arg1: memref<8xi32, #tpu.memory_space<smem>>) -> (i32, i32) {
    %c0_i32 = arith.constant 0 : i32
    %c0_i32_0 = arith.constant 0 : i32
    %c0_i32_1 = arith.constant 0 : i32
    return %c0_i32, %c0_i32_0 : i32, i32
  }
  func.func @transform_3(%arg0: i32, %arg1: memref<8xi32, #tpu.memory_space<smem>>) -> (i32, i32) {
    %c0_i32 = arith.constant 0 : i32
    %c0_i32_0 = arith.constant 0 : i32
    %c0_i32_1 = arith.constant 0 : i32
    return %c0_i32, %c0_i32_0 : i32, i32
  }
  func.func @transform_4(%arg0: i32, %arg1: memref<8xi32, #tpu.memory_space<smem>>) -> (i32, i32) {
    %c0_i32 = arith.constant 0 : i32
    %c0_i32_0 = arith.constant 0 : i32
    %c0_i32_1 = arith.constant 0 : i32
    return %c0_i32, %c0_i32_0 : i32, i32
  }
  func.func @transform_5(%arg0: i32, %arg1: memref<8xi32, #tpu.memory_space<smem>>) -> (i32, i32) {
    %c0_i32 = arith.constant 0 : i32
    %c0_i32_0 = arith.constant 0 : i32
    %c0_i32_1 = arith.constant 0 : i32
    return %c0_i32, %c0_i32_0 : i32, i32
  }
  func.func @transform_6(%arg0: i32, %arg1: memref<8xi32, #tpu.memory_space<smem>>) -> (i32, i32, i32) {
    %c0_i32 = arith.constant 0 : i32
    %c0_i32_0 = arith.constant 0 : i32
    %c0_i32_1 = arith.constant 0 : i32
    return %arg0, %c0_i32, %c0_i32_0 : i32, i32, i32
  }
  func.func @transform_7(%arg0: i32, %arg1: memref<8xi32, #tpu.memory_space<smem>>) -> (i32, i32, i32) {
    %c0_i32 = arith.constant 0 : i32
    %c0_i32_0 = arith.constant 0 : i32
    %c0_i32_1 = arith.constant 0 : i32
    return %arg0, %c0_i32, %c0_i32_0 : i32, i32, i32
  }
  func.func @transform_8(%arg0: i32, %arg1: memref<8xi32, #tpu.memory_space<smem>>) -> (i32, i32, i32) {
    %c0_i32 = arith.constant 0 : i32
    %c0_i32_0 = arith.constant 0 : i32
    %c0_i32_1 = arith.constant 0 : i32
    return %arg0, %c0_i32, %c0_i32_0 : i32, i32, i32
  }
  func.func @transform_9(%arg0: i32, %arg1: memref<8xi32, #tpu.memory_space<smem>>) -> (i32, i32, i32) {
    %c0_i32 = arith.constant 0 : i32
    %c0_i32_0 = arith.constant 0 : i32
    %c0_i32_1 = arith.constant 0 : i32
    return %arg0, %c0_i32, %c0_i32_0 : i32, i32, i32
  }
  func.func @transform_10(%arg0: i32, %arg1: memref<8xi32, #tpu.memory_space<smem>>) -> (i32, i32, i32) {
    %c0_i32 = arith.constant 0 : i32
    %c0_i32_0 = arith.constant 0 : i32
    %c0_i32_1 = arith.constant 0 : i32
    return %arg0, %c0_i32, %c0_i32_0 : i32, i32, i32
  }
  func.func @transform_11(%arg0: i32, %arg1: memref<8xi32, #tpu.memory_space<smem>>) -> (i32, i32, i32) {
    %c0_i32 = arith.constant 0 : i32
    %c0_i32_0 = arith.constant 0 : i32
    %c0_i32_1 = arith.constant 0 : i32
    return %arg0, %c0_i32, %c0_i32_0 : i32, i32, i32
  }
  func.func @transform_12(%arg0: i32, %arg1: memref<8xi32, #tpu.memory_space<smem>>) -> (i32, i32, i32) {
    %c0_i32 = arith.constant 0 : i32
    %c0_i32_0 = arith.constant 0 : i32
    %c0_i32_1 = arith.constant 0 : i32
    return %arg0, %c0_i32, %c0_i32_0 : i32, i32, i32
  }
  func.func @transform_13(%arg0: i32, %arg1: memref<8xi32, #tpu.memory_space<smem>>) -> (i32, i32, i32) {
    %c0_i32 = arith.constant 0 : i32
    %c0_i32_0 = arith.constant 0 : i32
    %c0_i32_1 = arith.constant 0 : i32
    return %arg0, %c0_i32, %c0_i32_0 : i32, i32, i32
  }
  func.func @transform_14(%arg0: i32, %arg1: memref<8xi32, #tpu.memory_space<smem>>) -> (i32, i32, i32) {
    %c0_i32 = arith.constant 0 : i32
    %c0_i32_0 = arith.constant 0 : i32
    %c0_i32_1 = arith.constant 0 : i32
    return %arg0, %c0_i32, %c0_i32_0 : i32, i32, i32
  }
  func.func @transform_15(%arg0: i32, %arg1: memref<8xi32, #tpu.memory_space<smem>>) -> (i32, i32, i32) {
    %c0_i32 = arith.constant 0 : i32
    %c0_i32_0 = arith.constant 0 : i32
    %c0_i32_1 = arith.constant 0 : i32
    return %arg0, %c0_i32, %c0_i32_0 : i32, i32, i32
  }
  func.func @transform_16(%arg0: i32, %arg1: memref<8xi32, #tpu.memory_space<smem>>) -> (i32, i32, i32) {
    %c0_i32 = arith.constant 0 : i32
    %c0_i32_0 = arith.constant 0 : i32
    %c0_i32_1 = arith.constant 0 : i32
    return %arg0, %c0_i32, %c0_i32_0 : i32, i32, i32
  }
  func.func @transform_17(%arg0: i32, %arg1: memref<8xi32, #tpu.memory_space<smem>>) -> (i32, i32, i32) {
    %c0_i32 = arith.constant 0 : i32
    %c0_i32_0 = arith.constant 0 : i32
    %c0_i32_1 = arith.constant 0 : i32
    return %arg0, %c0_i32, %c0_i32_0 : i32, i32, i32
  }
  func.func @transform_18(%arg0: i32, %arg1: memref<8xi32, #tpu.memory_space<smem>>) -> (i32, i32) {
    %c0_i32 = arith.constant 0 : i32
    %c0_i32_0 = arith.constant 0 : i32
    %c0_i32_1 = arith.constant 0 : i32
    return %c0_i32, %c0_i32_0 : i32, i32
  }
}

</mosaic_0001>

<llo_original>
// kernel: tpu_custom_call.1
$region0: #{tpu_custom_call.1}
  #allocation0 [shape = 'u32[]', space=smem, size = 0x4, offset = 0x4, fixed_abs, tag = 'smem constant byte address 0x4 - core index']
  #allocation1 [shape = 'u32[144,128]{1,0:T(1,128)}', space=vmem, size = 0x12000, scoped, tag = 'internal scratch']
  #allocation2 [shape = 'f32[8,128]{1,0:T(8,128)}', space=vmem, size = 0x1000, scoped, tag = 'scratch operand']
  #allocation3 [shape = 'f32[8,128]{1,0:T(8,128)}', space=vmem, size = 0x1000, scoped, tag = 'scratch operand']
  #allocation4 [shape = 's32[8]{0}', space=sflag, size = 0x20, scoped, tag = 'scratch operand']
  #allocation5 [shape = 's32[1]{0}', space=sflag, size = 0x4, scoped, tag = 'scoped memory for tpu_custom_call.1']
  #allocation6 [shape = 'u8[512]{0}', space=smem, size = 0x200, scoped, tag = 'prefetched SMEM operand 0']
  #allocation23 [shape = 's32[]', space=sflag, size = 0x4, offset = 0, fixed_abs, tag = 'sflag constant byte address 0x0 - dummy sync flag']
  #allocation24 [shape = 's32[]', space=sflag, size = 0x4, offset = 0, fixed_abs, tag = 'sflag constant byte address 0x0 - dummy sync flag']
  #allocation25 [shape = 'u32[]', space=smem, size = 0x4, offset = 0x44, fixed_abs, tag = 'smem constant byte address 0x44 - assertion arg 0']
  #allocation26 [shape = 'u32[]', space=smem, size = 0x4, offset = 0x48, fixed_abs, tag = 'smem constant byte address 0x48 - assertion arg 1']
  #allocation27 [shape = 's32[]', space=sflag, size = 0x4, offset = 0, fixed_abs, tag = 'sflag constant byte address 0x0 - dummy sync flag']
  #allocation28 [shape = 's32[]', space=sflag, size = 0x4, offset = 0, fixed_abs, tag = 'sflag constant byte address 0x0 - dummy sync flag']
  #allocation29 [shape = 's32[]', space=sflag, size = 0x4, offset = 0, fixed_abs, tag = 'sflag constant byte address 0x0 - dummy sync flag']
  #allocation30 [shape = 's32[]', space=sflag, size = 0x4, offset = 0, fixed_abs, tag = 'sflag constant byte address 0x0 - dummy sync flag']
  #allocation31 [shape = 's32[]', space=sflag, size = 0x4, offset = 0, fixed_abs, tag = 'sflag constant byte address 0x0 - dummy sync flag']
  #allocation32 [shape = 's32[]', space=sflag, size = 0x4, offset = 0, fixed_abs, tag = 'sflag constant byte address 0x0 - dummy sync flag']
  #allocation33 [shape = 's32[]', space=sflag, size = 0x4, offset = 0, fixed_abs, tag = 'sflag constant byte address 0x0 - dummy sync flag']
  #allocation34 [shape = 's32[]', space=sflag, size = 0x4, offset = 0, fixed_abs, tag = 'sflag constant byte address 0x0 - dummy sync flag']
  #allocation35 [shape = 's32[]', space=sflag, size = 0x4, offset = 0, fixed_abs, tag = 'sflag constant byte address 0x0 - dummy sync flag']
  #allocation36 [shape = 's32[]', space=sflag, size = 0x4, offset = 0, fixed_abs, tag = 'sflag constant byte address 0x0 - dummy sync flag']
  #allocation37 [shape = 's32[]', space=sflag, size = 0x4, offset = 0, fixed_abs, tag = 'sflag constant byte address 0x0 - dummy sync flag']
  #allocation38 [shape = 's32[]', space=sflag, size = 0x4, offset = 0, fixed_abs, tag = 'sflag constant byte address 0x0 - dummy sync flag']
  #allocation39 [shape = 's32[]', space=sflag, size = 0x4, offset = 0, fixed_abs, tag = 'sflag constant byte address 0x0 - dummy sync flag']
  #allocation40 [shape = 's32[]', space=sflag, size = 0x4, offset = 0, fixed_abs, tag = 'sflag constant byte address 0x0 - dummy sync flag']
  %s0 = inlined_call_operand.hbm [shape: s32[8], index: 0, kind: input, shape index: {}]
  %s1 = inlined_call_operand.hbm [shape: f32[1,8], index: 1, kind: input, shape index: {}]
  %s2 = inlined_call_operand.hbm [shape: f32[128,128], index: 2, kind: input, shape index: {}]
  %s3 = inlined_call_operand.hbm [shape: f32[8,128], index: 3, kind: input, shape index: {}]
  %s4 = inlined_call_operand.hbm [shape: f32[1,128], index: 4, kind: input, shape index: {}]
  %s5 = inlined_call_operand.hbm [shape: f32[1,128], index: 5, kind: input, shape index: {}]
  %s6 = inlined_call_operand.hbm [shape: f32[1,128], index: 6, kind: input, shape index: {}]
  %s7 = inlined_call_operand.hbm [shape: bf16[2,128,384], index: 7, kind: input, shape index: {}]
  %s8 = inlined_call_operand.vmem [shape: f32[2,1,384], index: 8, kind: input, shape index: {}]
  %s9 = inlined_call_operand.hbm [shape: bf16[2,128,128], index: 9, kind: input, shape index: {}]
  %s10 = inlined_call_operand.vmem [shape: f32[2,1,128], index: 10, kind: input, shape index: {}]
  %s11 = inlined_call_operand.vmem [shape: f32[2,1,128], index: 11, kind: input, shape index: {}]
  %s12 = inlined_call_operand.vmem [shape: f32[2,1,128], index: 12, kind: input, shape index: {}]
  %s13 = inlined_call_operand.hbm [shape: bf16[2,128,256], index: 13, kind: input, shape index: {}]
  %s14 = inlined_call_operand.vmem [shape: f32[2,1,256], index: 14, kind: input, shape index: {}]
  %s15 = inlined_call_operand.hbm [shape: bf16[2,256,128], index: 15, kind: input, shape index: {}]
  %s16 = inlined_call_operand.vmem [shape: f32[2,1,128], index: 16, kind: input, shape index: {}]
  %s17 = inlined_call_operand.vmem [shape: f32[2,1,128], index: 17, kind: input, shape index: {}]
  %s18 = inlined_call_operand.vmem [shape: f32[2,1,128], index: 18, kind: input, shape index: {}]
  %s19 = inlined_call_operand.hbm [shape: f32[8,128], index: 19, kind: output, shape index: {}]
  %s20 = sld [smem:[#allocation0]]
  $region177: #{tpu_custom_call.1} parent=0
    _
  %s22 = ssub.s32 1, %s20
  %s23 = scalar_select 0, %s22, %s20
  %25 = dma.hbm_to_smem %s0, 16, [#allocation6], [#allocation5]
  %26 = dma.done [#allocation5], 16
  %27 = sfence
  $region1: #{tpu_custom_call.1} parent=0
    #allocation7 [shape = 'u8[512]{0}', space=vmem, size = 0x400, scoped, tag = 'input window, operand 1, single buffered']
    #allocation8 [shape = 's32[2]{0}', space=sflag, size = 0x8, scoped, tag = 'scoped memory for tpu_custom_call.1']
    #allocation9 [shape = 's32[2]{0}', space=sflag, size = 0x8, scoped, tag = 'scoped memory for tpu_custom_call.1']
    #allocation10 [shape = 'u8[4096]{0}', space=vmem, size = 0x1000, scoped, tag = 'input window, operand 3, single buffered']
    #allocation11 [shape = 's32[1]{0}', space=sflag, size = 0x4, scoped, tag = 'scoped memory for tpu_custom_call.1']
    #allocation12 [shape = 'u8[512]{0}', space=vmem, size = 0x400, scoped, tag = 'input window, operand 4, single buffered']
    #allocation13 [shape = 'u8[512]{0}', space=vmem, size = 0x400, scoped, tag = 'input window, operand 5, single buffered']
    #allocation14 [shape = 's32[1]{0}', space=sflag, size = 0x4, scoped, tag = 'scoped memory for tpu_custom_call.1']
    #allocation15 [shape = 'u8[512]{0}', space=vmem, size = 0x400, scoped, tag = 'input window, operand 6, single buffered']
    #allocation16 [shape = 'u8[196608]{0}', space=vmem, size = 0x30000, scoped, tag = 'input window, operand 7']
    #allocation17 [shape = 's32[2]{0}', space=sflag, size = 0x8, scoped, tag = 'scoped memory for tpu_custom_call.1']
    #allocation18 [shape = 'u8[65536]{0}', space=vmem, size = 0x10000, scoped, tag = 'input window, operand 9']
    #allocation19 [shape = 'u8[131072]{0}', space=vmem, size = 0x20000, scoped, tag = 'input window, operand 13']
    #allocation20 [shape = 's32[2]{0}', space=sflag, size = 0x8, scoped, tag = 'scoped memory for tpu_custom_call.1']
    #allocation21 [shape = 'u8[131072]{0}', space=vmem, size = 0x20000, scoped, tag = 'input window, operand 15']
    #allocation22 [shape = 'u8[4096]{0}', space=vmem, size = 0x1000, scoped, tag = 'output window, operand 0, single buffered']
    %28 = vsyncpa [#allocation8], 0
    %29 = vsyncpa [#allocation11], 0
    %30 = vsyncpa [#allocation14], 0
    %31 = vsyncpa [#allocation17], 0
    %s32 = scalar_lea.sflag [#allocation17], 1
    %33 = vsyncpa %s32, 0
    %34 = vsyncpa [#allocation20], 0
    %s35 = scalar_lea.sflag [#allocation20], 1
    %36 = vsyncpa %s35, 0
    %37 = vsyncpa [#allocation9], 0
    loop: start=0, step=1, limit=4
    $region2: #{tpu_custom_call.1} parent=1 // loop_pre_header
      _
    $region3: #{tpu_custom_call.1} parent=1 // loop_header
      %s39 = sphi 0, %s43
      %p40 = scmp.ge.s32.totalorder %s39, 4
      %s47 = sphi 0, %s47
      %s49 = sphi 0, %s47
      %s50 = sphi 0, %s49
      %s64 = sphi 0, %s50
      %s68 = sphi 0, %s68
      %s70 = sphi 0, %s68
      %s71 = sphi 0, %s70
      %s85 = sphi 0, %s71
      %s89 = sphi 0, %s89
      %s91 = sphi 0, %s89
      %s92 = sphi 0, %s91
      %s106 = sphi 0, %s92
      %s110 = sphi 0, %s110
      %s112 = sphi 0, %s110
      %s113 = sphi 0, %s112
      %s127 = sphi 0, %s113
      %s131 = sphi 0, %s131
      %s133 = sphi 0, %s131
      %s134 = sphi 0, %s133
      %s148 = sphi 0, %s134
      %s154 = sphi 0, %s156
      %s157 = sphi 0, %s154
      %s158 = sphi 0, %s157
      %s174 = sphi 0, %s158
      %s180 = sphi 0, %s182
      %s183 = sphi 0, %s180
      %s184 = sphi 0, %s183
      %s200 = sphi 0, %s184
      %s206 = sphi 0, %s208
      %s209 = sphi 0, %s206
      %s210 = sphi 0, %s209
      %s226 = sphi 0, %s210
      %s232 = sphi 0, %s234
      %s235 = sphi 0, %s232
      %s236 = sphi 0, %s235
      %s252 = sphi 0, %s236
      %s258 = sphi 0, %s260
      %s261 = sphi 0, %s258
      %s262 = sphi 0, %s261
      %s278 = sphi 0, %s262
      %s284 = sphi 0, %s286
      %s287 = sphi 0, %s284
      %s288 = sphi 0, %s287
      %s304 = sphi 0, %s288
      %s310 = sphi 0, %s312
      %s313 = sphi 0, %s310
      %s314 = sphi 0, %s313
      %s330 = sphi 0, %s314
      %s336 = sphi 0, %s338
      %s339 = sphi 0, %s336
      %s340 = sphi 0, %s339
      %s356 = sphi 0, %s340
      %s362 = sphi 0, %s364
      %s365 = sphi 0, %s362
      %s366 = sphi 0, %s365
      %s382 = sphi 0, %s366
      %s388 = sphi 0, %s390
      %s391 = sphi 0, %s388
      %s392 = sphi 0, %s391
      %s408 = sphi 0, %s392
      %s414 = sphi 0, %s416
      %s417 = sphi 0, %s414
      %s418 = sphi 0, %s417
      %s434 = sphi 0, %s418
      %s440 = sphi 0, %s442
      %s443 = sphi 0, %s440
      %s444 = sphi 0, %s443
      %s460 = sphi 0, %s444
      %s464 = sphi 0, %s464
      %s466 = sphi 0, %s464
      %s467 = sphi 0, %s466
      %s481 = sphi 0, %s467
    $region4: #{tpu_custom_call.1} parent=1 // loop_header_branch
      %42 = sbr.rel (%p40) target = $region8
    $region5: #{tpu_custom_call.1} parent=1 // loop_body
      %s44 = ssub.s32 %s39, 1
      %s45 = ssub.s32 %s39, 2
      %s46 = sadd.s32 %s39, 1
      %s48 = sadd.s32 %s47, 1
      %p51 = scmp.eq.s32.totalorder %s39, 1
      %p52 = scmp.ne.s32.totalorder %s47, %s49
      %p53 = scmp.eq.s32.totalorder %s39, 0
      %p54 = por %p52, %p53
      %p55 = scmp.ne.s32.totalorder %s47, %s49
      %p56 = scmp.eq.s32.totalorder %s44, 1
      %p57 = por %p55, %p56
      %p58 = scmp.ne.s32.totalorder %s49, %s50
      %p59 = scmp.eq.s32.totalorder %s44, 0
      %p60 = por %p58, %p59
      %p61 = scmp.ne.s32.totalorder %s49, %s50
      %p62 = scmp.eq.s32.totalorder %s45, 1
      %p63 = por %p61, %p62
      %p65 = scmp.ne.s32.totalorder %s50, %s64
      %p66 = scmp.eq.s32.totalorder %s45, 0
      %p67 = por %p65, %p66
      %s69 = sadd.s32 %s68, 1
      %p72 = scmp.eq.s32.totalorder %s39, 1
      %p73 = scmp.ne.s32.totalorder %s68, %s70
      %p74 = scmp.eq.s32.totalorder %s39, 0
      %p75 = por %p73, %p74
      %p76 = scmp.ne.s32.totalorder %s68, %s70
      %p77 = scmp.eq.s32.totalorder %s44, 1
      %p78 = por %p76, %p77
      %p79 = scmp.ne.s32.totalorder %s70, %s71
      %p80 = scmp.eq.s32.totalorder %s44, 0
      %p81 = por %p79, %p80
      %p82 = scmp.ne.s32.totalorder %s70, %s71
      %p83 = scmp.eq.s32.totalorder %s45, 1
      %p84 = por %p82, %p83
      %p86 = scmp.ne.s32.totalorder %s71, %s85
      %p87 = scmp.eq.s32.totalorder %s45, 0
      %p88 = por %p86, %p87
      %s90 = sadd.s32 %s89, 1
      %p93 = scmp.eq.s32.totalorder %s39, 1
      %p94 = scmp.ne.s32.totalorder %s89, %s91
      %p95 = scmp.eq.s32.totalorder %s39, 0
      %p96 = por %p94, %p95
      %p97 = scmp.ne.s32.totalorder %s89, %s91
      %p98 = scmp.eq.s32.totalorder %s44, 1
      %p99 = por %p97, %p98
      %p100 = scmp.ne.s32.totalorder %s91, %s92
      %p101 = scmp.eq.s32.totalorder %s44, 0
      %p102 = por %p100, %p101
      %p103 = scmp.ne.s32.totalorder %s91, %s92
      %p104 = scmp.eq.s32.totalorder %s45, 1
      %p105 = por %p103, %p104
      %p107 = scmp.ne.s32.totalorder %s92, %s106
      %p108 = scmp.eq.s32.totalorder %s45, 0
      %p109 = por %p107, %p108
      %s111 = sadd.s32 %s110, 1
      %p114 = scmp.eq.s32.totalorder %s39, 1
      %p115 = scmp.ne.s32.totalorder %s110, %s112
      %p116 = scmp.eq.s32.totalorder %s39, 0
      %p117 = por %p115, %p116
      %p118 = scmp.ne.s32.totalorder %s110, %s112
      %p119 = scmp.eq.s32.totalorder %s44, 1
      %p120 = por %p118, %p119
      %p121 = scmp.ne.s32.totalorder %s112, %s113
      %p122 = scmp.eq.s32.totalorder %s44, 0
      %p123 = por %p121, %p122
      %p124 = scmp.ne.s32.totalorder %s112, %s113
      %p125 = scmp.eq.s32.totalorder %s45, 1
      %p126 = por %p124, %p125
      %p128 = scmp.ne.s32.totalorder %s113, %s127
      %p129 = scmp.eq.s32.totalorder %s45, 0
      %p130 = por %p128, %p129
      %s132 = sadd.s32 %s131, 1
      %p135 = scmp.eq.s32.totalorder %s39, 1
      %p136 = scmp.ne.s32.totalorder %s131, %s133
      %p137 = scmp.eq.s32.totalorder %s39, 0
      %p138 = por %p136, %p137
      %p139 = scmp.ne.s32.totalorder %s131, %s133
      %p140 = scmp.eq.s32.totalorder %s44, 1
      %p141 = por %p139, %p140
      %p142 = scmp.ne.s32.totalorder %s133, %s134
      %p143 = scmp.eq.s32.totalorder %s44, 0
      %p144 = por %p142, %p143
      %p145 = scmp.ne.s32.totalorder %s133, %s134
      %p146 = scmp.eq.s32.totalorder %s45, 1
      %p147 = por %p145, %p146
      %p149 = scmp.ne.s32.totalorder %s134, %s148
      %p150 = scmp.eq.s32.totalorder %s45, 0
      %p151 = por %p149, %p150
      %s152 = ssub.s32 %s39, %s46
      %p153 = scmp.eq.s32.totalorder %s152, 0
      %s155 = sadd.s32 %s154, 1
      %s156 = scalar_select %p153, %s154, %s155
      %p159 = pneg %p153
      %p160 = scmp.eq.s32.totalorder %s39, 1
      %p161 = por %p159, %p160
      %p162 = scmp.ne.s32.totalorder %s154, %s157
      %p163 = scmp.eq.s32.totalorder %s39, 0
      %p164 = por %p162, %p163
      %p165 = scmp.ne.s32.totalorder %s154, %s157
      %p166 = scmp.eq.s32.totalorder %s44, 1
      %p167 = por %p165, %p166
      %p168 = scmp.ne.s32.totalorder %s157, %s158
      %p169 = scmp.eq.s32.totalorder %s44, 0
      %p170 = por %p168, %p169
      %p171 = scmp.ne.s32.totalorder %s157, %s158
      %p172 = scmp.eq.s32.totalorder %s45, 1
      %p173 = por %p171, %p172
      %p175 = scmp.ne.s32.totalorder %s158, %s174
      %p176 = scmp.eq.s32.totalorder %s45, 0
      %p177 = por %p175, %p176
      %s178 = ssub.s32 %s39, %s46
      %p179 = scmp.eq.s32.totalorder %s178, 0
      %s181 = sadd.s32 %s180, 1
      %s182 = scalar_select %p179, %s180, %s181
      %p185 = pneg %p179
      %p186 = scmp.eq.s32.totalorder %s39, 1
      %p187 = por %p185, %p186
      %p188 = scmp.ne.s32.totalorder %s180, %s183
      %p189 = scmp.eq.s32.totalorder %s39, 0
      %p190 = por %p188, %p189
      %p191 = scmp.ne.s32.totalorder %s180, %s183
      %p192 = scmp.eq.s32.totalorder %s44, 1
      %p193 = por %p191, %p192
      %p194 = scmp.ne.s32.totalorder %s183, %s184
      %p195 = scmp.eq.s32.totalorder %s44, 0
      %p196 = por %p194, %p195
      %p197 = scmp.ne.s32.totalorder %s183, %s184
      %p198 = scmp.eq.s32.totalorder %s45, 1
      %p199 = por %p197, %p198
      %p201 = scmp.ne.s32.totalorder %s184, %s200
      %p202 = scmp.eq.s32.totalorder %s45, 0
      %p203 = por %p201, %p202
      %s204 = ssub.s32 %s39, %s46
      %p205 = scmp.eq.s32.totalorder %s204, 0
      %s207 = sadd.s32 %s206, 1
      %s208 = scalar_select %p205, %s206, %s207
      %p211 = pneg %p205
      %p212 = scmp.eq.s32.totalorder %s39, 1
      %p213 = por %p211, %p212
      %p214 = scmp.ne.s32.totalorder %s206, %s209
      %p215 = scmp.eq.s32.totalorder %s39, 0
      %p216 = por %p214, %p215
      %p217 = scmp.ne.s32.totalorder %s206, %s209
      %p218 = scmp.eq.s32.totalorder %s44, 1
      %p219 = por %p217, %p218
      %p220 = scmp.ne.s32.totalorder %s209, %s210
      %p221 = scmp.eq.s32.totalorder %s44, 0
      %p222 = por %p220, %p221
      %p223 = scmp.ne.s32.totalorder %s209, %s210
      %p224 = scmp.eq.s32.totalorder %s45, 1
      %p225 = por %p223, %p224
      %p227 = scmp.ne.s32.totalorder %s210, %s226
      %p228 = scmp.eq.s32.totalorder %s45, 0
      %p229 = por %p227, %p228
      %s230 = ssub.s32 %s39, %s46
      %p231 = scmp.eq.s32.totalorder %s230, 0
      %s233 = sadd.s32 %s232, 1
      %s234 = scalar_select %p231, %s232, %s233
      %p237 = pneg %p231
      %p238 = scmp.eq.s32.totalorder %s39, 1
      %p239 = por %p237, %p238
      %p240 = scmp.ne.s32.totalorder %s232, %s235
      %p241 = scmp.eq.s32.totalorder %s39, 0
      %p242 = por %p240, %p241
      %p243 = scmp.ne.s32.totalorder %s232, %s235
      %p244 = scmp.eq.s32.totalorder %s44, 1
      %p245 = por %p243, %p244
      %p246 = scmp.ne.s32.totalorder %s235, %s236
      %p247 = scmp.eq.s32.totalorder %s44, 0
      %p248 = por %p246, %p247
      %p249 = scmp.ne.s32.totalorder %s235, %s236
      %p250 = scmp.eq.s32.totalorder %s45, 1
      %p251 = por %p249, %p250
      %p253 = scmp.ne.s32.totalorder %s236, %s252
      %p254 = scmp.eq.s32.totalorder %s45, 0
      %p255 = por %p253, %p254
      %s256 = ssub.s32 %s39, %s46
      %p257 = scmp.eq.s32.totalorder %s256, 0
      %s259 = sadd.s32 %s258, 1
      %s260 = scalar_select %p257, %s258, %s259
      %p263 = pneg %p257
      %p264 = scmp.eq.s32.totalorder %s39, 1
      %p265 = por %p263, %p264
      %p266 = scmp.ne.s32.totalorder %s258, %s261
      %p267 = scmp.eq.s32.totalorder %s39, 0
      %p268 = por %p266, %p267
      %p269 = scmp.ne.s32.totalorder %s258, %s261
      %p270 = scmp.eq.s32.totalorder %s44, 1
      %p271 = por %p269, %p270
      %p272 = scmp.ne.s32.totalorder %s261, %s262
      %p273 = scmp.eq.s32.totalorder %s44, 0
      %p274 = por %p272, %p273
      %p275 = scmp.ne.s32.totalorder %s261, %s262
      %p276 = scmp.eq.s32.totalorder %s45, 1
      %p277 = por %p275, %p276
      %p279 = scmp.ne.s32.totalorder %s262, %s278
      %p280 = scmp.eq.s32.totalorder %s45, 0
      %p281 = por %p279, %p280
      %s282 = ssub.s32 %s39, %s46
      %p283 = scmp.eq.s32.totalorder %s282, 0
      %s285 = sadd.s32 %s284, 1
      %s286 = scalar_select %p283, %s284, %s285
      %p289 = pneg %p283
      %p290 = scmp.eq.s32.totalorder %s39, 1
      %p291 = por %p289, %p290
      %p292 = scmp.ne.s32.totalorder %s284, %s287
      %p293 = scmp.eq.s32.totalorder %s39, 0
      %p294 = por %p292, %p293
      %p295 = scmp.ne.s32.totalorder %s284, %s287
      %p296 = scmp.eq.s32.totalorder %s44, 1
      %p297 = por %p295, %p296
      %p298 = scmp.ne.s32.totalorder %s287, %s288
      %p299 = scmp.eq.s32.totalorder %s44, 0
      %p300 = por %p298, %p299
      %p301 = scmp.ne.s32.totalorder %s287, %s288
      %p302 = scmp.eq.s32.totalorder %s45, 1
      %p303 = por %p301, %p302
      %p305 = scmp.ne.s32.totalorder %s288, %s304
      %p306 = scmp.eq.s32.totalorder %s45, 0
      %p307 = por %p305, %p306
      %s308 = ssub.s32 %s39, %s46
      %p309 = scmp.eq.s32.totalorder %s308, 0
      %s311 = sadd.s32 %s310, 1
      %s312 = scalar_select %p309, %s310, %s311
      %p315 = pneg %p309
      %p316 = scmp.eq.s32.totalorder %s39, 1
      %p317 = por %p315, %p316
      %p318 = scmp.ne.s32.totalorder %s310, %s313
      %p319 = scmp.eq.s32.totalorder %s39, 0
      %p320 = por %p318, %p319
      %p321 = scmp.ne.s32.totalorder %s310, %s313
      %p322 = scmp.eq.s32.totalorder %s44, 1
      %p323 = por %p321, %p322
      %p324 = scmp.ne.s32.totalorder %s313, %s314
      %p325 = scmp.eq.s32.totalorder %s44, 0
      %p326 = por %p324, %p325
      %p327 = scmp.ne.s32.totalorder %s313, %s314
      %p328 = scmp.eq.s32.totalorder %s45, 1
      %p329 = por %p327, %p328
      %p331 = scmp.ne.s32.totalorder %s314, %s330
      %p332 = scmp.eq.s32.totalorder %s45, 0
      %p333 = por %p331, %p332
      %s334 = ssub.s32 %s39, %s46
      %p335 = scmp.eq.s32.totalorder %s334, 0
      %s337 = sadd.s32 %s336, 1
      %s338 = scalar_select %p335, %s336, %s337
      %p341 = pneg %p335
      %p342 = scmp.eq.s32.totalorder %s39, 1
      %p343 = por %p341, %p342
      %p344 = scmp.ne.s32.totalorder %s336, %s339
      %p345 = scmp.eq.s32.totalorder %s39, 0
      %p346 = por %p344, %p345
      %p347 = scmp.ne.s32.totalorder %s336, %s339
      %p348 = scmp.eq.s32.totalorder %s44, 1
      %p349 = por %p347, %p348
      %p350 = scmp.ne.s32.totalorder %s339, %s340
      %p351 = scmp.eq.s32.totalorder %s44, 0
      %p352 = por %p350, %p351
      %p353 = scmp.ne.s32.totalorder %s339, %s340
      %p354 = scmp.eq.s32.totalorder %s45, 1
      %p355 = por %p353, %p354
      %p357 = scmp.ne.s32.totalorder %s340, %s356
      %p358 = scmp.eq.s32.totalorder %s45, 0
      %p359 = por %p357, %p358
      %s360 = ssub.s32 %s39, %s46
      %p361 = scmp.eq.s32.totalorder %s360, 0
      %s363 = sadd.s32 %s362, 1
      %s364 = scalar_select %p361, %s362, %s363
      %p367 = pneg %p361
      %p368 = scmp.eq.s32.totalorder %s39, 1
      %p369 = por %p367, %p368
      %p370 = scmp.ne.s32.totalorder %s362, %s365
      %p371 = scmp.eq.s32.totalorder %s39, 0
      %p372 = por %p370, %p371
      %p373 = scmp.ne.s32.totalorder %s362, %s365
      %p374 = scmp.eq.s32.totalorder %s44, 1
      %p375 = por %p373, %p374
      %p376 = scmp.ne.s32.totalorder %s365, %s366
      %p377 = scmp.eq.s32.totalorder %s44, 0
      %p378 = por %p376, %p377
      %p379 = scmp.ne.s32.totalorder %s365, %s366
      %p380 = scmp.eq.s32.totalorder %s45, 1
      %p381 = por %p379, %p380
      %p383 = scmp.ne.s32.totalorder %s366, %s382
      %p384 = scmp.eq.s32.totalorder %s45, 0
      %p385 = por %p383, %p384
      %s386 = ssub.s32 %s39, %s46
      %p387 = scmp.eq.s32.totalorder %s386, 0
      %s389 = sadd.s32 %s388, 1
      %s390 = scalar_select %p387, %s388, %s389
      %p393 = pneg %p387
      %p394 = scmp.eq.s32.totalorder %s39, 1
      %p395 = por %p393, %p394
      %p396 = scmp.ne.s32.totalorder %s388, %s391
      %p397 = scmp.eq.s32.totalorder %s39, 0
      %p398 = por %p396, %p397
      %p399 = scmp.ne.s32.totalorder %s388, %s391
      %p400 = scmp.eq.s32.totalorder %s44, 1
      %p401 = por %p399, %p400
      %p402 = scmp.ne.s32.totalorder %s391, %s392
      %p403 = scmp.eq.s32.totalorder %s44, 0
      %p404 = por %p402, %p403
      %p405 = scmp.ne.s32.totalorder %s391, %s392
      %p406 = scmp.eq.s32.totalorder %s45, 1
      %p407 = por %p405, %p406
      %p409 = scmp.ne.s32.totalorder %s392, %s408
      %p410 = scmp.eq.s32.totalorder %s45, 0
      %p411 = por %p409, %p410
      %s412 = ssub.s32 %s39, %s46
      %p413 = scmp.eq.s32.totalorder %s412, 0
      %s415 = sadd.s32 %s414, 1
      %s416 = scalar_select %p413, %s414, %s415
      %p419 = pneg %p413
      %p420 = scmp.eq.s32.totalorder %s39, 1
      %p421 = por %p419, %p420
      %p422 = scmp.ne.s32.totalorder %s414, %s417
      %p423 = scmp.eq.s32.totalorder %s39, 0
      %p424 = por %p422, %p423
      %p425 = scmp.ne.s32.totalorder %s414, %s417
      %p426 = scmp.eq.s32.totalorder %s44, 1
      %p427 = por %p425, %p426
      %p428 = scmp.ne.s32.totalorder %s417, %s418
      %p429 = scmp.eq.s32.totalorder %s44, 0
      %p430 = por %p428, %p429
      %p431 = scmp.ne.s32.totalorder %s417, %s418
      %p432 = scmp.eq.s32.totalorder %s45, 1
      %p433 = por %p431, %p432
      %p435 = scmp.ne.s32.totalorder %s418, %s434
      %p436 = scmp.eq.s32.totalorder %s45, 0
      %p437 = por %p435, %p436
      %s438 = ssub.s32 %s39, %s46
      %p439 = scmp.eq.s32.totalorder %s438, 0
      %s441 = sadd.s32 %s440, 1
      %s442 = scalar_select %p439, %s440, %s441
      %p445 = pneg %p439
      %p446 = scmp.eq.s32.totalorder %s39, 1
      %p447 = por %p445, %p446
      %p448 = scmp.ne.s32.totalorder %s440, %s443
      %p449 = scmp.eq.s32.totalorder %s39, 0
      %p450 = por %p448, %p449
      %p451 = scmp.ne.s32.totalorder %s440, %s443
      %p452 = scmp.eq.s32.totalorder %s44, 1
      %p453 = por %p451, %p452
      %p454 = scmp.ne.s32.totalorder %s443, %s444
      %p455 = scmp.eq.s32.totalorder %s44, 0
      %p456 = por %p454, %p455
      %p457 = scmp.ne.s32.totalorder %s443, %s444
      %p458 = scmp.eq.s32.totalorder %s45, 1
      %p459 = por %p457, %p458
      %p461 = scmp.ne.s32.totalorder %s444, %s460
      %p462 = scmp.eq.s32.totalorder %s45, 0
      %p463 = por %p461, %p462
      %s465 = sadd.s32 %s464, 1
      %p468 = scmp.eq.s32.totalorder %s39, 1
      %p469 = scmp.ne.s32.totalorder %s464, %s466
      %p470 = scmp.eq.s32.totalorder %s39, 0
      %p471 = por %p469, %p470
      %p472 = scmp.ne.s32.totalorder %s464, %s466
      %p473 = scmp.eq.s32.totalorder %s44, 1
      %p474 = por %p472, %p473
      %p475 = scmp.ne.s32.totalorder %s466, %s467
      %p476 = scmp.eq.s32.totalorder %s44, 0
      %p477 = por %p475, %p476
      %p478 = scmp.ne.s32.totalorder %s466, %s467
      %p479 = scmp.eq.s32.totalorder %s45, 1
      %p480 = por %p478, %p479
      %p482 = scmp.ne.s32.totalorder %s467, %s481
      %p483 = scmp.eq.s32.totalorder %s45, 0
      %p484 = por %p482, %p483
      %p485 = scmp.le.s32.totalorder 1, %s39
      %p486 = scmp.lt.s32.totalorder %s39, 3
      %p487 = pnand %p485, %p486
      %p488 = pneg %p487
      // Predicated region
      $region9: #{tpu_custom_call.1} parent=5 // pred_check
        _
      $region10: #{tpu_custom_call.1} parent=5 // pred_check_branch
        %490 = sbr.rel (%p487) target = $region12
      $region11: #{tpu_custom_call.1} parent=5 // pred_region
        %s491 = ssub.s32 %s39, 1
        // Predicated region
        $region13: #{tpu_custom_call.1} parent=11 // pred_check
          %p492 = pneg %p60
        $region14: #{tpu_custom_call.1} parent=11 // pred_check_branch
          %494 = sbr.rel (%p492) target = $region16
        $region15: #{tpu_custom_call.1} parent=11 // pred_region
          %s496 = ssub.s32 16, 16
          %497 = vsyncadd [#allocation8], %s496
          %s499 = sshll.u32 [#allocation7], 4
          %s500 = int_to_ptr.vmem [resolvable:$true] %s499
          %502 = dma.hbm_to_vmem [thread:$0]  %s1, 16, %s500, [#allocation8]
        $region16: #{tpu_custom_call.1} parent=11 // pred_fallthru
          _
        // Predicated region
        $region17: #{tpu_custom_call.1} parent=11 // pred_check
          %p503 = pneg %p81
        $region18: #{tpu_custom_call.1} parent=11 // pred_check_branch
          %505 = sbr.rel (%p503) target = $region20
        $region19: #{tpu_custom_call.1} parent=11 // pred_region
          %s507 = ssub.s32 128, 128
          %508 = vsyncadd [#allocation11], %s507
          %s510 = sshll.u32 [#allocation10], 4
          %s511 = int_to_ptr.vmem [resolvable:$true] %s510
          %513 = dma.hbm_to_vmem [thread:$0]  %s3, 128, %s511, [#allocation11]
        $region20: #{tpu_custom_call.1} parent=11 // pred_fallthru
          _
        // Predicated region
        $region21: #{tpu_custom_call.1} parent=11 // pred_check
          %p514 = pneg %p102
        $region22: #{tpu_custom_call.1} parent=11 // pred_check_branch
          %516 = sbr.rel (%p514) target = $region24
        $region23: #{tpu_custom_call.1} parent=11 // pred_region
          %s518 = ssub.s32 16, 16
          %519 = vsyncadd [#allocation11], %s518
          %s521 = sshll.u32 [#allocation12], 4
          %s522 = int_to_ptr.vmem [resolvable:$true] %s521
          %524 = dma.hbm_to_vmem [thread:$0]  %s4, 16, %s522, [#allocation11]
        $region24: #{tpu_custom_call.1} parent=11 // pred_fallthru
          _
        // Predicated region
        $region25: #{tpu_custom_call.1} parent=11 // pred_check
          %p525 = pneg %p123
        $region26: #{tpu_custom_call.1} parent=11 // pred_check_branch
          %527 = sbr.rel (%p525) target = $region28
        $region27: #{tpu_custom_call.1} parent=11 // pred_region
          %s529 = ssub.s32 16, 16
          %530 = vsyncadd [#allocation14], %s529
          %s532 = sshll.u32 [#allocation13], 4
          %s533 = int_to_ptr.vmem [resolvable:$true] %s532
          %535 = dma.hbm_to_vmem [thread:$0]  %s5, 16, %s533, [#allocation14]
        $region28: #{tpu_custom_call.1} parent=11 // pred_fallthru
          _
        // Predicated region
        $region29: #{tpu_custom_call.1} parent=11 // pred_check
          %p536 = pneg %p144
        $region30: #{tpu_custom_call.1} parent=11 // pred_check_branch
          %538 = sbr.rel (%p536) target = $region32
        $region31: #{tpu_custom_call.1} parent=11 // pred_region
          %s540 = ssub.s32 16, 16
          %541 = vsyncadd [#allocation14], %s540
          %s543 = sshll.u32 [#allocation15], 4
          %s544 = int_to_ptr.vmem [resolvable:$true] %s543
          %546 = dma.hbm_to_vmem [thread:$0]  %s6, 16, %s544, [#allocation14]
        $region32: #{tpu_custom_call.1} parent=11 // pred_fallthru
          _
      $region12: #{tpu_custom_call.1} parent=5 // pred_fallthru
        _
      %p547 = scmp.lt.s32.totalorder %s39, 2
      // Predicated region
      $region33: #{tpu_custom_call.1} parent=5 // pred_check
        %p548 = pneg %p547
      $region34: #{tpu_custom_call.1} parent=5 // pred_check_branch
        %550 = sbr.rel (%p548) target = $region36
      $region35: #{tpu_custom_call.1} parent=5 // pred_region
        // Predicated region
        $region37: #{tpu_custom_call.1} parent=35 // pred_check
          %p551 = pneg %p164
        $region38: #{tpu_custom_call.1} parent=35 // pred_check_branch
          %553 = sbr.rel (%p551) target = $region40
        $region39: #{tpu_custom_call.1} parent=35 // pred_region
          %s554 = sand.u32 %s39, 1
          %s555 = scalar_lea.sflag [#allocation17], %s554
          %s556 = sand.u32 %s154, 1
          %s557 = smul.addr %s556, 192
          %s558 = scalar_lea.vmem [#allocation16], %s557
          %s560 = ssub.s32 3072, 3072
          %561 = vsyncadd %s555, %s560
          %s562 = smul.addr %s39, 48
          %s563 = smul.addr %s562, 64
          %s564 = scalar_lea.hbm %s7, %s563
          %s565 = sshll.u32 %s558, 4
          %s566 = int_to_ptr.vmem [resolvable:$true] %s565
          %571 = dma.hbm_to_vmem [thread:$0]  %s564, 3072, %s566, %s555, 192, 192, 12
        $region40: #{tpu_custom_call.1} parent=35 // pred_fallthru
          _
        // Predicated region
        $region41: #{tpu_custom_call.1} parent=35 // pred_check
          %p572 = pneg %p190
        $region42: #{tpu_custom_call.1} parent=35 // pred_check_branch
          %574 = sbr.rel (%p572) target = $region44
        $region43: #{tpu_custom_call.1} parent=35 // pred_region
          %p575 = scmp.lt.s32.totalorder %s39, 1
          %s576 = scalar_select %p575, %s39, 1
          %s577 = smul.addr %s576, 3
          %s578 = scalar_lea.vmem %s8, %s577
        $region44: #{tpu_custom_call.1} parent=35 // pred_fallthru
          _
        // Predicated region
        $region45: #{tpu_custom_call.1} parent=35 // pred_check
          %p579 = pneg %p216
        $region46: #{tpu_custom_call.1} parent=35 // pred_check_branch
          %581 = sbr.rel (%p579) target = $region48
        $region47: #{tpu_custom_call.1} parent=35 // pred_region
          %s582 = sand.u32 %s39, 1
          %s583 = scalar_lea.sflag [#allocation17], %s582
          %s584 = sand.u32 %s206, 1
          %s585 = smul.addr %s584, 64
          %s586 = scalar_lea.vmem [#allocation18], %s585
          %s588 = ssub.s32 1024, 1024
          %589 = vsyncadd %s583, %s588
          %s590 = smul.addr %s39, 16
          %s591 = smul.addr %s590, 64
          %s592 = scalar_lea.hbm %s9, %s591
          %s593 = sshll.u32 %s586, 4
          %s594 = int_to_ptr.vmem [resolvable:$true] %s593
          %599 = dma.hbm_to_vmem [thread:$0]  %s592, 1024, %s594, %s583, 64, 64, 4
        $region48: #{tpu_custom_call.1} parent=35 // pred_fallthru
          _
        // Predicated region
        $region49: #{tpu_custom_call.1} parent=35 // pred_check
          %p600 = pneg %p242
        $region50: #{tpu_custom_call.1} parent=35 // pred_check_branch
          %602 = sbr.rel (%p600) target = $region52
        $region51: #{tpu_custom_call.1} parent=35 // pred_region
          %p603 = scmp.lt.s32.totalorder %s39, 1
          %s604 = scalar_select %p603, %s39, 1
          %s605 = scalar_lea.vmem %s10, %s604
        $region52: #{tpu_custom_call.1} parent=35 // pred_fallthru
          _
        // Predicated region
        $region53: #{tpu_custom_call.1} parent=35 // pred_check
          %p606 = pneg %p268
        $region54: #{tpu_custom_call.1} parent=35 // pred_check_branch
          %608 = sbr.rel (%p606) target = $region56
        $region55: #{tpu_custom_call.1} parent=35 // pred_region
          %p609 = scmp.lt.s32.totalorder %s39, 1
          %s610 = scalar_select %p609, %s39, 1
          %s611 = scalar_lea.vmem %s11, %s610
        $region56: #{tpu_custom_call.1} parent=35 // pred_fallthru
          _
        // Predicated region
        $region57: #{tpu_custom_call.1} parent=35 // pred_check
          %p612 = pneg %p294
        $region58: #{tpu_custom_call.1} parent=35 // pred_check_branch
          %614 = sbr.rel (%p612) target = $region60
        $region59: #{tpu_custom_call.1} parent=35 // pred_region
          %p615 = scmp.lt.s32.totalorder %s39, 1
          %s616 = scalar_select %p615, %s39, 1
          %s617 = scalar_lea.vmem %s12, %s616
        $region60: #{tpu_custom_call.1} parent=35 // pred_fallthru
          _
        // Predicated region
        $region61: #{tpu_custom_call.1} parent=35 // pred_check
          %p618 = pneg %p320
        $region62: #{tpu_custom_call.1} parent=35 // pred_check_branch
          %620 = sbr.rel (%p618) target = $region64
        $region63: #{tpu_custom_call.1} parent=35 // pred_region
          %s621 = sand.u32 %s39, 1
          %s622 = scalar_lea.sflag [#allocation20], %s621
          %s623 = sand.u32 %s310, 1
          %s624 = smul.addr %s623, 128
          %s625 = scalar_lea.vmem [#allocation19], %s624
          %s627 = ssub.s32 2048, 2048
          %628 = vsyncadd %s622, %s627
          %s629 = smul.addr %s39, 32
          %s630 = smul.addr %s629, 64
          %s631 = scalar_lea.hbm %s13, %s630
          %s632 = sshll.u32 %s625, 4
          %s633 = int_to_ptr.vmem [resolvable:$true] %s632
          %638 = dma.hbm_to_vmem [thread:$0]  %s631, 2048, %s633, %s622, 128, 128, 8
        $region64: #{tpu_custom_call.1} parent=35 // pred_fallthru
          _
        // Predicated region
        $region65: #{tpu_custom_call.1} parent=35 // pred_check
          %p639 = pneg %p346
        $region66: #{tpu_custom_call.1} parent=35 // pred_check_branch
          %641 = sbr.rel (%p639) target = $region68
        $region67: #{tpu_custom_call.1} parent=35 // pred_region
          %p642 = scmp.lt.s32.totalorder %s39, 1
          %s643 = scalar_select %p642, %s39, 1
          %s644 = smul.addr %s643, 2
          %s645 = scalar_lea.vmem %s14, %s644
        $region68: #{tpu_custom_call.1} parent=35 // pred_fallthru
          _
        // Predicated region
        $region69: #{tpu_custom_call.1} parent=35 // pred_check
          %p646 = pneg %p372
        $region70: #{tpu_custom_call.1} parent=35 // pred_check_branch
          %648 = sbr.rel (%p646) target = $region72
        $region71: #{tpu_custom_call.1} parent=35 // pred_region
          %s649 = sand.u32 %s39, 1
          %s650 = scalar_lea.sflag [#allocation20], %s649
          %s651 = sand.u32 %s362, 1
          %s652 = smul.addr %s651, 128
          %s653 = scalar_lea.vmem [#allocation21], %s652
          %s655 = ssub.s32 2048, 2048
          %656 = vsyncadd %s650, %s655
          %s657 = smul.addr %s39, 32
          %s658 = smul.addr %s657, 64
          %s659 = scalar_lea.hbm %s15, %s658
          %s660 = sshll.u32 %s653, 4
          %s661 = int_to_ptr.vmem [resolvable:$true] %s660
          %666 = dma.hbm_to_vmem [thread:$0]  %s659, 2048, %s661, %s650, 64, 64, 4
        $region72: #{tpu_custom_call.1} parent=35 // pred_fallthru
          _
        // Predicated region
        $region73: #{tpu_custom_call.1} parent=35 // pred_check
          %p667 = pneg %p398
        $region74: #{tpu_custom_call.1} parent=35 // pred_check_branch
          %669 = sbr.rel (%p667) target = $region76
        $region75: #{tpu_custom_call.1} parent=35 // pred_region
          %p670 = scmp.lt.s32.totalorder %s39, 1
          %s671 = scalar_select %p670, %s39, 1
          %s672 = scalar_lea.vmem %s16, %s671
        $region76: #{tpu_custom_call.1} parent=35 // pred_fallthru
          _
        // Predicated region
        $region77: #{tpu_custom_call.1} parent=35 // pred_check
          %p673 = pneg %p424
        $region78: #{tpu_custom_call.1} parent=35 // pred_check_branch
          %675 = sbr.rel (%p673) target = $region80
        $region79: #{tpu_custom_call.1} parent=35 // pred_region
          %p676 = scmp.lt.s32.totalorder %s39, 1
          %s677 = scalar_select %p676, %s39, 1
          %s678 = scalar_lea.vmem %s17, %s677
        $region80: #{tpu_custom_call.1} parent=35 // pred_fallthru
          _
        // Predicated region
        $region81: #{tpu_custom_call.1} parent=35 // pred_check
          %p679 = pneg %p450
        $region82: #{tpu_custom_call.1} parent=35 // pred_check_branch
          %681 = sbr.rel (%p679) target = $region84
        $region83: #{tpu_custom_call.1} parent=35 // pred_region
          %p682 = scmp.lt.s32.totalorder %s39, 1
          %s683 = scalar_select %p682, %s39, 1
          %s684 = scalar_lea.vmem %s18, %s683
        $region84: #{tpu_custom_call.1} parent=35 // pred_fallthru
          _
      $region36: #{tpu_custom_call.1} parent=5 // pred_fallthru
        _
      %p685 = scmp.le.s32.totalorder 1, %s39
      %p686 = scmp.lt.s32.totalorder %s39, 3
      %p687 = pnand %p685, %p686
      %p688 = pneg %p687
      // Predicated region
      $region85: #{tpu_custom_call.1} parent=5 // pred_check
        _
      $region86: #{tpu_custom_call.1} parent=5 // pred_check_branch
        %690 = sbr.rel (%p687) target = $region88
      $region87: #{tpu_custom_call.1} parent=5 // pred_region
        %s691 = ssub.s32 %s39, 1
        // Predicated region
        $region89: #{tpu_custom_call.1} parent=87 // pred_check
          %p692 = pneg %p60
        $region90: #{tpu_custom_call.1} parent=87 // pred_check_branch
          %694 = sbr.rel (%p692) target = $region92
        $region91: #{tpu_custom_call.1} parent=87 // pred_region
          %695 = dma.done [#allocation8], 16
        $region92: #{tpu_custom_call.1} parent=87 // pred_fallthru
          _
        // Predicated region
        $region93: #{tpu_custom_call.1} parent=87 // pred_check
          %p696 = pneg %p81
        $region94: #{tpu_custom_call.1} parent=87 // pred_check_branch
          %698 = sbr.rel (%p696) target = $region96
        $region95: #{tpu_custom_call.1} parent=87 // pred_region
          %699 = dma.done [#allocation11], 128
        $region96: #{tpu_custom_call.1} parent=87 // pred_fallthru
          _
        // Predicated region
        $region97: #{tpu_custom_call.1} parent=87 // pred_check
          %p700 = pneg %p102
        $region98: #{tpu_custom_call.1} parent=87 // pred_check_branch
          %702 = sbr.rel (%p700) target = $region100
        $region99: #{tpu_custom_call.1} parent=87 // pred_region
          %703 = dma.done [#allocation11], 16
        $region100: #{tpu_custom_call.1} parent=87 // pred_fallthru
          _
        // Predicated region
        $region101: #{tpu_custom_call.1} parent=87 // pred_check
          %p704 = pneg %p123
        $region102: #{tpu_custom_call.1} parent=87 // pred_check_branch
          %706 = sbr.rel (%p704) target = $region104
        $region103: #{tpu_custom_call.1} parent=87 // pred_region
          %707 = dma.done [#allocation14], 16
        $region104: #{tpu_custom_call.1} parent=87 // pred_fallthru
          _
        // Predicated region
        $region105: #{tpu_custom_call.1} parent=87 // pred_check
          %p708 = pneg %p144
        $region106: #{tpu_custom_call.1} parent=87 // pred_check_branch
          %710 = sbr.rel (%p708) target = $region108
        $region107: #{tpu_custom_call.1} parent=87 // pred_region
          %711 = dma.done [#allocation14], 16
        $region108: #{tpu_custom_call.1} parent=87 // pred_fallthru
          _
        %s712 = sand.u32 %s44, 1
        %s713 = scalar_lea.sflag [#allocation17], %s712
        %s714 = sand.u32 %s157, 1
        %s715 = smul.addr %s714, 192
        %s716 = scalar_lea.vmem [#allocation16], %s715
        // Predicated region
        $region109: #{tpu_custom_call.1} parent=87 // pred_check
          %p717 = pneg %p170
        $region110: #{tpu_custom_call.1} parent=87 // pred_check_branch
          %719 = sbr.rel (%p717) target = $region112
        $region111: #{tpu_custom_call.1} parent=87 // pred_region
          %720 = dma.done %s713, 3072
        $region112: #{tpu_custom_call.1} parent=87 // pred_fallthru
          _
        %s721 = sand.u32 %s44, 1
        %s722 = scalar_lea.sflag [#allocation17], %s721
        %s723 = sand.u32 %s209, 1
        %s724 = smul.addr %s723, 64
        %s725 = scalar_lea.vmem [#allocation18], %s724
        // Predicated region
        $region113: #{tpu_custom_call.1} parent=87 // pred_check
          %p726 = pneg %p222
        $region114: #{tpu_custom_call.1} parent=87 // pred_check_branch
          %728 = sbr.rel (%p726) target = $region116
        $region115: #{tpu_custom_call.1} parent=87 // pred_region
          %729 = dma.done %s722, 1024
        $region116: #{tpu_custom_call.1} parent=87 // pred_fallthru
          _
        %s730 = sand.u32 %s44, 1
        %s731 = scalar_lea.sflag [#allocation20], %s730
        %s732 = sand.u32 %s313, 1
        %s733 = smul.addr %s732, 128
        %s734 = scalar_lea.vmem [#allocation19], %s733
        // Predicated region
        $region117: #{tpu_custom_call.1} parent=87 // pred_check
          %p735 = pneg %p326
        $region118: #{tpu_custom_call.1} parent=87 // pred_check_branch
          %737 = sbr.rel (%p735) target = $region120
        $region119: #{tpu_custom_call.1} parent=87 // pred_region
          %738 = dma.done %s731, 2048
        $region120: #{tpu_custom_call.1} parent=87 // pred_fallthru
          _
        %s739 = sand.u32 %s44, 1
        %s740 = scalar_lea.sflag [#allocation20], %s739
        %s741 = sand.u32 %s365, 1
        %s742 = smul.addr %s741, 128
        %s743 = scalar_lea.vmem [#allocation21], %s742
        // Predicated region
        $region121: #{tpu_custom_call.1} parent=87 // pred_check
          %p744 = pneg %p378
        $region122: #{tpu_custom_call.1} parent=87 // pred_check_branch
          %746 = sbr.rel (%p744) target = $region124
        $region123: #{tpu_custom_call.1} parent=87 // pred_region
          %747 = dma.done %s740, 2048
        $region124: #{tpu_custom_call.1} parent=87 // pred_fallthru
          _
        %p748 = pneg %p60
        %p749 = pneg %p57
        %p750 = pneg %p81
        %p751 = pneg %p78
        %p752 = pneg %p102
        %p753 = pneg %p99
        %p754 = pneg %p123
        %p755 = pneg %p120
        %p756 = pneg %p144
        %p757 = pneg %p141
        %s758 = sand.u32 %s44, 1
        %s759 = scalar_lea.sflag [#allocation17], %s758
        %s760 = sand.u32 %s157, 1
        %s761 = smul.addr %s760, 192
        %s762 = scalar_lea.vmem [#allocation16], %s761
        %p763 = pneg %p170
        %p764 = pneg %p167
        %p765 = scmp.lt.s32.totalorder %s44, 1
        %s766 = scalar_select %p765, %s44, 1
        %s767 = smul.addr %s766, 3
        %s768 = scalar_lea.vmem %s8, %s767
        %p769 = pneg %p196
        %p770 = pneg %p193
        %s771 = sand.u32 %s44, 1
        %s772 = scalar_lea.sflag [#allocation17], %s771
        %s773 = sand.u32 %s209, 1
        %s774 = smul.addr %s773, 64
        %s775 = scalar_lea.vmem [#allocation18], %s774
        %p776 = pneg %p222
        %p777 = pneg %p219
        %p778 = scmp.lt.s32.totalorder %s44, 1
        %s779 = scalar_select %p778, %s44, 1
        %s780 = scalar_lea.vmem %s10, %s779
        %p781 = pneg %p248
        %p782 = pneg %p245
        %p783 = scmp.lt.s32.totalorder %s44, 1
        %s784 = scalar_select %p783, %s44, 1
        %s785 = scalar_lea.vmem %s11, %s784
        %p786 = pneg %p274
        %p787 = pneg %p271
        %p788 = scmp.lt.s32.totalorder %s44, 1
        %s789 = scalar_select %p788, %s44, 1
        %s790 = scalar_lea.vmem %s12, %s789
        %p791 = pneg %p300
        %p792 = pneg %p297
        %s793 = sand.u32 %s44, 1
        %s794 = scalar_lea.sflag [#allocation20], %s793
        %s795 = sand.u32 %s313, 1
        %s796 = smul.addr %s795, 128
        %s797 = scalar_lea.vmem [#allocation19], %s796
        %p798 = pneg %p326
        %p799 = pneg %p323
        %p800 = scmp.lt.s32.totalorder %s44, 1
        %s801 = scalar_select %p800, %s44, 1
        %s802 = smul.addr %s801, 2
        %s803 = scalar_lea.vmem %s14, %s802
        %p804 = pneg %p352
        %p805 = pneg %p349
        %s806 = sand.u32 %s44, 1
        %s807 = scalar_lea.sflag [#allocation20], %s806
        %s808 = sand.u32 %s365, 1
        %s809 = smul.addr %s808, 128
        %s810 = scalar_lea.vmem [#allocation21], %s809
        %p811 = pneg %p378
        %p812 = pneg %p375
        %p813 = scmp.lt.s32.totalorder %s44, 1
        %s814 = scalar_select %p813, %s44, 1
        %s815 = scalar_lea.vmem %s16, %s814
        %p816 = pneg %p404
        %p817 = pneg %p401
        %p818 = scmp.lt.s32.totalorder %s44, 1
        %s819 = scalar_select %p818, %s44, 1
        %s820 = scalar_lea.vmem %s17, %s819
        %p821 = pneg %p430
        %p822 = pneg %p427
        %p823 = scmp.lt.s32.totalorder %s44, 1
        %s824 = scalar_select %p823, %s44, 1
        %s825 = scalar_lea.vmem %s18, %s824
        %p826 = pneg %p456
        %p827 = pneg %p453
        %p828 = pneg %p477
        %p829 = pneg %p474
        %p830 = scmp.lt.s32.totalorder %s44, 1
        %s831 = scalar_select %p830, %s44, 1
        %s832 = smul.addr %s831, 3
        %s833 = scalar_lea.vmem %s8, %s832
        %p834 = scmp.lt.s32.totalorder %s44, 1
        %s835 = scalar_select %p834, %s44, 1
        %s836 = scalar_lea.vmem %s10, %s835
        %p837 = scmp.lt.s32.totalorder %s44, 1
        %s838 = scalar_select %p837, %s44, 1
        %s839 = scalar_lea.vmem %s11, %s838
        %p840 = scmp.lt.s32.totalorder %s44, 1
        %s841 = scalar_select %p840, %s44, 1
        %s842 = scalar_lea.vmem %s12, %s841
        %p843 = scmp.lt.s32.totalorder %s44, 1
        %s844 = scalar_select %p843, %s44, 1
        %s845 = smul.addr %s844, 2
        %s846 = scalar_lea.vmem %s14, %s845
        %p847 = scmp.lt.s32.totalorder %s44, 1
        %s848 = scalar_select %p847, %s44, 1
        %s849 = scalar_lea.vmem %s16, %s848
        %p850 = scmp.lt.s32.totalorder %s44, 1
        %s851 = scalar_select %p850, %s44, 1
        %s852 = scalar_lea.vmem %s17, %s851
        %p853 = scmp.lt.s32.totalorder %s44, 1
        %s854 = scalar_select %p853, %s44, 1
        %s855 = scalar_lea.vmem %s18, %s854
        %p857 = scmp.eq.s32.totalorder %s44, 0
        // Predicated region
        $region125: #{tpu_custom_call.1} parent=87 // pred_check
          %p858 = pneg %p857
        $region126: #{tpu_custom_call.1} parent=87 // pred_check_branch
          %860 = sbr.rel (%p858) target = $region128
        $region127: #{tpu_custom_call.1} parent=87 // pred_region
          %s861 = sld [smem:[#allocation6]]
          %s862 = smul.addr %s861, 16
          %s863 = scalar_lea.hbm %s2, %s862
          // Predicated region
          $region129: #{tpu_custom_call.1} parent=127 // pred_check
            _
          $region130: #{tpu_custom_call.1} parent=127 // pred_check_branch
            %865 = sbr.rel target = $region132
          $region131: #{tpu_custom_call.1} parent=127 // pred_region
            %866 = sst [smem:[#allocation25]] [#allocation24]
            %867 = sst [smem:[#allocation26]] [#allocation23]
          $region132: #{tpu_custom_call.1} parent=127 // pred_fallthru
            _
          %869 = shalt.err (0)
          %s871 = sshll.u32 [#allocation3], 4
          %s872 = int_to_ptr.vmem [resolvable:$true] %s871
          %874 = dma.hbm_to_vmem [thread:$0]  %s863, 16, %s872, [#allocation4]
          %s875 = sld [smem:[#allocation6 + $0x1]]
          %s876 = smul.addr %s875, 16
          %s877 = scalar_lea.hbm %s2, %s876
          %s878 = scalar_lea.vmem [#allocation3], 1
          %s879 = scalar_lea.sflag [#allocation4], 1
          // Predicated region
          $region133: #{tpu_custom_call.1} parent=127 // pred_check
            _
          $region134: #{tpu_custom_call.1} parent=127 // pred_check_branch
            %881 = sbr.rel target = $region136
          $region135: #{tpu_custom_call.1} parent=127 // pred_region
            %882 = sst [smem:[#allocation25]] [#allocation28]
            %883 = sst [smem:[#allocation26]] [#allocation27]
          $region136: #{tpu_custom_call.1} parent=127 // pred_fallthru
            _
          %885 = shalt.err (0)
          %s887 = sshll.u32 %s878, 4
          %s888 = int_to_ptr.vmem [resolvable:$true] %s887
          %890 = dma.hbm_to_vmem [thread:$0]  %s877, 16, %s888, %s879
          %s891 = sld [smem:[#allocation6 + $0x2]]
          %s892 = smul.addr %s891, 16
          %s893 = scalar_lea.hbm %s2, %s892
          %s894 = scalar_lea.vmem [#allocation3], 2
          %s895 = scalar_lea.sflag [#allocation4], 2
          // Predicated region
          $region137: #{tpu_custom_call.1} parent=127 // pred_check
            _
          $region138: #{tpu_custom_call.1} parent=127 // pred_check_branch
            %897 = sbr.rel target = $region140
          $region139: #{tpu_custom_call.1} parent=127 // pred_region
            %898 = sst [smem:[#allocation25]] [#allocation30]
            %899 = sst [smem:[#allocation26]] [#allocation29]
          $region140: #{tpu_custom_call.1} parent=127 // pred_fallthru
            _
          %901 = shalt.err (0)
          %s903 = sshll.u32 %s894, 4
          %s904 = int_to_ptr.vmem [resolvable:$true] %s903
          %906 = dma.hbm_to_vmem [thread:$0]  %s893, 16, %s904, %s895
          %s907 = sld [smem:[#allocation6 + $0x3]]
          %s908 = smul.addr %s907, 16
          %s909 = scalar_lea.hbm %s2, %s908
          %s910 = scalar_lea.vmem [#allocation3], 3
          %s911 = scalar_lea.sflag [#allocation4], 3
          // Predicated region
          $region141: #{tpu_custom_call.1} parent=127 // pred_check
            _
          $region142: #{tpu_custom_call.1} parent=127 // pred_check_branch
            %913 = sbr.rel target = $region144
          $region143: #{tpu_custom_call.1} parent=127 // pred_region
            %914 = sst [smem:[#allocation25]] [#allocation32]
            %915 = sst [smem:[#allocation26]] [#allocation31]
          $region144: #{tpu_custom_call.1} parent=127 // pred_fallthru
            _
          %917 = shalt.err (0)
          %s919 = sshll.u32 %s910, 4
          %s920 = int_to_ptr.vmem [resolvable:$true] %s919
          %922 = dma.hbm_to_vmem [thread:$0]  %s909, 16, %s920, %s911
          %s923 = sld [smem:[#allocation6 + $0x4]]
          %s924 = smul.addr %s923, 16
          %s925 = scalar_lea.hbm %s2, %s924
          %s926 = scalar_lea.vmem [#allocation3], 4
          %s927 = scalar_lea.sflag [#allocation4], 4
          // Predicated region
          $region145: #{tpu_custom_call.1} parent=127 // pred_check
            _
          $region146: #{tpu_custom_call.1} parent=127 // pred_check_branch
            %929 = sbr.rel target = $region148
          $region147: #{tpu_custom_call.1} parent=127 // pred_region
            %930 = sst [smem:[#allocation25]] [#allocation34]
            %931 = sst [smem:[#allocation26]] [#allocation33]
          $region148: #{tpu_custom_call.1} parent=127 // pred_fallthru
            _
          %933 = shalt.err (0)
          %s935 = sshll.u32 %s926, 4
          %s936 = int_to_ptr.vmem [resolvable:$true] %s935
          %938 = dma.hbm_to_vmem [thread:$0]  %s925, 16, %s936, %s927
          %s939 = sld [smem:[#allocation6 + $0x5]]
          %s940 = smul.addr %s939, 16
          %s941 = scalar_lea.hbm %s2, %s940
          %s942 = scalar_lea.vmem [#allocation3], 5
          %s943 = scalar_lea.sflag [#allocation4], 5
          // Predicated region
          $region149: #{tpu_custom_call.1} parent=127 // pred_check
            _
          $region150: #{tpu_custom_call.1} parent=127 // pred_check_branch
            %945 = sbr.rel target = $region152
          $region151: #{tpu_custom_call.1} parent=127 // pred_region
            %946 = sst [smem:[#allocation25]] [#allocation36]
            %947 = sst [smem:[#allocation26]] [#allocation35]
          $region152: #{tpu_custom_call.1} parent=127 // pred_fallthru
            _
          %949 = shalt.err (0)
          %s951 = sshll.u32 %s942, 4
          %s952 = int_to_ptr.vmem [resolvable:$true] %s951
          %954 = dma.hbm_to_vmem [thread:$0]  %s941, 16, %s952, %s943
          %s955 = sld [smem:[#allocation6 + $0x6]]
          %s956 = smul.addr %s955, 16
          %s957 = scalar_lea.hbm %s2, %s956
          %s958 = scalar_lea.vmem [#allocation3], 6
          %s959 = scalar_lea.sflag [#allocation4], 6
          // Predicated region
          $region153: #{tpu_custom_call.1} parent=127 // pred_check
            _
          $region154: #{tpu_custom_call.1} parent=127 // pred_check_branch
            %961 = sbr.rel target = $region156
          $region155: #{tpu_custom_call.1} parent=127 // pred_region
            %962 = sst [smem:[#allocation25]] [#allocation38]
            %963 = sst [smem:[#allocation26]] [#allocation37]
          $region156: #{tpu_custom_call.1} parent=127 // pred_fallthru
            _
          %965 = shalt.err (0)
          %s967 = sshll.u32 %s958, 4
          %s968 = int_to_ptr.vmem [resolvable:$true] %s967
          %970 = dma.hbm_to_vmem [thread:$0]  %s957, 16, %s968, %s959
          %s971 = sld [smem:[#allocation6 + $0x7]]
          %s972 = smul.addr %s971, 16
          %s973 = scalar_lea.hbm %s2, %s972
          %s974 = scalar_lea.vmem [#allocation3], 7
          %s975 = scalar_lea.sflag [#allocation4], 7
          // Predicated region
          $region157: #{tpu_custom_call.1} parent=127 // pred_check
            _
          $region158: #{tpu_custom_call.1} parent=127 // pred_check_branch
            %977 = sbr.rel target = $region160
          $region159: #{tpu_custom_call.1} parent=127 // pred_region
            %978 = sst [smem:[#allocation25]] [#allocation40]
            %979 = sst [smem:[#allocation26]] [#allocation39]
          $region160: #{tpu_custom_call.1} parent=127 // pred_fallthru
            _
          %981 = shalt.err (0)
          %s983 = sshll.u32 %s974, 4
          %s984 = int_to_ptr.vmem [resolvable:$true] %s983
          %986 = dma.hbm_to_vmem [thread:$0]  %s973, 16, %s984, %s975
          %s987 = sld [smem:[#allocation6]]
          %s988 = smul.u32 1, 1
          %s989 = sshll.u32 %s988, 4
          %990 = dma.done [#allocation4], %s989
          %s991 = sld [smem:[#allocation6 + $0x1]]
          %s992 = sshll.u32 %s988, 4
          %993 = dma.done %s879, %s992
          %s994 = sld [smem:[#allocation6 + $0x2]]
          %s995 = sshll.u32 %s988, 4
          %996 = dma.done %s895, %s995
          %s997 = sld [smem:[#allocation6 + $0x3]]
          %s998 = sshll.u32 %s988, 4
          %999 = dma.done %s911, %s998
          %s1000 = sld [smem:[#allocation6 + $0x4]]
          %s1001 = sshll.u32 %s988, 4
          %1002 = dma.done %s927, %s1001
          %s1003 = sld [smem:[#allocation6 + $0x5]]
          %s1004 = sshll.u32 %s988, 4
          %1005 = dma.done %s943, %s1004
          %s1006 = sld [smem:[#allocation6 + $0x6]]
          %s1007 = sshll.u32 %s988, 4
          %1008 = dma.done %s959, %s1007
          %s1009 = sld [smem:[#allocation6 + $0x7]]
          %s1010 = sshll.u32 %s988, 4
          %1011 = dma.done %s975, %s1010
          %v1012 = vld [vmem:[#allocation3] sm:$0xff]
          %v1013 = vld [vmem:[#allocation10] sm:$0xff]
          %v1014 = vadd.f32 %v1012, %v1013
          %v1015 = vld [vmem:[#allocation12] sm:$0x1]
          %v1017 = vlaneseq
          %v1018 = vshrl.u32 %v1017, 7
          %v1019 = vsub.s32 0, %v1018
          %v1020 = vrot.slane %v1015, %v1019
          %v1022 = vadd.f32 %v1014, %v1020
          %v1023 = vld [vmem:[#allocation13] sm:$0x1]
          %v1024 = vld [vmem:[#allocation15] sm:$0x1]
          %1025 = vadd.xlane.f32.xlu0 %v1022
          %v1026 = vpop.xlane.xlu0 %1025
          %v1027 = vrcp.pop 128.0
          %v1028 = vmul.f32 %v1026, %v1027
          %v1029 = vsub.f32 %v1022, %v1028
          %v1030 = vmul.f32 %v1029, %v1029
          %1031 = vadd.xlane.f32.xlu0 %v1030
          %v1032 = vpop.xlane.xlu0 %1031
          %v1033 = vmul.f32 %v1032, %v1027
          %v1034 = vadd.f32 %v1033, 1e-12
          %v1035 = vrsqrt.pop %v1034
          %v1036 = vmul.f32 %v1029, %v1035
          %v1038 = vlaneseq
          %v1039 = vshrl.u32 %v1038, 7
          %v1040 = vsub.s32 0, %v1039
          %v1041 = vrot.slane %v1023, %v1040
          %v1043 = vmul.f32 %v1036, %v1041
          %v1045 = vlaneseq
          %v1046 = vshrl.u32 %v1045, 7
          %v1047 = vsub.s32 0, %v1046
          %v1048 = vrot.slane %v1024, %v1047
          %v1050 = vadd.f32 %v1043, %v1048
          %1051 = vst [vmem:[#allocation2] sm:$0xff] %v1050
        $region128: #{tpu_custom_call.1} parent=87 // pred_fallthru
          _
        %v1052 = vld [vmem:[#allocation2] sm:$0xff]
        %v1053 = vpack.c.bf16 %v1052, %v1052
        %v1054 = vld [vmem:[#allocation7] sm:$0x1]
        %v1055 = vld [vmem:[%s716] sm:$0xff]
        %v1056 = vld [vmem:[%s716 + $0x8] sm:$0xf]
        %v1057 = vld [vmem:[%s716 + $0xc] sm:$0xff]
        %v1058 = vld [vmem:[%s716 + $0x14] sm:$0xf]
        %v1059 = vld [vmem:[%s716 + $0x18] sm:$0xff]
        %v1060 = vld [vmem:[%s716 + $0x20] sm:$0xf]
        %v1061 = vld [vmem:[%s716 + $0x24] sm:$0xff]
        %v1062 = vld [vmem:[%s716 + $0x2c] sm:$0xf]
        %v1063 = vld [vmem:[%s716 + $0x30] sm:$0xff]
        %v1064 = vld [vmem:[%s716 + $0x38] sm:$0xf]
        %v1065 = vld [vmem:[%s716 + $0x3c] sm:$0xff]
        %v1066 = vld [vmem:[%s716 + $0x44] sm:$0xf]
        %v1067 = vld [vmem:[%s716 + $0x48] sm:$0xff]
        %v1068 = vld [vmem:[%s716 + $0x50] sm:$0xf]
        %v1069 = vld [vmem:[%s716 + $0x54] sm:$0xff]
        %v1070 = vld [vmem:[%s716 + $0x5c] sm:$0xf]
        %v1071 = vld [vmem:[%s716 + $0x60] sm:$0xff]
        %v1072 = vld [vmem:[%s716 + $0x68] sm:$0xf]
        %v1073 = vld [vmem:[%s716 + $0x6c] sm:$0xff]
        %v1074 = vld [vmem:[%s716 + $0x74] sm:$0xf]
        %v1075 = vld [vmem:[%s716 + $0x78] sm:$0xff]
        %v1076 = vld [vmem:[%s716 + $0x80] sm:$0xf]
        %v1077 = vld [vmem:[%s716 + $0x84] sm:$0xff]
        %v1078 = vld [vmem:[%s716 + $0x8c] sm:$0xf]
        %v1079 = vld [vmem:[%s716 + $0x90] sm:$0xff]
        %v1080 = vld [vmem:[%s716 + $0x98] sm:$0xf]
        %v1081 = vld [vmem:[%s716 + $0x9c] sm:$0xff]
        %v1082 = vld [vmem:[%s716 + $0xa4] sm:$0xf]
        %v1083 = vld [vmem:[%s716 + $0xa8] sm:$0xff]
        %v1084 = vld [vmem:[%s716 + $0xb0] sm:$0xf]
        %v1085 = vld [vmem:[%s716 + $0xb4] sm:$0xff]
        %v1086 = vld [vmem:[%s716 + $0xbc] sm:$0xf]
        %v1087 = vld [vmem:[%s833] sm:$0x7]
        %v1089 = vlaneseq
        %v1090 = vshrl.u32 %v1089, 7
        %v1091 = vsub.s32 0, %v1090
        %v1092 = vrot.slane %v1087, %v1091
        %v1093 = vlaneseq
        %v1094 = vshrl.u32 %v1093, 7
        %v1095 = vsub.s32 1, %v1094
        %v1096 = vrot.slane %v1087, %v1095
        %v1097 = vlaneseq
        %v1098 = vshrl.u32 %v1097, 7
        %v1099 = vsub.s32 2, %v1098
        %v1100 = vrot.slane %v1087, %v1099
        %v1136 = vunpack.c.l.b16 %v1055
        %v1137 = vunpack.c.h.b16 %v1055
        %v1138 = vunpack.c.l.b16 %v1056
        %v1139 = vunpack.c.l.b16 %v1057
        %v1140 = vunpack.c.h.b16 %v1057
        %v1141 = vunpack.c.l.b16 %v1058
        %v1142 = vunpack.c.l.b16 %v1059
        %v1143 = vunpack.c.h.b16 %v1059
        %v1144 = vunpack.c.l.b16 %v1060
        %v1145 = vunpack.c.l.b16 %v1061
        %v1146 = vunpack.c.h.b16 %v1061
        %v1147 = vunpack.c.l.b16 %v1062
        %v1148 = vunpack.c.l.b16 %v1063
        %v1149 = vunpack.c.h.b16 %v1063
        %v1150 = vunpack.c.l.b16 %v1064
        %v1151 = vunpack.c.l.b16 %v1065
        %v1152 = vunpack.c.h.b16 %v1065
        %v1153 = vunpack.c.l.b16 %v1066
        %v1154 = vunpack.c.l.b16 %v1067
        %v1155 = vunpack.c.h.b16 %v1067
        %v1156 = vunpack.c.l.b16 %v1068
        %v1157 = vunpack.c.l.b16 %v1069
        %v1158 = vunpack.c.h.b16 %v1069
        %v1159 = vunpack.c.l.b16 %v1070
        %v1160 = vunpack.c.l.b16 %v1071
        %v1161 = vunpack.c.h.b16 %v1071
        %v1162 = vunpack.c.l.b16 %v1072
        %v1163 = vunpack.c.l.b16 %v1073
        %v1164 = vunpack.c.h.b16 %v1073
        %v1165 = vunpack.c.l.b16 %v1074
        %v1166 = vunpack.c.l.b16 %v1075
        %v1167 = vunpack.c.h.b16 %v1075
        %v1168 = vunpack.c.l.b16 %v1076
        %v1169 = vunpack.c.l.b16 %v1077
        %v1170 = vunpack.c.h.b16 %v1077
        %v1171 = vunpack.c.l.b16 %v1078
        %v1172 = vunpack.c.l.b16 %v1079
        %v1173 = vunpack.c.h.b16 %v1079
        %v1174 = vunpack.c.l.b16 %v1080
        %v1175 = vunpack.c.l.b16 %v1081
        %v1176 = vunpack.c.h.b16 %v1081
        %v1177 = vunpack.c.l.b16 %v1082
        %v1178 = vunpack.c.l.b16 %v1083
        %v1179 = vunpack.c.h.b16 %v1083
        %v1180 = vunpack.c.l.b16 %v1084
        %v1181 = vunpack.c.l.b16 %v1085
        %v1182 = vunpack.c.h.b16 %v1085
        %v1183 = vunpack.c.l.b16 %v1086
        %v1184 = vpack.c.b16 %v1139, %v1136
        %v1185 = vpack.c.b16 %v1140, %v1137
        %v1186 = vpack.c.b16 %v1141, %v1138
        %v1187 = vpack.c.b16 %v1145, %v1142
        %v1188 = vpack.c.b16 %v1146, %v1143
        %v1189 = vpack.c.b16 %v1147, %v1144
        %v1190 = vpack.c.b16 %v1151, %v1148
        %v1191 = vpack.c.b16 %v1152, %v1149
        %v1192 = vpack.c.b16 %v1153, %v1150
        %v1193 = vpack.c.b16 %v1157, %v1154
        %v1194 = vpack.c.b16 %v1158, %v1155
        %v1195 = vpack.c.b16 %v1159, %v1156
        %v1196 = vpack.c.b16 %v1163, %v1160
        %v1197 = vpack.c.b16 %v1164, %v1161
        %v1198 = vpack.c.b16 %v1165, %v1162
        %v1199 = vpack.c.b16 %v1169, %v1166
        %v1200 = vpack.c.b16 %v1170, %v1167
        %v1201 = vpack.c.b16 %v1171, %v1168
        %v1202 = vpack.c.b16 %v1175, %v1172
        %v1203 = vpack.c.b16 %v1176, %v1173
        %v1204 = vpack.c.b16 %v1177, %v1174
        %v1205 = vpack.c.b16 %v1181, %v1178
        %v1206 = vpack.c.b16 %v1182, %v1179
        %v1207 = vpack.c.b16 %v1183, %v1180
        %1232 = vmatprep.subr.bf16.mxu0 %v1206
        %1233 = vmatpush1.bf16.msra.mxu0 %v1205
        %1234 = vmatprep.subr.bf16.mxu0 %v1203
        %1235 = vmatpush1.bf16.msra.mxu0 %v1202
        %1236 = vmatprep.subr.bf16.mxu0 %v1200
        %1237 = vmatpush1.bf16.msra.mxu0 %v1199
        %1238 = vmatprep.subr.bf16.mxu0 %v1197
        %1239 = vmatpush1.bf16.msra.mxu0 %v1196
        %1240 = vmatprep.subr.bf16.mxu0 %v1194
        %1241 = vmatpush1.bf16.msra.mxu0 %v1193
        %1242 = vmatprep.subr.bf16.mxu0 %v1191
        %1243 = vmatpush1.bf16.msra.mxu0 %v1190
        %1244 = vmatprep.subr.bf16.mxu0 %v1188
        %1245 = vmatpush1.bf16.msra.mxu0 %v1187
        %1246 = vmatprep.subr.bf16.mxu0 %v1185
        %1247 = vmatpush1.bf16.msra.mxu0 %v1184
        %1248 = vmatprep.subr.bf16.mxu0 0
        %1249 = vmatpush2.bf16.msra.mxu0 0
        %1250 = vmatprep.subr.bf16.mxu0 0
        %1251 = vmatpush2.bf16.msra.mxu0 0
        %1252 = vmatprep.subr.bf16.mxu0 0
        %1253 = vmatpush2.bf16.msra.mxu0 0
        %1254 = vmatprep.subr.bf16.mxu0 0
        %1255 = vmatpush2.bf16.msra.mxu0 0
        %1256 = vmatprep.subr.bf16.mxu0 0
        %1257 = vmatpush2.bf16.msra.mxu0 0
        %1258 = vmatprep.subr.bf16.mxu0 0
        %1259 = vmatpush2.bf16.msra.mxu0 0
        %1260 = vmatprep.subr.bf16.mxu0 0
        %1261 = vmatpush2.bf16.msra.mxu0 0
        %1262 = vmatprep.subr.bf16.mxu0 0
        %1263 = vmatpush2.bf16.msra.mxu0 0
        %1264 = vmatprep.mubr.bf16.mxu0 0
        %1265 = vmatmul.mubr.bf16.gmra.mxu0 %v1053
        %v1266 = vpop.f32.mrf.mxu0
        %v1267 = vadd.f32 %v1092, %v1266
        %v1268 = vpop.f32.mrf.mxu0
        %v1269 = vadd.f32 %v1096, %v1268
        %v1270 = vpop.f32.mrf.mxu0
        %v1271 = vpop.f32.mrf.mxu0
        %1272 = vdwg.mxu0
        %1273 = vmatprep.subr.bf16.mxu0 0
        %1274 = vmatpush1.bf16.msra.mxu0 %v1207
        %1275 = vmatprep.subr.bf16.mxu0 0
        %1276 = vmatpush1.bf16.msra.mxu0 %v1204
        %1277 = vmatprep.subr.bf16.mxu0 0
        %1278 = vmatpush1.bf16.msra.mxu0 %v1201
        %1279 = vmatprep.subr.bf16.mxu0 0
        %1280 = vmatpush1.bf16.msra.mxu0 %v1198
        %1281 = vmatprep.subr.bf16.mxu0 0
        %1282 = vmatpush1.bf16.msra.mxu0 %v1195
        %1283 = vmatprep.subr.bf16.mxu0 0
        %1284 = vmatpush1.bf16.msra.mxu0 %v1192
        %1285 = vmatprep.subr.bf16.mxu0 0
        %1286 = vmatpush1.bf16.msra.mxu0 %v1189
        %1287 = vmatprep.subr.bf16.mxu0 0
        %1288 = vmatpush1.bf16.msra.mxu0 %v1186
        %1289 = vmatprep.subr.bf16.mxu0 0
        %1290 = vmatpush2.bf16.msra.mxu0 0
        %1291 = vmatprep.subr.bf16.mxu0 0
        %1292 = vmatpush2.bf16.msra.mxu0 0
        %1293 = vmatprep.subr.bf16.mxu0 0
        %1294 = vmatpush2.bf16.msra.mxu0 0
        %1295 = vmatprep.subr.bf16.mxu0 0
        %1296 = vmatpush2.bf16.msra.mxu0 0
        %1297 = vmatprep.subr.bf16.mxu0 0
        %1298 = vmatpush2.bf16.msra.mxu0 0
        %1299 = vmatprep.subr.bf16.mxu0 0
        %1300 = vmatpush2.bf16.msra.mxu0 0
        %1301 = vmatprep.subr.bf16.mxu0 0
        %1302 = vmatpush2.bf16.msra.mxu0 0
        %1303 = vmatprep.subr.bf16.mxu0 0
        %1304 = vmatpush2.bf16.msra.mxu0 0
        %1305 = vmatprep.mubr.bf16.mxu0 0
        %1306 = vmatmul.mubr.bf16.gmra.mxu0 %v1053
        %v1307 = vpop.f32.mrf.mxu0
        %v1308 = vadd.f32 %v1100, %v1307
        %v1309 = vpop.f32.mrf.mxu0
        %v1310 = vpop.f32.mrf.mxu0
        %v1311 = vpop.f32.mrf.mxu0
        %1312 = vdwg.mxu0
        %v1313 = vpack.c.bf16 %v1267, %v1267
        %v1314 = vpack.c.bf16 %v1269, %v1269
        %v1315 = vpack.c.bf16 %v1308, %v1308
        %v1317 = vlaneseq
        %v1318 = vshrl.u32 %v1317, 7
        %v1319 = vsub.s32 0, %v1318
        %v1320 = vrot.slane %v1054, %v1319
        %vm1322 = vcmask 523264
        %v1324 = vsel %vm1322, %v1313, 0
        %v1327 = vsel %vm1322, %v1314, 0
        %1329 = vmatprep.subr.bf16.mxu0 0
        %1330 = vmatpush1.bf16.xpose.msra.mxu0 0
        %1331 = vmatprep.subr.bf16.mxu0 0
        %1332 = vmatpush1.bf16.xpose.msra.mxu0 0
        %1333 = vmatprep.subr.bf16.mxu0 0
        %1334 = vmatpush1.bf16.xpose.msra.mxu0 0
        %1335 = vmatprep.subr.bf16.mxu0 0
        %1336 = vmatpush1.bf16.xpose.msra.mxu0 0
        %1337 = vmatprep.subr.bf16.mxu0 0
        %1338 = vmatpush1.bf16.xpose.msra.mxu0 0
        %1339 = vmatprep.subr.bf16.mxu0 0
        %1340 = vmatpush1.bf16.xpose.msra.mxu0 0
        %1341 = vmatprep.subr.bf16.mxu0 0
        %1342 = vmatpush1.bf16.xpose.msra.mxu0 0
        %1343 = vmatprep.subr.bf16.mxu0 0
        %1344 = vmatpush1.bf16.xpose.msra.mxu0 %v1327
        %1345 = vmatprep.subr.bf16.mxu0 0
        %1346 = vmatpush2.bf16.xpose.msra.mxu0 0
        %1347 = vmatprep.subr.bf16.mxu0 0
        %1348 = vmatpush2.bf16.xpose.msra.mxu0 0
        %1349 = vmatprep.subr.bf16.mxu0 0
        %1350 = vmatpush2.bf16.xpose.msra.mxu0 0
        %1351 = vmatprep.subr.bf16.mxu0 0
        %1352 = vmatpush2.bf16.xpose.msra.mxu0 0
        %1353 = vmatprep.subr.bf16.mxu0 0
        %1354 = vmatpush2.bf16.xpose.msra.mxu0 0
        %1355 = vmatprep.subr.bf16.mxu0 0
        %1356 = vmatpush2.bf16.xpose.msra.mxu0 0
        %1357 = vmatprep.subr.bf16.mxu0 0
        %1358 = vmatpush2.bf16.xpose.msra.mxu0 0
        %1359 = vmatprep.subr.bf16.mxu0 0
        %1360 = vmatpush2.bf16.xpose.msra.mxu0 0
        %1361 = vmatprep.mubr.bf16.mxu0 0
        %1362 = vmatmul.mubr.bf16.gmra.mxu0 %v1324
        %v1363 = vpop.f32.mrf.mxu0
        %v1364 = vadd.f32 %v1320, %v1363
        %v1365 = vpop.f32.mrf.mxu0
        %v1366 = vpop.f32.mrf.mxu0
        %v1367 = vpop.f32.mrf.mxu0
        %1368 = vdwg.mxu0
        %vm1369 = vcmask 64512
        %v1370 = vsel %vm1369, %v1364, -inf
        %1371 = vmax.xlane.f32.xlu0 %v1370
        %v1372 = vpop.xlane.xlu0 %1371
        %v1373 = vsub.f32 %v1364, %v1372
        %v1374 = vmul.f32 %v1373, 1.442695
        %v1375 = vpow.pop %v1374
        %v1376 = vsel %vm1369, %v1375, 0.0
        %1377 = vadd.xlane.f32.xlu0 %v1376
        %v1378 = vpop.xlane.xlu0 %1377
        %v1379 = vrcp.pop %v1378
        %v1380 = vmul.f32 %v1375, %v1379
        %v1381 = vpack.c.bf16 %v1380, %v1380
        %v1383 = vsel %vm1369, %v1381, 0
        %vm1385 = vcmask 1043456
        %v1387 = vsel %vm1385, %v1315, 0
        %1389 = vmatprep.subr.bf16.mxu0 0
        %1390 = vmatpush1.bf16.msra.mxu0 0
        %1391 = vmatprep.subr.bf16.mxu0 0
        %1392 = vmatpush1.bf16.msra.mxu0 0
        %1393 = vmatprep.subr.bf16.mxu0 0
        %1394 = vmatpush1.bf16.msra.mxu0 0
        %1395 = vmatprep.subr.bf16.mxu0 0
        %1396 = vmatpush1.bf16.msra.mxu0 0
        %1397 = vmatprep.subr.bf16.mxu0 0
        %1398 = vmatpush1.bf16.msra.mxu0 0
        %1399 = vmatprep.subr.bf16.mxu0 0
        %1400 = vmatpush1.bf16.msra.mxu0 0
        %1401 = vmatprep.subr.bf16.mxu0 0
        %1402 = vmatpush1.bf16.msra.mxu0 0
        %1403 = vmatprep.subr.bf16.mxu0 0
        %1404 = vmatpush1.bf16.msra.mxu0 %v1387
        %1405 = vmatprep.subr.bf16.mxu0 0
        %1406 = vmatpush2.bf16.msra.mxu0 0
        %1407 = vmatprep.subr.bf16.mxu0 0
        %1408 = vmatpush2.bf16.msra.mxu0 0
        %1409 = vmatprep.subr.bf16.mxu0 0
        %1410 = vmatpush2.bf16.msra.mxu0 0
        %1411 = vmatprep.subr.bf16.mxu0 0
        %1412 = vmatpush2.bf16.msra.mxu0 0
        %1413 = vmatprep.subr.bf16.mxu0 0
        %1414 = vmatpush2.bf16.msra.mxu0 0
        %1415 = vmatprep.subr.bf16.mxu0 0
        %1416 = vmatpush2.bf16.msra.mxu0 0
        %1417 = vmatprep.subr.bf16.mxu0 0
        %1418 = vmatpush2.bf16.msra.mxu0 0
        %1419 = vmatprep.subr.bf16.mxu0 0
        %1420 = vmatpush2.bf16.msra.mxu0 0
        %1421 = vmatprep.mubr.bf16.mxu0 0
        %1422 = vmatmul.mubr.bf16.gmra.mxu0 %v1383
        %v1423 = vpop.f32.mrf.mxu0
        %v1424 = vadd.f32 0.0, %v1423
        %v1425 = vpop.f32.mrf.mxu0
        %v1426 = vpop.f32.mrf.mxu0
        %v1427 = vpop.f32.mrf.mxu0
        %1428 = vdwg.mxu0
        %1430 = vrot.lane.b32.xlu0 %v1313, 64
        %v1431 = vpop.permute.xlu0 %1430
        %1433 = vrot.lane.b32.xlu0 %v1314, 64
        %v1434 = vpop.permute.xlu0 %1433
        %v1436 = vsel %vm1322, %v1431, 0
        %v1439 = vsel %vm1322, %v1434, 0
        %1441 = vmatprep.subr.bf16.mxu0 0
        %1442 = vmatpush1.bf16.xpose.msra.mxu0 0
        %1443 = vmatprep.subr.bf16.mxu0 0
        %1444 = vmatpush1.bf16.xpose.msra.mxu0 0
        %1445 = vmatprep.subr.bf16.mxu0 0
        %1446 = vmatpush1.bf16.xpose.msra.mxu0 0
        %1447 = vmatprep.subr.bf16.mxu0 0
        %1448 = vmatpush1.bf16.xpose.msra.mxu0 0
        %1449 = vmatprep.subr.bf16.mxu0 0
        %1450 = vmatpush1.bf16.xpose.msra.mxu0 0
        %1451 = vmatprep.subr.bf16.mxu0 0
        %1452 = vmatpush1.bf16.xpose.msra.mxu0 0
        %1453 = vmatprep.subr.bf16.mxu0 0
        %1454 = vmatpush1.bf16.xpose.msra.mxu0 0
        %1455 = vmatprep.subr.bf16.mxu0 0
        %1456 = vmatpush1.bf16.xpose.msra.mxu0 %v1439
        %1457 = vmatprep.subr.bf16.mxu0 0
        %1458 = vmatpush2.bf16.xpose.msra.mxu0 0
        %1459 = vmatprep.subr.bf16.mxu0 0
        %1460 = vmatpush2.bf16.xpose.msra.mxu0 0
        %1461 = vmatprep.subr.bf16.mxu0 0
        %1462 = vmatpush2.bf16.xpose.msra.mxu0 0
        %1463 = vmatprep.subr.bf16.mxu0 0
        %1464 = vmatpush2.bf16.xpose.msra.mxu0 0
        %1465 = vmatprep.subr.bf16.mxu0 0
        %1466 = vmatpush2.bf16.xpose.msra.mxu0 0
        %1467 = vmatprep.subr.bf16.mxu0 0
        %1468 = vmatpush2.bf16.xpose.msra.mxu0 0
        %1469 = vmatprep.subr.bf16.mxu0 0
        %1470 = vmatpush2.bf16.xpose.msra.mxu0 0
        %1471 = vmatprep.subr.bf16.mxu0 0
        %1472 = vmatpush2.bf16.xpose.msra.mxu0 0
        %1473 = vmatprep.mubr.bf16.mxu0 0
        %1474 = vmatmul.mubr.bf16.gmra.mxu0 %v1436
        %v1475 = vpop.f32.mrf.mxu0
        %v1476 = vadd.f32 %v1320, %v1475
        %v1477 = vpop.f32.mrf.mxu0
        %v1478 = vpop.f32.mrf.mxu0
        %v1479 = vpop.f32.mrf.mxu0
        %1480 = vdwg.mxu0
        %v1481 = vsel %vm1369, %v1476, -inf
        %1482 = vmax.xlane.f32.xlu0 %v1481
        %v1483 = vpop.xlane.xlu0 %1482
        %v1484 = vsub.f32 %v1476, %v1483
        %v1485 = vmul.f32 %v1484, 1.442695
        %v1486 = vpow.pop %v1485
        %v1487 = vsel %vm1369, %v1486, 0.0
        %1488 = vadd.xlane.f32.xlu0 %v1487
        %v1489 = vpop.xlane.xlu0 %1488
        %v1490 = vrcp.pop %v1489
        %v1491 = vmul.f32 %v1486, %v1490
        %v1492 = vpack.c.bf16 %v1491, %v1491
        %1494 = vrot.lane.b32.xlu0 %v1315, 64
        %v1495 = vpop.permute.xlu0 %1494
        %v1497 = vsel %vm1369, %v1492, 0
        %v1500 = vsel %vm1385, %v1495, 0
        %1502 = vmatprep.subr.bf16.mxu0 0
        %1503 = vmatpush1.bf16.msra.mxu0 0
        %1504 = vmatprep.subr.bf16.mxu0 0
        %1505 = vmatpush1.bf16.msra.mxu0 0
        %1506 = vmatprep.subr.bf16.mxu0 0
        %1507 = vmatpush1.bf16.msra.mxu0 0
        %1508 = vmatprep.subr.bf16.mxu0 0
        %1509 = vmatpush1.bf16.msra.mxu0 0
        %1510 = vmatprep.subr.bf16.mxu0 0
        %1511 = vmatpush1.bf16.msra.mxu0 0
        %1512 = vmatprep.subr.bf16.mxu0 0
        %1513 = vmatpush1.bf16.msra.mxu0 0
        %1514 = vmatprep.subr.bf16.mxu0 0
        %1515 = vmatpush1.bf16.msra.mxu0 0
        %1516 = vmatprep.subr.bf16.mxu0 0
        %1517 = vmatpush1.bf16.msra.mxu0 %v1500
        %1518 = vmatprep.subr.bf16.mxu0 0
        %1519 = vmatpush2.bf16.msra.mxu0 0
        %1520 = vmatprep.subr.bf16.mxu0 0
        %1521 = vmatpush2.bf16.msra.mxu0 0
        %1522 = vmatprep.subr.bf16.mxu0 0
        %1523 = vmatpush2.bf16.msra.mxu0 0
        %1524 = vmatprep.subr.bf16.mxu0 0
        %1525 = vmatpush2.bf16.msra.mxu0 0
        %1526 = vmatprep.subr.bf16.mxu0 0
        %1527 = vmatpush2.bf16.msra.mxu0 0
        %1528 = vmatprep.subr.bf16.mxu0 0
        %1529 = vmatpush2.bf16.msra.mxu0 0
        %1530 = vmatprep.subr.bf16.mxu0 0
        %1531 = vmatpush2.bf16.msra.mxu0 0
        %1532 = vmatprep.subr.bf16.mxu0 0
        %1533 = vmatpush2.bf16.msra.mxu0 0
        %1534 = vmatprep.mubr.bf16.mxu0 0
        %1535 = vmatmul.mubr.bf16.gmra.mxu0 %v1497
        %v1536 = vpop.f32.mrf.mxu0
        %v1537 = vadd.f32 0.0, %v1536
        %v1538 = vpop.f32.mrf.mxu0
        %v1539 = vpop.f32.mrf.mxu0
        %v1540 = vpop.f32.mrf.mxu0
        %1541 = vdwg.mxu0
        %1543 = vrot.lane.b32.xlu0 %v1537, 64
        %v1544 = vpop.permute.xlu0 %1543
        %v1546 = vsel %vm1322, %v1424, %v1544
        %v1547 = vpack.c.bf16 %v1546, %v1546
        %v1548 = vld [vmem:[%s725] sm:$0xf]
        %v1549 = vld [vmem:[%s725 + $0x4] sm:$0xf]
        %v1550 = vld [vmem:[%s725 + $0x8] sm:$0xf]
        %v1551 = vld [vmem:[%s725 + $0xc] sm:$0xf]
        %v1552 = vld [vmem:[%s725 + $0x10] sm:$0xf]
        %v1553 = vld [vmem:[%s725 + $0x14] sm:$0xf]
        %v1554 = vld [vmem:[%s725 + $0x18] sm:$0xf]
        %v1555 = vld [vmem:[%s725 + $0x1c] sm:$0xf]
        %v1556 = vld [vmem:[%s725 + $0x20] sm:$0xf]
        %v1557 = vld [vmem:[%s725 + $0x24] sm:$0xf]
        %v1558 = vld [vmem:[%s725 + $0x28] sm:$0xf]
        %v1559 = vld [vmem:[%s725 + $0x2c] sm:$0xf]
        %v1560 = vld [vmem:[%s725 + $0x30] sm:$0xf]
        %v1561 = vld [vmem:[%s725 + $0x34] sm:$0xf]
        %v1562 = vld [vmem:[%s725 + $0x38] sm:$0xf]
        %v1563 = vld [vmem:[%s725 + $0x3c] sm:$0xf]
        %v1564 = vld [vmem:[%s836] sm:$0x1]
        %v1566 = vlaneseq
        %v1567 = vshrl.u32 %v1566, 7
        %v1568 = vsub.s32 0, %v1567
        %v1569 = vrot.slane %v1564, %v1568
        %v1587 = vunpack.c.l.b16 %v1548
        %v1588 = vunpack.c.l.b16 %v1549
        %v1589 = vunpack.c.l.b16 %v1550
        %v1590 = vunpack.c.l.b16 %v1551
        %v1591 = vunpack.c.l.b16 %v1552
        %v1592 = vunpack.c.l.b16 %v1553
        %v1593 = vunpack.c.l.b16 %v1554
        %v1594 = vunpack.c.l.b16 %v1555
        %v1595 = vunpack.c.l.b16 %v1556
        %v1596 = vunpack.c.l.b16 %v1557
        %v1597 = vunpack.c.l.b16 %v1558
        %v1598 = vunpack.c.l.b16 %v1559
        %v1599 = vunpack.c.l.b16 %v1560
        %v1600 = vunpack.c.l.b16 %v1561
        %v1601 = vunpack.c.l.b16 %v1562
        %v1602 = vunpack.c.l.b16 %v1563
        %v1603 = vpack.c.b16 %v1588, %v1587
        %v1604 = vpack.c.b16 %v1590, %v1589
        %v1605 = vpack.c.b16 %v1592, %v1591
        %v1606 = vpack.c.b16 %v1594, %v1593
        %v1607 = vpack.c.b16 %v1596, %v1595
        %v1608 = vpack.c.b16 %v1598, %v1597
        %v1609 = vpack.c.b16 %v1600, %v1599
        %v1610 = vpack.c.b16 %v1602, %v1601
        %1619 = vmatprep.subr.bf16.mxu0 0
        %1620 = vmatpush1.bf16.msra.mxu0 %v1610
        %1621 = vmatprep.subr.bf16.mxu0 0
        %1622 = vmatpush1.bf16.msra.mxu0 %v1609
        %1623 = vmatprep.subr.bf16.mxu0 0
        %1624 = vmatpush1.bf16.msra.mxu0 %v1608
        %1625 = vmatprep.subr.bf16.mxu0 0
        %1626 = vmatpush1.bf16.msra.mxu0 %v1607
        %1627 = vmatprep.subr.bf16.mxu0 0
        %1628 = vmatpush1.bf16.msra.mxu0 %v1606
        %1629 = vmatprep.subr.bf16.mxu0 0
        %1630 = vmatpush1.bf16.msra.mxu0 %v1605
        %1631 = vmatprep.subr.bf16.mxu0 0
        %1632 = vmatpush1.bf16.msra.mxu0 %v1604
        %1633 = vmatprep.subr.bf16.mxu0 0
        %1634 = vmatpush1.bf16.msra.mxu0 %v1603
        %1635 = vmatprep.subr.bf16.mxu0 0
        %1636 = vmatpush2.bf16.msra.mxu0 0
        %1637 = vmatprep.subr.bf16.mxu0 0
        %1638 = vmatpush2.bf16.msra.mxu0 0
        %1639 = vmatprep.subr.bf16.mxu0 0
        %1640 = vmatpush2.bf16.msra.mxu0 0
        %1641 = vmatprep.subr.bf16.mxu0 0
        %1642 = vmatpush2.bf16.msra.mxu0 0
        %1643 = vmatprep.subr.bf16.mxu0 0
        %1644 = vmatpush2.bf16.msra.mxu0 0
        %1645 = vmatprep.subr.bf16.mxu0 0
        %1646 = vmatpush2.bf16.msra.mxu0 0
        %1647 = vmatprep.subr.bf16.mxu0 0
        %1648 = vmatpush2.bf16.msra.mxu0 0
        %1649 = vmatprep.subr.bf16.mxu0 0
        %1650 = vmatpush2.bf16.msra.mxu0 0
        %1651 = vmatprep.mubr.bf16.mxu0 0
        %1652 = vmatmul.mubr.bf16.gmra.mxu0 %v1547
        %v1653 = vpop.f32.mrf.mxu0
        %v1654 = vadd.f32 %v1569, %v1653
        %v1655 = vpop.f32.mrf.mxu0
        %v1656 = vpop.f32.mrf.mxu0
        %v1657 = vpop.f32.mrf.mxu0
        %1658 = vdwg.mxu0
        %v1659 = vadd.f32 %v1654, %v1052
        %v1660 = vld [vmem:[%s839] sm:$0x1]
        %v1661 = vld [vmem:[%s842] sm:$0x1]
        %1662 = vadd.xlane.f32.xlu0 %v1659
        %v1663 = vpop.xlane.xlu0 %1662
        %v1664 = vrcp.pop 128.0
        %v1665 = vmul.f32 %v1663, %v1664
        %v1666 = vsub.f32 %v1659, %v1665
        %v1667 = vmul.f32 %v1666, %v1666
        %1668 = vadd.xlane.f32.xlu0 %v1667
        %v1669 = vpop.xlane.xlu0 %1668
        %v1670 = vmul.f32 %v1669, %v1664
        %v1671 = vadd.f32 %v1670, 1e-12
        %v1672 = vrsqrt.pop %v1671
        %v1673 = vmul.f32 %v1666, %v1672
        %v1675 = vlaneseq
        %v1676 = vshrl.u32 %v1675, 7
        %v1677 = vsub.s32 0, %v1676
        %v1678 = vrot.slane %v1660, %v1677
        %v1680 = vmul.f32 %v1673, %v1678
        %v1682 = vlaneseq
        %v1683 = vshrl.u32 %v1682, 7
        %v1684 = vsub.s32 0, %v1683
        %v1685 = vrot.slane %v1661, %v1684
        %v1687 = vadd.f32 %v1680, %v1685
        %v1688 = vpack.c.bf16 %v1687, %v1687
        %v1689 = vld [vmem:[%s734] sm:$0xff]
        %v1690 = vld [vmem:[%s734 + $0x8] sm:$0xff]
        %v1691 = vld [vmem:[%s734 + $0x10] sm:$0xff]
        %v1692 = vld [vmem:[%s734 + $0x18] sm:$0xff]
        %v1693 = vld [vmem:[%s734 + $0x20] sm:$0xff]
        %v1694 = vld [vmem:[%s734 + $0x28] sm:$0xff]
        %v1695 = vld [vmem:[%s734 + $0x30] sm:$0xff]
        %v1696 = vld [vmem:[%s734 + $0x38] sm:$0xff]
        %v1697 = vld [vmem:[%s734 + $0x40] sm:$0xff]
        %v1698 = vld [vmem:[%s734 + $0x48] sm:$0xff]
        %v1699 = vld [vmem:[%s734 + $0x50] sm:$0xff]
        %v1700 = vld [vmem:[%s734 + $0x58] sm:$0xff]
        %v1701 = vld [vmem:[%s734 + $0x60] sm:$0xff]
        %v1702 = vld [vmem:[%s734 + $0x68] sm:$0xff]
        %v1703 = vld [vmem:[%s734 + $0x70] sm:$0xff]
        %v1704 = vld [vmem:[%s734 + $0x78] sm:$0xff]
        %v1705 = vld [vmem:[%s846] sm:$0x3]
        %v1707 = vlaneseq
        %v1708 = vshrl.u32 %v1707, 7
        %v1709 = vsub.s32 0, %v1708
        %v1710 = vrot.slane %v1705, %v1709
        %v1711 = vlaneseq
        %v1712 = vshrl.u32 %v1711, 7
        %v1713 = vsub.s32 1, %v1712
        %v1714 = vrot.slane %v1705, %v1713
        %v1733 = vunpack.c.l.b16 %v1689
        %v1734 = vunpack.c.h.b16 %v1689
        %v1735 = vunpack.c.l.b16 %v1690
        %v1736 = vunpack.c.h.b16 %v1690
        %v1737 = vunpack.c.l.b16 %v1691
        %v1738 = vunpack.c.h.b16 %v1691
        %v1739 = vunpack.c.l.b16 %v1692
        %v1740 = vunpack.c.h.b16 %v1692
        %v1741 = vunpack.c.l.b16 %v1693
        %v1742 = vunpack.c.h.b16 %v1693
        %v1743 = vunpack.c.l.b16 %v1694
        %v1744 = vunpack.c.h.b16 %v1694
        %v1745 = vunpack.c.l.b16 %v1695
        %v1746 = vunpack.c.h.b16 %v1695
        %v1747 = vunpack.c.l.b16 %v1696
        %v1748 = vunpack.c.h.b16 %v1696
        %v1749 = vunpack.c.l.b16 %v1697
        %v1750 = vunpack.c.h.b16 %v1697
        %v1751 = vunpack.c.l.b16 %v1698
        %v1752 = vunpack.c.h.b16 %v1698
        %v1753 = vunpack.c.l.b16 %v1699
        %v1754 = vunpack.c.h.b16 %v1699
        %v1755 = vunpack.c.l.b16 %v1700
        %v1756 = vunpack.c.h.b16 %v1700
        %v1757 = vunpack.c.l.b16 %v1701
        %v1758 = vunpack.c.h.b16 %v1701
        %v1759 = vunpack.c.l.b16 %v1702
        %v1760 = vunpack.c.h.b16 %v1702
        %v1761 = vunpack.c.l.b16 %v1703
        %v1762 = vunpack.c.h.b16 %v1703
        %v1763 = vunpack.c.l.b16 %v1704
        %v1764 = vunpack.c.h.b16 %v1704
        %v1765 = vpack.c.b16 %v1735, %v1733
        %v1766 = vpack.c.b16 %v1736, %v1734
        %v1767 = vpack.c.b16 %v1739, %v1737
        %v1768 = vpack.c.b16 %v1740, %v1738
        %v1769 = vpack.c.b16 %v1743, %v1741
        %v1770 = vpack.c.b16 %v1744, %v1742
        %v1771 = vpack.c.b16 %v1747, %v1745
        %v1772 = vpack.c.b16 %v1748, %v1746
        %v1773 = vpack.c.b16 %v1751, %v1749
        %v1774 = vpack.c.b16 %v1752, %v1750
        %v1775 = vpack.c.b16 %v1755, %v1753
        %v1776 = vpack.c.b16 %v1756, %v1754
        %v1777 = vpack.c.b16 %v1759, %v1757
        %v1778 = vpack.c.b16 %v1760, %v1758
        %v1779 = vpack.c.b16 %v1763, %v1761
        %v1780 = vpack.c.b16 %v1764, %v1762
        %1797 = vmatprep.subr.bf16.mxu0 %v1780
        %1798 = vmatpush1.bf16.msra.mxu0 %v1779
        %1799 = vmatprep.subr.bf16.mxu0 %v1778
        %1800 = vmatpush1.bf16.msra.mxu0 %v1777
        %1801 = vmatprep.subr.bf16.mxu0 %v1776
        %1802 = vmatpush1.bf16.msra.mxu0 %v1775
        %1803 = vmatprep.subr.bf16.mxu0 %v1774
        %1804 = vmatpush1.bf16.msra.mxu0 %v1773
        %1805 = vmatprep.subr.bf16.mxu0 %v1772
        %1806 = vmatpush1.bf16.msra.mxu0 %v1771
        %1807 = vmatprep.subr.bf16.mxu0 %v1770
        %1808 = vmatpush1.bf16.msra.mxu0 %v1769
        %1809 = vmatprep.subr.bf16.mxu0 %v1768
        %1810 = vmatpush1.bf16.msra.mxu0 %v1767
        %1811 = vmatprep.subr.bf16.mxu0 %v1766
        %1812 = vmatpush1.bf16.msra.mxu0 %v1765
        %1813 = vmatprep.subr.bf16.mxu0 0
        %1814 = vmatpush2.bf16.msra.mxu0 0
        %1815 = vmatprep.subr.bf16.mxu0 0
        %1816 = vmatpush2.bf16.msra.mxu0 0
        %1817 = vmatprep.subr.bf16.mxu0 0
        %1818 = vmatpush2.bf16.msra.mxu0 0
        %1819 = vmatprep.subr.bf16.mxu0 0
        %1820 = vmatpush2.bf16.msra.mxu0 0
        %1821 = vmatprep.subr.bf16.mxu0 0
        %1822 = vmatpush2.bf16.msra.mxu0 0
        %1823 = vmatprep.subr.bf16.mxu0 0
        %1824 = vmatpush2.bf16.msra.mxu0 0
        %1825 = vmatprep.subr.bf16.mxu0 0
        %1826 = vmatpush2.bf16.msra.mxu0 0
        %1827 = vmatprep.subr.bf16.mxu0 0
        %1828 = vmatpush2.bf16.msra.mxu0 0
        %1829 = vmatprep.mubr.bf16.mxu0 0
        %1830 = vmatmul.mubr.bf16.gmra.mxu0 %v1688
        %v1831 = vpop.f32.mrf.mxu0
        %v1832 = vadd.f32 %v1710, %v1831
        %v1833 = vpop.f32.mrf.mxu0
        %v1834 = vadd.f32 %v1714, %v1833
        %v1835 = vpop.f32.mrf.mxu0
        %v1836 = vpop.f32.mrf.mxu0
        %1837 = vdwg.mxu0
        %v1838 = vmul.f32 %v1832, 0.5
        %v1839 = vmul.f32 %v1834, 0.5
        %v1840 = vmul.f32 %v1832, 0.044715
        %v1841 = vmul.f32 %v1834, 0.044715
        %v1842 = vmul.f32 %v1840, %v1832
        %v1843 = vmul.f32 %v1841, %v1834
        %v1844 = vmul.f32 %v1842, %v1832
        %v1845 = vmul.f32 %v1843, %v1834
        %v1846 = vadd.f32 %v1832, %v1844
        %v1847 = vadd.f32 %v1834, %v1845
        %v1848 = vmul.f32 %v1846, 0.7978846
        %v1849 = vmul.f32 %v1847, 0.7978846
        %v1850 = vtanh.pop %v1848
        %v1851 = vtanh.pop %v1849
        %v1852 = vadd.f32 %v1850, 1.0
        %v1853 = vadd.f32 %v1851, 1.0
        %v1854 = vmul.f32 %v1838, %v1852
        %v1855 = vmul.f32 %v1839, %v1853
        %v1856 = vpack.c.bf16 %v1854, %v1854
        %v1857 = vpack.c.bf16 %v1855, %v1855
        %v1858 = vld [vmem:[%s743] sm:$0xf]
        %v1859 = vld [vmem:[%s743 + $0x4] sm:$0xf]
        %v1860 = vld [vmem:[%s743 + $0x8] sm:$0xf]
        %v1861 = vld [vmem:[%s743 + $0xc] sm:$0xf]
        %v1862 = vld [vmem:[%s743 + $0x10] sm:$0xf]
        %v1863 = vld [vmem:[%s743 + $0x14] sm:$0xf]
        %v1864 = vld [vmem:[%s743 + $0x18] sm:$0xf]
        %v1865 = vld [vmem:[%s743 + $0x1c] sm:$0xf]
        %v1866 = vld [vmem:[%s743 + $0x20] sm:$0xf]
        %v1867 = vld [vmem:[%s743 + $0x24] sm:$0xf]
        %v1868 = vld [vmem:[%s743 + $0x28] sm:$0xf]
        %v1869 = vld [vmem:[%s743 + $0x2c] sm:$0xf]
        %v1870 = vld [vmem:[%s743 + $0x30] sm:$0xf]
        %v1871 = vld [vmem:[%s743 + $0x34] sm:$0xf]
        %v1872 = vld [vmem:[%s743 + $0x38] sm:$0xf]
        %v1873 = vld [vmem:[%s743 + $0x3c] sm:$0xf]
        %v1874 = vld [vmem:[%s743 + $0x40] sm:$0xf]
        %v1875 = vld [vmem:[%s743 + $0x44] sm:$0xf]
        %v1876 = vld [vmem:[%s743 + $0x48] sm:$0xf]
        %v1877 = vld [vmem:[%s743 + $0x4c] sm:$0xf]
        %v1878 = vld [vmem:[%s743 + $0x50] sm:$0xf]
        %v1879 = vld [vmem:[%s743 + $0x54] sm:$0xf]
        %v1880 = vld [vmem:[%s743 + $0x58] sm:$0xf]
        %v1881 = vld [vmem:[%s743 + $0x5c] sm:$0xf]
        %v1882 = vld [vmem:[%s743 + $0x60] sm:$0xf]
        %v1883 = vld [vmem:[%s743 + $0x64] sm:$0xf]
        %v1884 = vld [vmem:[%s743 + $0x68] sm:$0xf]
        %v1885 = vld [vmem:[%s743 + $0x6c] sm:$0xf]
        %v1886 = vld [vmem:[%s743 + $0x70] sm:$0xf]
        %v1887 = vld [vmem:[%s743 + $0x74] sm:$0xf]
        %v1888 = vld [vmem:[%s743 + $0x78] sm:$0xf]
        %v1889 = vld [vmem:[%s743 + $0x7c] sm:$0xf]
        %v1890 = vld [vmem:[%s849] sm:$0x1]
        %v1892 = vlaneseq
        %v1893 = vshrl.u32 %v1892, 7
        %v1894 = vsub.s32 0, %v1893
        %v1895 = vrot.slane %v1890, %v1894
        %v1929 = vunpack.c.l.b16 %v1858
        %v1930 = vunpack.c.l.b16 %v1859
        %v1931 = vunpack.c.l.b16 %v1860
        %v1932 = vunpack.c.l.b16 %v1861
        %v1933 = vunpack.c.l.b16 %v1862
        %v1934 = vunpack.c.l.b16 %v1863
        %v1935 = vunpack.c.l.b16 %v1864
        %v1936 = vunpack.c.l.b16 %v1865
        %v1937 = vunpack.c.l.b16 %v1866
        %v1938 = vunpack.c.l.b16 %v1867
        %v1939 = vunpack.c.l.b16 %v1868
        %v1940 = vunpack.c.l.b16 %v1869
        %v1941 = vunpack.c.l.b16 %v1870
        %v1942 = vunpack.c.l.b16 %v1871
        %v1943 = vunpack.c.l.b16 %v1872
        %v1944 = vunpack.c.l.b16 %v1873
        %v1945 = vunpack.c.l.b16 %v1874
        %v1946 = vunpack.c.l.b16 %v1875
        %v1947 = vunpack.c.l.b16 %v1876
        %v1948 = vunpack.c.l.b16 %v1877
        %v1949 = vunpack.c.l.b16 %v1878
        %v1950 = vunpack.c.l.b16 %v1879
        %v1951 = vunpack.c.l.b16 %v1880
        %v1952 = vunpack.c.l.b16 %v1881
        %v1953 = vunpack.c.l.b16 %v1882
        %v1954 = vunpack.c.l.b16 %v1883
        %v1955 = vunpack.c.l.b16 %v1884
        %v1956 = vunpack.c.l.b16 %v1885
        %v1957 = vunpack.c.l.b16 %v1886
        %v1958 = vunpack.c.l.b16 %v1887
        %v1959 = vunpack.c.l.b16 %v1888
        %v1960 = vunpack.c.l.b16 %v1889
        %v1961 = vpack.c.b16 %v1930, %v1929
        %v1962 = vpack.c.b16 %v1932, %v1931
        %v1963 = vpack.c.b16 %v1934, %v1933
        %v1964 = vpack.c.b16 %v1936, %v1935
        %v1965 = vpack.c.b16 %v1938, %v1937
        %v1966 = vpack.c.b16 %v1940, %v1939
        %v1967 = vpack.c.b16 %v1942, %v1941
        %v1968 = vpack.c.b16 %v1944, %v1943
        %v1969 = vpack.c.b16 %v1946, %v1945
        %v1970 = vpack.c.b16 %v1948, %v1947
        %v1971 = vpack.c.b16 %v1950, %v1949
        %v1972 = vpack.c.b16 %v1952, %v1951
        %v1973 = vpack.c.b16 %v1954, %v1953
        %v1974 = vpack.c.b16 %v1956, %v1955
        %v1975 = vpack.c.b16 %v1958, %v1957
        %v1976 = vpack.c.b16 %v1960, %v1959
        %1993 = vmatprep.subr.bf16.mxu0 0
        %1994 = vmatpush1.bf16.msra.mxu0 %v1968
        %1995 = vmatprep.subr.bf16.mxu0 0
        %1996 = vmatpush1.bf16.msra.mxu0 %v1967
        %1997 = vmatprep.subr.bf16.mxu0 0
        %1998 = vmatpush1.bf16.msra.mxu0 %v1966
        %1999 = vmatprep.subr.bf16.mxu0 0
        %2000 = vmatpush1.bf16.msra.mxu0 %v1965
        %2001 = vmatprep.subr.bf16.mxu0 0
        %2002 = vmatpush1.bf16.msra.mxu0 %v1964
        %2003 = vmatprep.subr.bf16.mxu0 0
        %2004 = vmatpush1.bf16.msra.mxu0 %v1963
        %2005 = vmatprep.subr.bf16.mxu0 0
        %2006 = vmatpush1.bf16.msra.mxu0 %v1962
        %2007 = vmatprep.subr.bf16.mxu0 0
        %2008 = vmatpush1.bf16.msra.mxu0 %v1961
        %2009 = vmatprep.subr.bf16.mxu0 0
        %2010 = vmatpush2.bf16.msra.mxu0 %v1976
        %2011 = vmatprep.subr.bf16.mxu0 0
        %2012 = vmatpush2.bf16.msra.mxu0 %v1975
        %2013 = vmatprep.subr.bf16.mxu0 0
        %2014 = vmatpush2.bf16.msra.mxu0 %v1974
        %2015 = vmatprep.subr.bf16.mxu0 0
        %2016 = vmatpush2.bf16.msra.mxu0 %v1973
        %2017 = vmatprep.subr.bf16.mxu0 0
        %2018 = vmatpush2.bf16.msra.mxu0 %v1972
        %2019 = vmatprep.subr.bf16.mxu0 0
        %2020 = vmatpush2.bf16.msra.mxu0 %v1971
        %2021 = vmatprep.subr.bf16.mxu0 0
        %2022 = vmatpush2.bf16.msra.mxu0 %v1970
        %2023 = vmatprep.subr.bf16.mxu0 0
        %2024 = vmatpush2.bf16.msra.mxu0 %v1969
        %2025 = vmatprep.mubr.bf16.mxu0 %v1857
        %2026 = vmatmul.mubr.bf16.gmra.mxu0 %v1856
        %v2027 = vpop.f32.mrf.mxu0
        %v2028 = vadd.f32 %v1895, %v2027
        %v2029 = vpop.f32.mrf.mxu0
        %v2030 = vpop.f32.mrf.mxu0
        %v2031 = vpop.f32.mrf.mxu0
        %2032 = vdwg.mxu0
        %v2033 = vadd.f32 %v2028, %v1687
        %v2034 = vld [vmem:[%s852] sm:$0x1]
        %v2035 = vld [vmem:[%s855] sm:$0x1]
        %2036 = vadd.xlane.f32.xlu0 %v2033
        %v2037 = vpop.xlane.xlu0 %2036
        %v2038 = vmul.f32 %v2037, %v1664
        %v2039 = vsub.f32 %v2033, %v2038
        %v2040 = vmul.f32 %v2039, %v2039
        %2041 = vadd.xlane.f32.xlu0 %v2040
        %v2042 = vpop.xlane.xlu0 %2041
        %v2043 = vmul.f32 %v2042, %v1664
        %v2044 = vadd.f32 %v2043, 1e-12
        %v2045 = vrsqrt.pop %v2044
        %v2046 = vmul.f32 %v2039, %v2045
        %v2048 = vlaneseq
        %v2049 = vshrl.u32 %v2048, 7
        %v2050 = vsub.s32 0, %v2049
        %v2051 = vrot.slane %v2034, %v2050
        %v2053 = vmul.f32 %v2046, %v2051
        %v2055 = vlaneseq
        %v2056 = vshrl.u32 %v2055, 7
        %v2057 = vsub.s32 0, %v2056
        %v2058 = vrot.slane %v2035, %v2057
        %v2060 = vadd.f32 %v2053, %v2058
        %2061 = vst [vmem:[#allocation2] sm:$0xff] %v2060
        %p2062 = scmp.eq.s32.totalorder %s44, 1
        // Predicated region
        $region161: #{tpu_custom_call.1} parent=87 // pred_check
          %p2063 = pneg %p2062
        $region162: #{tpu_custom_call.1} parent=87 // pred_check_branch
          %2065 = sbr.rel (%p2063) target = $region164
        $region163: #{tpu_custom_call.1} parent=87 // pred_region
          %2066 = vst [vmem:[#allocation22] sm:$0xff] %v2060
        $region164: #{tpu_custom_call.1} parent=87 // pred_fallthru
          _
        // Predicated region
        $region165: #{tpu_custom_call.1} parent=87 // pred_check
          %p2067 = pneg %p474
        $region166: #{tpu_custom_call.1} parent=87 // pred_check_branch
          %2069 = sbr.rel (%p2067) target = $region168
        $region167: #{tpu_custom_call.1} parent=87 // pred_region
          %s2071 = ssub.s32 128, 128
          %2072 = vsyncadd [#allocation9], %s2071
          %s2074 = sshll.u32 [#allocation22], 4
          %s2075 = int_to_ptr.vmem [resolvable:$true] %s2074
          %2077 = dma.vmem_to_hbm [thread:$0]  %s2075, 128, %s19, [#allocation9]
        $region168: #{tpu_custom_call.1} parent=87 // pred_fallthru
          _
        // Predicated region
        $region169: #{tpu_custom_call.1} parent=87 // pred_check
          %p2078 = pneg %p474
        $region170: #{tpu_custom_call.1} parent=87 // pred_check_branch
          %2080 = sbr.rel (%p2078) target = $region172
        $region171: #{tpu_custom_call.1} parent=87 // pred_region
          %2081 = dma.done [#allocation9], 128
        $region172: #{tpu_custom_call.1} parent=87 // pred_fallthru
          _
      $region88: #{tpu_custom_call.1} parent=5 // pred_fallthru
        _
      %p2082 = scmp.le.s32.totalorder 2, %s39
      // Predicated region
      $region173: #{tpu_custom_call.1} parent=5 // pred_check
        %p2083 = pneg %p2082
      $region174: #{tpu_custom_call.1} parent=5 // pred_check_branch
        %2085 = sbr.rel (%p2083) target = $region176
      $region175: #{tpu_custom_call.1} parent=5 // pred_region
        %s2086 = ssub.s32 %s39, 2
      $region176: #{tpu_custom_call.1} parent=5 // pred_fallthru
        _
    $region6: #{tpu_custom_call.1} parent=1 // loop_footer
      %s43 = sadd.s32 1, %s39
    $region7: #{tpu_custom_call.1} parent=1 // loop_footer_branch
      %38 = sbr.rel target = $region3
    $region8: #{tpu_custom_call.1} parent=1 // loop_exit
      _
    %2087 = vsyncpa [#allocation8], 1
    %s2088 = scalar_lea.sflag [#allocation8], 1
    %2089 = vsyncpa %s2088, 1
    %2090 = vsyncpa [#allocation11], 1
    %2091 = vsyncpa [#allocation14], 1
    %2092 = vsyncpa [#allocation17], 1
    %s2093 = scalar_lea.sflag [#allocation17], 1
    %2094 = vsyncpa %s2093, 1
    %2095 = vsyncpa [#allocation20], 1
    %s2096 = scalar_lea.sflag [#allocation20], 1
    %2097 = vsyncpa %s2096, 1
    %2098 = vsyncpa [#allocation9], 1
    %s2099 = scalar_lea.sflag [#allocation9], 1
    %2100 = vsyncpa %s2099, 1
  %2101 = vsyncmov [#allocation4]
  %s2102 = vpop.sfrf %2101
  %p2103 = scmp.eq.s32.totalorder %s2102, 0
  %p2104 = pneg %p2103
  %2106 = shalt.err (%p2104)
  %s2107 = scalar_lea.sflag [#allocation4], 1
  %2108 = vsyncmov %s2107
  %s2109 = vpop.sfrf %2108
  %p2110 = scmp.eq.s32.totalorder %s2109, 0
  %p2111 = pneg %p2110
  %2113 = shalt.err (%p2111)
  %s2114 = scalar_lea.sflag [#allocation4], 2
  %2115 = vsyncmov %s2114
  %s2116 = vpop.sfrf %2115
  %p2117 = scmp.eq.s32.totalorder %s2116, 0
  %p2118 = pneg %p2117
  %2120 = shalt.err (%p2118)
  %s2121 = scalar_lea.sflag [#allocation4], 3
  %2122 = vsyncmov %s2121
  %s2123 = vpop.sfrf %2122
  %p2124 = scmp.eq.s32.totalorder %s2123, 0
  %p2125 = pneg %p2124
  %2127 = shalt.err (%p2125)
  %s2128 = scalar_lea.sflag [#allocation4], 4
  %2129 = vsyncmov %s2128
  %s2130 = vpop.sfrf %2129
  %p2131 = scmp.eq.s32.totalorder %s2130, 0
  %p2132 = pneg %p2131
  %2134 = shalt.err (%p2132)
  %s2135 = scalar_lea.sflag [#allocation4], 5
  %2136 = vsyncmov %s2135
  %s2137 = vpop.sfrf %2136
  %p2138 = scmp.eq.s32.totalorder %s2137, 0
  %p2139 = pneg %p2138
  %2141 = shalt.err (%p2139)
  %s2142 = scalar_lea.sflag [#allocation4], 6
  %2143 = vsyncmov %s2142
  %s2144 = vpop.sfrf %2143
  %p2145 = scmp.eq.s32.totalorder %s2144, 0
  %p2146 = pneg %p2145
  %2148 = shalt.err (%p2146)
  %s2149 = scalar_lea.sflag [#allocation4], 7
  %2150 = vsyncmov %s2149
  %s2151 = vpop.sfrf %2150
  %p2152 = scmp.eq.s32.totalorder %s2151, 0
  %p2153 = pneg %p2152
  %2155 = shalt.err (%p2153)

</llo_original>
